<compile_context>
chip_gen: v6e
topology: v6e:2x2x1
jax: 0.10.0
libtpu: 0.0.40
codegen_flags: <defaults>
</compile_context>

<pallas_src>
import functools
import math

import jax
import jax.numpy as jnp
from jax import lax
from jax.experimental import pallas as pl
from jax.experimental.pallas import tpu as pltpu


# ----------------------------------------------------------------------------
# helpers
# ----------------------------------------------------------------------------
def _layer_norm(x, gamma, beta, eps=1e-5):
    # single-pass mean / mean-of-squares (halves reduction traffic vs. two passes)
    mu = jnp.mean(x, axis=-1, keepdims=True)
    ms = jnp.mean(x * x, axis=-1, keepdims=True)
    var = ms - mu * mu
    return (x - mu) * lax.rsqrt(var + eps) * gamma + beta


def _pick_query_tile(seq_len):
    """Query-tile length: full sequence when small, else a multiple of 8 dividing S."""
    if seq_len <= 512:
        return seq_len
    for t in (512, 256, 128, 64, 32, 16, 8):
        if seq_len % t == 0:
            return t
    return seq_len


def _vmem_limit_bytes(S, TQ, D, F, H):
    """Rough tile-footprint estimate with headroom, clamped to a generation-safe range."""
    bf, f32 = 2, 4
    weights = (4 * D * D + 2 * D * F) * bf * 2            # bf16 weights, double-buffered
    acts = (TQ * D + S * D + TQ * D) * f32 * 2            # q-tile + full-x + out, double-buffered
    kv_cache = 2 * H * S * (D // H) * bf                  # head-major K/V scratch
    temps = (H * TQ * S) * f32 * 3 + TQ * F * f32 * 2 + S * 2 * D * (f32 + bf)
    est = int((weights + acts + kv_cache + temps) * 1.5) + (4 << 20)
    return max(32 << 20, min(est, 64 << 20))              # 64 MiB cap keeps v7x-physical safe


# ----------------------------------------------------------------------------
# Pallas kernel: one full TransformerEncoderLayer.
# Grid = (batch, num_query_tiles). K/V for the whole sequence are computed once per
# batch row (query-tile index == 0) into head-major bf16 VMEM scratch and reused.
# ----------------------------------------------------------------------------
def encoder_layer_kernel(
    xq_ref,     # (1, TQ, D)  query tile of x (fp32)
    xf_ref,     # (1, S, D)   full sequence (fp32), revisited across query tiles
    wq_ref,     # (D, D)      bf16, pre-transposed, 1/sqrt(Dh) folded in
    bq_ref,     # (1, D)      fp32, 1/sqrt(Dh) folded in
    wkv_ref,    # (D, 2D)     bf16, pre-transposed
    bkv_ref,    # (1, 2D)     fp32
    wo_ref,     # (D, D)      bf16, pre-transposed
    bo_ref,     # (1, D)      fp32
    ln1g_ref,   # (1, D) fp32
    ln1b_ref,   # (1, D) fp32
    ln2g_ref,   # (1, D) fp32
    ln2b_ref,   # (1, D) fp32
    w1_ref,     # (D, F)      bf16, pre-transposed
    b1_ref,     # (1, F)      fp32
    w2_ref,     # (F, D)      bf16, pre-transposed
    b2_ref,     # (1, D)      fp32
    o_ref,      # (1, TQ, D)  fp32
    k_sc,       # (H, S, Dh)  bf16 VMEM scratch
    v_sc,       # (H, S, Dh)  bf16 VMEM scratch
    *,
    num_heads: int,
):
    TQ, D = xq_ref.shape[1], xq_ref.shape[2]
    S = xf_ref.shape[1]
    H = num_heads
    Dh = D // H
    qi = pl.program_id(1)

    # ---- K/V projection for the whole sequence, once per batch row ----------
    @pl.when(qi == 0)
    def _():
        xf = xf_ref[0].astype(jnp.bfloat16)                               # (S, D)
        kv = jnp.dot(xf, wkv_ref[...],
                     preferred_element_type=jnp.float32) + bkv_ref[0]     # (S, 2D) fp32
        kvb = kv.astype(jnp.bfloat16)
        k_sc[...] = jnp.stack([kvb[:, h * Dh:(h + 1) * Dh] for h in range(H)], axis=0)
        v_sc[...] = jnp.stack([kvb[:, D + h * Dh:D + (h + 1) * Dh] for h in range(H)], axis=0)

    # ---- Q projection for this query tile (scale pre-folded into wq/bq) -----
    x = xq_ref[0]                                                         # (TQ, D) fp32
    xb = x.astype(jnp.bfloat16)
    q = jnp.dot(xb, wq_ref[...], preferred_element_type=jnp.float32) + bq_ref[0]
    qb = q.astype(jnp.bfloat16)
    q3 = jnp.stack([qb[:, h * Dh:(h + 1) * Dh] for h in range(H)], axis=0)  # (H, TQ, Dh)

    k3 = k_sc[...]                                                        # (H, S, Dh) bf16
    v3 = v_sc[...]                                                        # (H, S, Dh) bf16

    # ---- batched-head causal attention (fp32 softmax) ------------------------
    s = jnp.einsum('hqd,hkd->hqk', q3, k3,
                   preferred_element_type=jnp.float32)                    # (H, TQ, S) fp32
    q0 = qi * TQ
    row = lax.broadcasted_iota(jnp.int32, (TQ, S), 0) + q0
    col = lax.broadcasted_iota(jnp.int32, (TQ, S), 1)
    s = jnp.where((col <= row)[None, :, :], s, -1e30)

    m = jnp.max(s, axis=-1, keepdims=True)
    e = jnp.exp(s - m)
    p = e * pl.reciprocal(jnp.sum(e, axis=-1, keepdims=True), approx=True)

    ctx = jnp.einsum('hqk,hkd->hqd', p.astype(jnp.bfloat16), v3,
                     preferred_element_type=jnp.float32)                  # (H, TQ, Dh) fp32
    attn = jnp.concatenate([ctx[h] for h in range(H)], axis=-1)           # (TQ, D) fp32
    attn = jnp.dot(attn.astype(jnp.bfloat16), wo_ref[...],
                   preferred_element_type=jnp.float32) + bo_ref[0]

    # ---- residual + LayerNorm1 (fp32) ----------------------------------------
    y = _layer_norm(x + attn, ln1g_ref[0], ln1b_ref[0])

    # ---- feed-forward (bf16 matmuls, fp32 accumulation) -----------------------
    h1 = jnp.dot(y.astype(jnp.bfloat16), w1_ref[...],
                 preferred_element_type=jnp.float32) + b1_ref[0]
    h1 = jnp.maximum(h1, 0.0)
    ff = jnp.dot(h1.astype(jnp.bfloat16), w2_ref[...],
                 preferred_element_type=jnp.float32) + b2_ref[0]

    # ---- residual + LayerNorm2 -------------------------------------------------
    o_ref[0] = _layer_norm(y + ff, ln2g_ref[0], ln2b_ref[0]).astype(o_ref.dtype)


# ----------------------------------------------------------------------------
# Host-side weight prep: split in_proj into Q vs KV, transpose to (in, out) layout,
# fold 1/sqrt(Dh) into the Q projection, cast matmul weights to bf16.
# ----------------------------------------------------------------------------
def prepare_layer_params(p, num_heads):
    D = p["out_proj_w"].shape[0]
    assert D % num_heads == 0, "d_model must be divisible by num_heads"
    Dh = D // num_heads
    scale = 1.0 / math.sqrt(Dh)

    wq = (p["in_proj_w"][:D].T * scale).astype(jnp.bfloat16)        # (D, D)
    bq = (p["in_proj_b"][:D] * scale).reshape(1, D).astype(jnp.float32)
    wkv = p["in_proj_w"][D:].T.astype(jnp.bfloat16)                  # (D, 2D)
    bkv = p["in_proj_b"][D:].reshape(1, 2 * D).astype(jnp.float32)
    wo = p["out_proj_w"].T.astype(jnp.bfloat16)                      # (D, D)
    bo = p["out_proj_b"].reshape(1, D).astype(jnp.float32)
    w1 = p["w1"].T.astype(jnp.bfloat16)                              # (D, F)
    b1 = p["b1"].reshape(1, -1).astype(jnp.float32)
    w2 = p["w2"].T.astype(jnp.bfloat16)                              # (F, D)
    b2 = p["b2"].reshape(1, D).astype(jnp.float32)
    ln1g = p["ln1_g"].reshape(1, D).astype(jnp.float32)
    ln1b = p["ln1_b"].reshape(1, D).astype(jnp.float32)
    ln2g = p["ln2_g"].reshape(1, D).astype(jnp.float32)
    ln2b = p["ln2_b"].reshape(1, D).astype(jnp.float32)
    return (wq, bq, wkv, bkv, wo, bo, ln1g, ln1b, ln2g, ln2b, w1, b1, w2, b2)


def run_encoder_layer(x, layer_params, num_heads):
    """x: (B, S, D) float32. layer_params: dict of this layer's weights (PyTorch convention)."""
    B, S, D = x.shape
    assert D % num_heads == 0, "d_model must be divisible by num_heads"
    weights = prepare_layer_params(layer_params, num_heads)
    F = weights[10].shape[1]                                # w1 is (D, F)
    Dh = D // num_heads

    TQ = _pick_query_tile(S)
    QT = S // TQ

    in_specs = (
        [pl.BlockSpec((1, TQ, D), lambda b, q: (b, q, 0)),   # query tile of x
         pl.BlockSpec((1, S, D), lambda b, q: (b, 0, 0))]    # full sequence (revisited)
        + [pl.BlockSpec(w.shape, lambda b, q: (0, 0)) for w in weights]
    )
    out_specs = pl.BlockSpec((1, TQ, D), lambda b, q: (b, q, 0))

    return pl.pallas_call(
        functools.partial(encoder_layer_kernel, num_heads=num_heads),
        out_shape=jax.ShapeDtypeStruct((B, S, D), jnp.float32),
        grid=(B, QT),
        in_specs=in_specs,
        out_specs=out_specs,
        scratch_shapes=[
            pltpu.VMEM((num_heads, S, Dh), jnp.bfloat16),    # K cache (head-major)
            pltpu.VMEM((num_heads, S, Dh), jnp.bfloat16),    # V cache (head-major)
        ],
        compiler_params=pltpu.CompilerParams(
            dimension_semantics=("parallel", "arbitrary"),
            vmem_limit_bytes=_vmem_limit_bytes(S, TQ, D, F, num_heads),
        ),
    )(x, x, *weights)


# ----------------------------------------------------------------------------
# Positional encoding (standard sinusoidal) — host-side glue, elementwise add.
# ----------------------------------------------------------------------------
def sinusoidal_pe(seq_len, d_model):
    pos = jnp.arange(seq_len, dtype=jnp.float32)[:, None]
    div = jnp.exp(jnp.arange(0, d_model, 2, dtype=jnp.float32)
                  * (-math.log(10000.0) / d_model))
    pe = jnp.zeros((seq_len, d_model), dtype=jnp.float32)
    pe = pe.at[:, 0::2].set(jnp.sin(pos * div))
    pe = pe.at[:, 1::2].set(jnp.cos(pos * div))
    return pe


# ----------------------------------------------------------------------------
# Deterministic parameter construction (PyTorch weight conventions).
# ----------------------------------------------------------------------------
def init_params(key, d_model, num_layers, dim_feedforward=2048):
    layers = []
    std = 0.02
    for _ in range(num_layers):
        key, k1, k2, k3, k4, k5 = jax.random.split(key, 6)
        layers.append({
            "in_proj_w": std * jax.random.normal(k1, (3 * d_model, d_model), jnp.float32),
            "in_proj_b": 0.01 * jax.random.normal(k5, (3 * d_model,), jnp.float32),
            "out_proj_w": std * jax.random.normal(k2, (d_model, d_model), jnp.float32),
            "out_proj_b": jnp.zeros((d_model,), jnp.float32),
            "ln1_g": jnp.ones((d_model,), jnp.float32),
            "ln1_b": jnp.zeros((d_model,), jnp.float32),
            "ln2_g": jnp.ones((d_model,), jnp.float32),
            "ln2_b": jnp.zeros((d_model,), jnp.float32),
            "w1": std * jax.random.normal(k3, (dim_feedforward, d_model), jnp.float32),
            "b1": jnp.zeros((dim_feedforward,), jnp.float32),
            "w2": std * jax.random.normal(k4, (d_model, dim_feedforward), jnp.float32),
            "b2": jnp.zeros((d_model,), jnp.float32),
        })
    return layers


# ----------------------------------------------------------------------------
# Full CausalEncoder forward.
# ----------------------------------------------------------------------------
def causal_encoder_forward(src, layers, num_heads):
    B, S, D = src.shape
    x = src + sinusoidal_pe(S, D)[None]              # positional encoding
    for lp in layers:
        x = run_encoder_layer(x, lp, num_heads)      # hot path in the Pallas kernel
    return x


if __name__ == "__main__":
    # Small shapes consistent with the module: (batch, seq_len, d_model).
    # d_model=128 keeps the feature dim lane-dense (per perf review).
    batch, seq_len, d_model = 2, 16, 128
    num_heads, num_layers = 4, 2

    key = jax.random.PRNGKey(0)
    k_x, k_p = jax.random.split(key)
    src = jax.random.normal(k_x, (batch, seq_len, d_model), jnp.float32)
    layers = init_params(k_p, d_model, num_layers)

    out = causal_encoder_forward(src, layers, num_heads)
    out = jax.block_until_ready(out)
    assert out.shape == (batch, seq_len, d_model)
    assert bool(jnp.all(jnp.isfinite(out)))
    print("KERNEL_OK")
</pallas_src>

<mosaic_0001>
module attributes {stable_mosaic.version = 11 : i64} {
  func.func @encoder_layer_kernel(%arg0: i32, %arg1: i32, %arg2: memref<1x16x128xf32, #tpu.memory_space<vmem>>, %arg3: memref<1x16x128xf32, #tpu.memory_space<vmem>>, %arg4: memref<128x128xbf16, #tpu.memory_space<vmem>>, %arg5: memref<1x128xf32, #tpu.memory_space<vmem>>, %arg6: memref<128x256xbf16, #tpu.memory_space<vmem>>, %arg7: memref<1x256xf32, #tpu.memory_space<vmem>>, %arg8: memref<128x128xbf16, #tpu.memory_space<vmem>>, %arg9: memref<1x128xf32, #tpu.memory_space<vmem>>, %arg10: memref<1x128xf32, #tpu.memory_space<vmem>>, %arg11: memref<1x128xf32, #tpu.memory_space<vmem>>, %arg12: memref<1x128xf32, #tpu.memory_space<vmem>>, %arg13: memref<1x128xf32, #tpu.memory_space<vmem>>, %arg14: memref<128x2048xbf16, #tpu.memory_space<vmem>>, %arg15: memref<1x2048xf32, #tpu.memory_space<vmem>>, %arg16: memref<2048x128xbf16, #tpu.memory_space<vmem>>, %arg17: memref<1x128xf32, #tpu.memory_space<vmem>>, %arg18: memref<1x16x128xf32, #tpu.memory_space<vmem>>, %arg19: memref<4x16x32xbf16, #tpu.memory_space<vmem>>, %arg20: memref<4x16x32xbf16, #tpu.memory_space<vmem>>) attributes {dimension_semantics = [#tpu.dimension_semantics<parallel>, #tpu.dimension_semantics<arbitrary>], iteration_bounds = array<i64: 2, 1>, scalar_prefetch = 0 : i64, scratch_operands = 2 : i64, tpu.core_type = #tpu.core_type<tc>, window_params = [{transform_indices = @transform_0, window_bounds = array<i64: 1, 16, 128>}, {transform_indices = @transform_1, window_bounds = array<i64: 1, 16, 128>}, {pipeline_mode = #tpu.pipeline_mode<synchronous>, transform_indices = @transform_2, window_bounds = array<i64: 128, 128>}, {pipeline_mode = #tpu.pipeline_mode<synchronous>, transform_indices = @transform_3, window_bounds = array<i64: 1, 128>}, {pipeline_mode = #tpu.pipeline_mode<synchronous>, transform_indices = @transform_4, window_bounds = array<i64: 128, 256>}, {pipeline_mode = #tpu.pipeline_mode<synchronous>, transform_indices = @transform_5, window_bounds = array<i64: 1, 256>}, {pipeline_mode = #tpu.pipeline_mode<synchronous>, transform_indices = @transform_6, window_bounds = array<i64: 128, 128>}, {pipeline_mode = #tpu.pipeline_mode<synchronous>, transform_indices = @transform_7, window_bounds = array<i64: 1, 128>}, {pipeline_mode = #tpu.pipeline_mode<synchronous>, transform_indices = @transform_8, window_bounds = array<i64: 1, 128>}, {pipeline_mode = #tpu.pipeline_mode<synchronous>, transform_indices = @transform_9, window_bounds = array<i64: 1, 128>}, {pipeline_mode = #tpu.pipeline_mode<synchronous>, transform_indices = @transform_10, window_bounds = array<i64: 1, 128>}, {pipeline_mode = #tpu.pipeline_mode<synchronous>, transform_indices = @transform_11, window_bounds = array<i64: 1, 128>}, {pipeline_mode = #tpu.pipeline_mode<synchronous>, transform_indices = @transform_12, window_bounds = array<i64: 128, 2048>}, {pipeline_mode = #tpu.pipeline_mode<synchronous>, transform_indices = @transform_13, window_bounds = array<i64: 1, 2048>}, {pipeline_mode = #tpu.pipeline_mode<synchronous>, transform_indices = @transform_14, window_bounds = array<i64: 2048, 128>}, {pipeline_mode = #tpu.pipeline_mode<synchronous>, transform_indices = @transform_15, window_bounds = array<i64: 1, 128>}, {transform_indices = @transform_16, window_bounds = array<i64: 1, 16, 128>}]} {
    %c0_i32 = arith.constant 0 : i32
    %0 = arith.cmpi eq, %arg1, %c0_i32 : i32
    %1 = arith.extui %0 : i1 to i32
    %c0_i32_0 = arith.constant 0 : i32
    %2 = arith.cmpi ne, %1, %c0_i32_0 : i32
    scf.if %2 {
      %c0_55 = arith.constant 0 : index
      %c0_56 = arith.constant 0 : index
      %c0_57 = arith.constant 0 : index
      %145 = vector.load %arg3[%c0_55, %c0_56, %c0_57] : memref<1x16x128xf32, #tpu.memory_space<vmem>>, vector<1x16x128xf32>
      %146 = vector.shape_cast %145 : vector<1x16x128xf32> to vector<16x128xf32>
      %147 = arith.truncf %146 : vector<16x128xf32> to vector<16x128xbf16>
      %c0_58 = arith.constant 0 : index
      %c0_59 = arith.constant 0 : index
      %148 = vector.load %arg6[%c0_58, %c0_59] : memref<128x256xbf16, #tpu.memory_space<vmem>>, vector<128x256xbf16>
      %cst_60 = arith.constant dense<0.000000e+00> : vector<16x256xf32>
      %149 = tpu.matmul %147, %148, %cst_60 {dimension_numbers = #tpu.dot_dimension_numbers<[1], [0], [0], [1], [0, 0, 1, 1], [], []>} : vector<16x128xbf16>, vector<128x256xbf16>, vector<16x256xf32> -> vector<16x256xf32>
      %c0_61 = arith.constant 0 : index
      %c0_62 = arith.constant 0 : index
      %150 = vector.load %arg7[%c0_61, %c0_62] : memref<1x256xf32, #tpu.memory_space<vmem>>, vector<1x256xf32>
      %151 = vector.shape_cast %150 : vector<1x256xf32> to vector<256xf32>
      %152 = vector.shape_cast %151 : vector<256xf32> to vector<1x256xf32>
      %153 = vector.broadcast %152 : vector<1x256xf32> to vector<16x256xf32>
      %154 = arith.addf %149, %153 : vector<16x256xf32>
      %155 = arith.truncf %154 : vector<16x256xf32> to vector<16x256xbf16>
      %156 = vector.extract_strided_slice %155 {offsets = [0, 0], sizes = [16, 32], strides = [1, 1]} : vector<16x256xbf16> to vector<16x32xbf16>
      %157 = vector.extract_strided_slice %155 {offsets = [0, 32], sizes = [16, 32], strides = [1, 1]} : vector<16x256xbf16> to vector<16x32xbf16>
      %158 = vector.extract_strided_slice %155 {offsets = [0, 64], sizes = [16, 32], strides = [1, 1]} : vector<16x256xbf16> to vector<16x32xbf16>
      %159 = vector.extract_strided_slice %155 {offsets = [0, 96], sizes = [16, 32], strides = [1, 1]} : vector<16x256xbf16> to vector<16x32xbf16>
      %160 = vector.shape_cast %156 : vector<16x32xbf16> to vector<1x16x32xbf16>
      %161 = vector.shape_cast %157 : vector<16x32xbf16> to vector<1x16x32xbf16>
      %162 = vector.shape_cast %158 : vector<16x32xbf16> to vector<1x16x32xbf16>
      %163 = vector.shape_cast %159 : vector<16x32xbf16> to vector<1x16x32xbf16>
      %164 = tpu.concatenate %160, %161, %162, %163 in 0 : vector<1x16x32xbf16>, vector<1x16x32xbf16>, vector<1x16x32xbf16>, vector<1x16x32xbf16> -> vector<4x16x32xbf16>
      %c0_63 = arith.constant 0 : index
      %c0_64 = arith.constant 0 : index
      %c0_65 = arith.constant 0 : index
      %165 = vector.load %arg19[%c0_63, %c0_64, %c0_65] : memref<4x16x32xbf16, #tpu.memory_space<vmem>>, vector<4x16x32xbf16>
      tpu.vector_store %arg19[%c0_63, %c0_64, %c0_65], %164 {strides = array<i32>} : memref<4x16x32xbf16, #tpu.memory_space<vmem>>, vector<4x16x32xbf16>,
      %166 = vector.extract_strided_slice %155 {offsets = [0, 128], sizes = [16, 32], strides = [1, 1]} : vector<16x256xbf16> to vector<16x32xbf16>
      %167 = vector.extract_strided_slice %155 {offsets = [0, 160], sizes = [16, 32], strides = [1, 1]} : vector<16x256xbf16> to vector<16x32xbf16>
      %168 = vector.extract_strided_slice %155 {offsets = [0, 192], sizes = [16, 32], strides = [1, 1]} : vector<16x256xbf16> to vector<16x32xbf16>
      %169 = vector.extract_strided_slice %155 {offsets = [0, 224], sizes = [16, 32], strides = [1, 1]} : vector<16x256xbf16> to vector<16x32xbf16>
      %170 = vector.shape_cast %166 : vector<16x32xbf16> to vector<1x16x32xbf16>
      %171 = vector.shape_cast %167 : vector<16x32xbf16> to vector<1x16x32xbf16>
      %172 = vector.shape_cast %168 : vector<16x32xbf16> to vector<1x16x32xbf16>
      %173 = vector.shape_cast %169 : vector<16x32xbf16> to vector<1x16x32xbf16>
      %174 = tpu.concatenate %170, %171, %172, %173 in 0 : vector<1x16x32xbf16>, vector<1x16x32xbf16>, vector<1x16x32xbf16>, vector<1x16x32xbf16> -> vector<4x16x32xbf16>
      %c0_66 = arith.constant 0 : index
      %c0_67 = arith.constant 0 : index
      %c0_68 = arith.constant 0 : index
      %175 = vector.load %arg20[%c0_66, %c0_67, %c0_68] : memref<4x16x32xbf16, #tpu.memory_space<vmem>>, vector<4x16x32xbf16>
      tpu.vector_store %arg20[%c0_66, %c0_67, %c0_68], %174 {strides = array<i32>} : memref<4x16x32xbf16, #tpu.memory_space<vmem>>, vector<4x16x32xbf16>,
    } else {
    }
    %c0 = arith.constant 0 : index
    %c0_1 = arith.constant 0 : index
    %c0_2 = arith.constant 0 : index
    %3 = vector.load %arg2[%c0, %c0_1, %c0_2] : memref<1x16x128xf32, #tpu.memory_space<vmem>>, vector<1x16x128xf32>
    %4 = vector.shape_cast %3 : vector<1x16x128xf32> to vector<16x128xf32>
    %5 = arith.truncf %4 : vector<16x128xf32> to vector<16x128xbf16>
    %c0_3 = arith.constant 0 : index
    %c0_4 = arith.constant 0 : index
    %6 = vector.load %arg4[%c0_3, %c0_4] : memref<128x128xbf16, #tpu.memory_space<vmem>>, vector<128x128xbf16>
    %cst = arith.constant dense<0.000000e+00> : vector<16x128xf32>
    %7 = tpu.matmul %5, %6, %cst {dimension_numbers = #tpu.dot_dimension_numbers<[1], [0], [0], [1], [0, 0, 1, 1], [], []>} : vector<16x128xbf16>, vector<128x128xbf16>, vector<16x128xf32> -> vector<16x128xf32>
    %c0_5 = arith.constant 0 : index
    %c0_6 = arith.constant 0 : index
    %8 = vector.load %arg5[%c0_5, %c0_6] : memref<1x128xf32, #tpu.memory_space<vmem>>, vector<1x128xf32>
    %9 = vector.shape_cast %8 : vector<1x128xf32> to vector<128xf32>
    %10 = vector.shape_cast %9 : vector<128xf32> to vector<1x128xf32>
    %11 = vector.broadcast %10 : vector<1x128xf32> to vector<16x128xf32>
    %12 = arith.addf %7, %11 : vector<16x128xf32>
    %13 = arith.truncf %12 : vector<16x128xf32> to vector<16x128xbf16>
    %14 = vector.extract_strided_slice %13 {offsets = [0, 0], sizes = [16, 32], strides = [1, 1]} : vector<16x128xbf16> to vector<16x32xbf16>
    %15 = vector.extract_strided_slice %13 {offsets = [0, 32], sizes = [16, 32], strides = [1, 1]} : vector<16x128xbf16> to vector<16x32xbf16>
    %16 = vector.extract_strided_slice %13 {offsets = [0, 64], sizes = [16, 32], strides = [1, 1]} : vector<16x128xbf16> to vector<16x32xbf16>
    %17 = vector.extract_strided_slice %13 {offsets = [0, 96], sizes = [16, 32], strides = [1, 1]} : vector<16x128xbf16> to vector<16x32xbf16>
    %18 = vector.shape_cast %14 : vector<16x32xbf16> to vector<1x16x32xbf16>
    %19 = vector.shape_cast %15 : vector<16x32xbf16> to vector<1x16x32xbf16>
    %20 = vector.shape_cast %16 : vector<16x32xbf16> to vector<1x16x32xbf16>
    %21 = vector.shape_cast %17 : vector<16x32xbf16> to vector<1x16x32xbf16>
    %22 = tpu.concatenate %18, %19, %20, %21 in 0 : vector<1x16x32xbf16>, vector<1x16x32xbf16>, vector<1x16x32xbf16>, vector<1x16x32xbf16> -> vector<4x16x32xbf16>
    %c0_7 = arith.constant 0 : index
    %c0_8 = arith.constant 0 : index
    %c0_9 = arith.constant 0 : index
    %23 = vector.load %arg19[%c0_7, %c0_8, %c0_9] : memref<4x16x32xbf16, #tpu.memory_space<vmem>>, vector<4x16x32xbf16>
    %c0_10 = arith.constant 0 : index
    %c0_11 = arith.constant 0 : index
    %c0_12 = arith.constant 0 : index
    %24 = vector.load %arg20[%c0_10, %c0_11, %c0_12] : memref<4x16x32xbf16, #tpu.memory_space<vmem>>, vector<4x16x32xbf16>
    "tpu.trace_start"() <{level = 10 : i32, message = "hqd,hkd->hqk"}> : () -> ()
    %cst_13 = arith.constant dense<0.000000e+00> : vector<4x16x16xf32>
    %25 = tpu.matmul %22, %23, %cst_13 {dimension_numbers = #tpu.dot_dimension_numbers<[2], [2], [1], [1], [0, 0, 0, 1, 1, 1], [0], [0]>} : vector<4x16x32xbf16>, vector<4x16x32xbf16>, vector<4x16x16xf32> -> vector<4x16x16xf32>
    "tpu.trace_stop"() : () -> ()
    %c16_i32 = arith.constant 16 : i32
    %26 = arith.muli %arg1, %c16_i32 : i32
    %27 = tpu.iota {dimensions = array<i32: 0>} : vector<16x16xi32>
    %28 = vector.broadcast %26 : i32 to vector<16x16xi32>
    %29 = arith.addi %27, %28 : vector<16x16xi32>
    %30 = tpu.iota {dimensions = array<i32: 1>} : vector<16x16xi32>
    %31 = arith.cmpi sle, %30, %29 : vector<16x16xi32>
    %32 = vector.shape_cast %31 : vector<16x16xi1> to vector<1x16x16xi1>
    %cst_14 = arith.constant -1.000000e+30 : f32
    %33 = vector.shape_cast %32 : vector<1x16x16xi1> to vector<1x16x16xi1>
    %34 = vector.broadcast %33 : vector<1x16x16xi1> to vector<4x16x16xi1>
    %35 = vector.broadcast %cst_14 : f32 to vector<4x16x16xf32>
    %36 = arith.select %34, %25, %35 : vector<4x16x16xi1>, vector<4x16x16xf32>
    %cst_15 = arith.constant dense<0xFF800000> : vector<4x16xf32>
    %37 = vector.multi_reduction <maximumf>, %36, %cst_15 [2] : vector<4x16x16xf32> to vector<4x16xf32>
    %38 = vector.shape_cast %37 : vector<4x16xf32> to vector<4x16x1xf32>
    %39 = vector.broadcast %38 : vector<4x16x1xf32> to vector<4x16x16xf32>
    %40 = arith.subf %36, %39 : vector<4x16x16xf32>
    %41 = math.exp %40 : vector<4x16x16xf32>
    %cst_16 = arith.constant dense<0.000000e+00> : vector<4x16xf32>
    %42 = vector.multi_reduction <add>, %41, %cst_16 [2] : vector<4x16x16xf32> to vector<4x16xf32>
    %43 = vector.shape_cast %42 : vector<4x16xf32> to vector<4x16x1xf32>
    %44 = tpu.reciprocal %43 {approx = true} : vector<4x16x1xf32> -> vector<4x16x1xf32>
    %45 = vector.broadcast %44 : vector<4x16x1xf32> to vector<4x16x16xf32>
    %46 = arith.mulf %41, %45 : vector<4x16x16xf32>
    %47 = arith.truncf %46 : vector<4x16x16xf32> to vector<4x16x16xbf16>
    "tpu.trace_start"() <{level = 10 : i32, message = "hqk,hkd->hqd"}> : () -> ()
    %cst_17 = arith.constant dense<0.000000e+00> : vector<4x16x32xf32>
    %48 = tpu.matmul %47, %24, %cst_17 {dimension_numbers = #tpu.dot_dimension_numbers<[2], [1], [1], [2], [0, 0, 0, 1, 1, 2], [0], [0]>} : vector<4x16x16xbf16>, vector<4x16x32xbf16>, vector<4x16x32xf32> -> vector<4x16x32xf32>
    "tpu.trace_stop"() : () -> ()
    %49 = vector.extract_strided_slice %48 {offsets = [0, 0, 0], sizes = [1, 16, 32], strides = [1, 1, 1]} : vector<4x16x32xf32> to vector<1x16x32xf32>
    %50 = vector.shape_cast %49 : vector<1x16x32xf32> to vector<16x32xf32>
    %51 = vector.extract_strided_slice %48 {offsets = [1, 0, 0], sizes = [1, 16, 32], strides = [1, 1, 1]} : vector<4x16x32xf32> to vector<1x16x32xf32>
    %52 = vector.shape_cast %51 : vector<1x16x32xf32> to vector<16x32xf32>
    %53 = vector.extract_strided_slice %48 {offsets = [2, 0, 0], sizes = [1, 16, 32], strides = [1, 1, 1]} : vector<4x16x32xf32> to vector<1x16x32xf32>
    %54 = vector.shape_cast %53 : vector<1x16x32xf32> to vector<16x32xf32>
    %55 = vector.extract_strided_slice %48 {offsets = [3, 0, 0], sizes = [1, 16, 32], strides = [1, 1, 1]} : vector<4x16x32xf32> to vector<1x16x32xf32>
    %56 = vector.shape_cast %55 : vector<1x16x32xf32> to vector<16x32xf32>
    %57 = tpu.concatenate %50, %52, %54, %56 in 1 : vector<16x32xf32>, vector<16x32xf32>, vector<16x32xf32>, vector<16x32xf32> -> vector<16x128xf32>
    %58 = arith.truncf %57 : vector<16x128xf32> to vector<16x128xbf16>
    %c0_18 = arith.constant 0 : index
    %c0_19 = arith.constant 0 : index
    %59 = vector.load %arg8[%c0_18, %c0_19] : memref<128x128xbf16, #tpu.memory_space<vmem>>, vector<128x128xbf16>
    %cst_20 = arith.constant dense<0.000000e+00> : vector<16x128xf32>
    %60 = tpu.matmul %58, %59, %cst_20 {dimension_numbers = #tpu.dot_dimension_numbers<[1], [0], [0], [1], [0, 0, 1, 1], [], []>} : vector<16x128xbf16>, vector<128x128xbf16>, vector<16x128xf32> -> vector<16x128xf32>
    %c0_21 = arith.constant 0 : index
    %c0_22 = arith.constant 0 : index
    %61 = vector.load %arg9[%c0_21, %c0_22] : memref<1x128xf32, #tpu.memory_space<vmem>>, vector<1x128xf32>
    %62 = vector.shape_cast %61 : vector<1x128xf32> to vector<128xf32>
    %63 = vector.shape_cast %62 : vector<128xf32> to vector<1x128xf32>
    %64 = vector.broadcast %63 : vector<1x128xf32> to vector<16x128xf32>
    %65 = arith.addf %60, %64 : vector<16x128xf32>
    %66 = arith.addf %4, %65 : vector<16x128xf32>
    %c0_23 = arith.constant 0 : index
    %c0_24 = arith.constant 0 : index
    %67 = vector.load %arg10[%c0_23, %c0_24] : memref<1x128xf32, #tpu.memory_space<vmem>>, vector<1x128xf32>
    %68 = vector.shape_cast %67 : vector<1x128xf32> to vector<128xf32>
    %c0_25 = arith.constant 0 : index
    %c0_26 = arith.constant 0 : index
    %69 = vector.load %arg11[%c0_25, %c0_26] : memref<1x128xf32, #tpu.memory_space<vmem>>, vector<1x128xf32>
    %70 = vector.shape_cast %69 : vector<1x128xf32> to vector<128xf32>
    %cst_27 = arith.constant dense<0.000000e+00> : vector<16xf32>
    %71 = vector.multi_reduction <add>, %66, %cst_27 [1] : vector<16x128xf32> to vector<16xf32>
    %72 = vector.shape_cast %71 : vector<16xf32> to vector<16x1xf32>
    %cst_28 = arith.constant 1.280000e+02 : f32
    %73 = vector.broadcast %cst_28 : f32 to vector<16x1xf32>
    %74 = arith.divf %72, %73 : vector<16x1xf32>
    %75 = arith.mulf %66, %66 : vector<16x128xf32>
    %cst_29 = arith.constant dense<0.000000e+00> : vector<16xf32>
    %76 = vector.multi_reduction <add>, %75, %cst_29 [1] : vector<16x128xf32> to vector<16xf32>
    %77 = vector.shape_cast %76 : vector<16xf32> to vector<16x1xf32>
    %cst_30 = arith.constant 1.280000e+02 : f32
    %78 = vector.broadcast %cst_30 : f32 to vector<16x1xf32>
    %79 = arith.divf %77, %78 : vector<16x1xf32>
    %80 = arith.mulf %74, %74 : vector<16x1xf32>
    %81 = arith.subf %79, %80 : vector<16x1xf32>
    %82 = vector.broadcast %74 : vector<16x1xf32> to vector<16x128xf32>
    %83 = arith.subf %66, %82 : vector<16x128xf32>
    %cst_31 = arith.constant 9.99999974E-6 : f32
    %84 = vector.broadcast %cst_31 : f32 to vector<16x1xf32>
    %85 = arith.addf %81, %84 : vector<16x1xf32>
    %86 = math.rsqrt %85 : vector<16x1xf32>
    %87 = vector.broadcast %86 : vector<16x1xf32> to vector<16x128xf32>
    %88 = arith.mulf %83, %87 : vector<16x128xf32>
    %89 = vector.shape_cast %68 : vector<128xf32> to vector<1x128xf32>
    %90 = vector.broadcast %89 : vector<1x128xf32> to vector<16x128xf32>
    %91 = arith.mulf %88, %90 : vector<16x128xf32>
    %92 = vector.shape_cast %70 : vector<128xf32> to vector<1x128xf32>
    %93 = vector.broadcast %92 : vector<1x128xf32> to vector<16x128xf32>
    %94 = arith.addf %91, %93 : vector<16x128xf32>
    %95 = arith.truncf %94 : vector<16x128xf32> to vector<16x128xbf16>
    %c0_32 = arith.constant 0 : index
    %c0_33 = arith.constant 0 : index
    %96 = vector.load %arg14[%c0_32, %c0_33] : memref<128x2048xbf16, #tpu.memory_space<vmem>>, vector<128x2048xbf16>
    %cst_34 = arith.constant dense<0.000000e+00> : vector<16x2048xf32>
    %97 = tpu.matmul %95, %96, %cst_34 {dimension_numbers = #tpu.dot_dimension_numbers<[1], [0], [0], [1], [0, 0, 1, 1], [], []>} : vector<16x128xbf16>, vector<128x2048xbf16>, vector<16x2048xf32> -> vector<16x2048xf32>
    %c0_35 = arith.constant 0 : index
    %c0_36 = arith.constant 0 : index
    %98 = vector.load %arg15[%c0_35, %c0_36] : memref<1x2048xf32, #tpu.memory_space<vmem>>, vector<1x2048xf32>
    %99 = vector.shape_cast %98 : vector<1x2048xf32> to vector<2048xf32>
    %100 = vector.shape_cast %99 : vector<2048xf32> to vector<1x2048xf32>
    %101 = vector.broadcast %100 : vector<1x2048xf32> to vector<16x2048xf32>
    %102 = arith.addf %97, %101 : vector<16x2048xf32>
    %cst_37 = arith.constant 0.000000e+00 : f32
    %103 = vector.broadcast %cst_37 : f32 to vector<16x2048xf32>
    %104 = arith.maximumf %102, %103 : vector<16x2048xf32>
    %105 = arith.truncf %104 : vector<16x2048xf32> to vector<16x2048xbf16>
    %c0_38 = arith.constant 0 : index
    %c0_39 = arith.constant 0 : index
    %106 = vector.load %arg16[%c0_38, %c0_39] : memref<2048x128xbf16, #tpu.memory_space<vmem>>, vector<2048x128xbf16>
    %cst_40 = arith.constant dense<0.000000e+00> : vector<16x128xf32>
    %107 = tpu.matmul %105, %106, %cst_40 {dimension_numbers = #tpu.dot_dimension_numbers<[1], [0], [0], [1], [0, 0, 1, 1], [], []>} : vector<16x2048xbf16>, vector<2048x128xbf16>, vector<16x128xf32> -> vector<16x128xf32>
    %c0_41 = arith.constant 0 : index
    %c0_42 = arith.constant 0 : index
    %108 = vector.load %arg17[%c0_41, %c0_42] : memref<1x128xf32, #tpu.memory_space<vmem>>, vector<1x128xf32>
    %109 = vector.shape_cast %108 : vector<1x128xf32> to vector<128xf32>
    %110 = vector.shape_cast %109 : vector<128xf32> to vector<1x128xf32>
    %111 = vector.broadcast %110 : vector<1x128xf32> to vector<16x128xf32>
    %112 = arith.addf %107, %111 : vector<16x128xf32>
    %113 = arith.addf %94, %112 : vector<16x128xf32>
    %c0_43 = arith.constant 0 : index
    %c0_44 = arith.constant 0 : index
    %114 = vector.load %arg12[%c0_43, %c0_44] : memref<1x128xf32, #tpu.memory_space<vmem>>, vector<1x128xf32>
    %115 = vector.shape_cast %114 : vector<1x128xf32> to vector<128xf32>
    %c0_45 = arith.constant 0 : index
    %c0_46 = arith.constant 0 : index
    %116 = vector.load %arg13[%c0_45, %c0_46] : memref<1x128xf32, #tpu.memory_space<vmem>>, vector<1x128xf32>
    %117 = vector.shape_cast %116 : vector<1x128xf32> to vector<128xf32>
    %cst_47 = arith.constant dense<0.000000e+00> : vector<16xf32>
    %118 = vector.multi_reduction <add>, %113, %cst_47 [1] : vector<16x128xf32> to vector<16xf32>
    %119 = vector.shape_cast %118 : vector<16xf32> to vector<16x1xf32>
    %cst_48 = arith.constant 1.280000e+02 : f32
    %120 = vector.broadcast %cst_48 : f32 to vector<16x1xf32>
    %121 = arith.divf %119, %120 : vector<16x1xf32>
    %122 = arith.mulf %113, %113 : vector<16x128xf32>
    %cst_49 = arith.constant dense<0.000000e+00> : vector<16xf32>
    %123 = vector.multi_reduction <add>, %122, %cst_49 [1] : vector<16x128xf32> to vector<16xf32>
    %124 = vector.shape_cast %123 : vector<16xf32> to vector<16x1xf32>
    %cst_50 = arith.constant 1.280000e+02 : f32
    %125 = vector.broadcast %cst_50 : f32 to vector<16x1xf32>
    %126 = arith.divf %124, %125 : vector<16x1xf32>
    %127 = arith.mulf %121, %121 : vector<16x1xf32>
    %128 = arith.subf %126, %127 : vector<16x1xf32>
    %129 = vector.broadcast %121 : vector<16x1xf32> to vector<16x128xf32>
    %130 = arith.subf %113, %129 : vector<16x128xf32>
    %cst_51 = arith.constant 9.99999974E-6 : f32
    %131 = vector.broadcast %cst_51 : f32 to vector<16x1xf32>
    %132 = arith.addf %128, %131 : vector<16x1xf32>
    %133 = math.rsqrt %132 : vector<16x1xf32>
    %134 = vector.broadcast %133 : vector<16x1xf32> to vector<16x128xf32>
    %135 = arith.mulf %130, %134 : vector<16x128xf32>
    %136 = vector.shape_cast %115 : vector<128xf32> to vector<1x128xf32>
    %137 = vector.broadcast %136 : vector<1x128xf32> to vector<16x128xf32>
    %138 = arith.mulf %135, %137 : vector<16x128xf32>
    %139 = vector.shape_cast %117 : vector<128xf32> to vector<1x128xf32>
    %140 = vector.broadcast %139 : vector<1x128xf32> to vector<16x128xf32>
    %141 = arith.addf %138, %140 : vector<16x128xf32>
    %c0_52 = arith.constant 0 : index
    %c0_53 = arith.constant 0 : index
    %c0_54 = arith.constant 0 : index
    %142 = vector.load %arg18[%c0_52, %c0_53, %c0_54] : memref<1x16x128xf32, #tpu.memory_space<vmem>>, vector<1x16x128xf32>
    %143 = vector.shape_cast %142 : vector<1x16x128xf32> to vector<16x128xf32>
    %144 = vector.shape_cast %141 : vector<16x128xf32> to vector<1x16x128xf32>
    tpu.vector_store %arg18[%c0_52, %c0_53, %c0_54], %144 {strides = array<i32>} : memref<1x16x128xf32, #tpu.memory_space<vmem>>, vector<1x16x128xf32>,
    return
  }
  func.func @transform_0(%arg0: i32, %arg1: i32) -> (i32, i32, i32) {
    %c0_i32 = arith.constant 0 : i32
    %c0_i32_0 = arith.constant 0 : i32
    return %arg0, %arg1, %c0_i32 : i32, i32, i32
  }
  func.func @transform_1(%arg0: i32, %arg1: i32) -> (i32, i32, i32) {
    %c0_i32 = arith.constant 0 : i32
    %c0_i32_0 = arith.constant 0 : i32
    %c0_i32_1 = arith.constant 0 : i32
    return %arg0, %c0_i32, %c0_i32_0 : i32, i32, i32
  }
  func.func @transform_2(%arg0: i32, %arg1: i32) -> (i32, i32) {
    %c0_i32 = arith.constant 0 : i32
    %c0_i32_0 = arith.constant 0 : i32
    %c0_i32_1 = arith.constant 0 : i32
    return %c0_i32, %c0_i32_0 : i32, i32
  }
  func.func @transform_3(%arg0: i32, %arg1: i32) -> (i32, i32) {
    %c0_i32 = arith.constant 0 : i32
    %c0_i32_0 = arith.constant 0 : i32
    %c0_i32_1 = arith.constant 0 : i32
    return %c0_i32, %c0_i32_0 : i32, i32
  }
  func.func @transform_4(%arg0: i32, %arg1: i32) -> (i32, i32) {
    %c0_i32 = arith.constant 0 : i32
    %c0_i32_0 = arith.constant 0 : i32
    %c0_i32_1 = arith.constant 0 : i32
    return %c0_i32, %c0_i32_0 : i32, i32
  }
  func.func @transform_5(%arg0: i32, %arg1: i32) -> (i32, i32) {
    %c0_i32 = arith.constant 0 : i32
    %c0_i32_0 = arith.constant 0 : i32
    %c0_i32_1 = arith.constant 0 : i32
    return %c0_i32, %c0_i32_0 : i32, i32
  }
  func.func @transform_6(%arg0: i32, %arg1: i32) -> (i32, i32) {
    %c0_i32 = arith.constant 0 : i32
    %c0_i32_0 = arith.constant 0 : i32
    %c0_i32_1 = arith.constant 0 : i32
    return %c0_i32, %c0_i32_0 : i32, i32
  }
  func.func @transform_7(%arg0: i32, %arg1: i32) -> (i32, i32) {
    %c0_i32 = arith.constant 0 : i32
    %c0_i32_0 = arith.constant 0 : i32
    %c0_i32_1 = arith.constant 0 : i32
    return %c0_i32, %c0_i32_0 : i32, i32
  }
  func.func @transform_8(%arg0: i32, %arg1: i32) -> (i32, i32) {
    %c0_i32 = arith.constant 0 : i32
    %c0_i32_0 = arith.constant 0 : i32
    %c0_i32_1 = arith.constant 0 : i32
    return %c0_i32, %c0_i32_0 : i32, i32
  }
  func.func @transform_9(%arg0: i32, %arg1: i32) -> (i32, i32) {
    %c0_i32 = arith.constant 0 : i32
    %c0_i32_0 = arith.constant 0 : i32
    %c0_i32_1 = arith.constant 0 : i32
    return %c0_i32, %c0_i32_0 : i32, i32
  }
  func.func @transform_10(%arg0: i32, %arg1: i32) -> (i32, i32) {
    %c0_i32 = arith.constant 0 : i32
    %c0_i32_0 = arith.constant 0 : i32
    %c0_i32_1 = arith.constant 0 : i32
    return %c0_i32, %c0_i32_0 : i32, i32
  }
  func.func @transform_11(%arg0: i32, %arg1: i32) -> (i32, i32) {
    %c0_i32 = arith.constant 0 : i32
    %c0_i32_0 = arith.constant 0 : i32
    %c0_i32_1 = arith.constant 0 : i32
    return %c0_i32, %c0_i32_0 : i32, i32
  }
  func.func @transform_12(%arg0: i32, %arg1: i32) -> (i32, i32) {
    %c0_i32 = arith.constant 0 : i32
    %c0_i32_0 = arith.constant 0 : i32
    %c0_i32_1 = arith.constant 0 : i32
    return %c0_i32, %c0_i32_0 : i32, i32
  }
  func.func @transform_13(%arg0: i32, %arg1: i32) -> (i32, i32) {
    %c0_i32 = arith.constant 0 : i32
    %c0_i32_0 = arith.constant 0 : i32
    %c0_i32_1 = arith.constant 0 : i32
    return %c0_i32, %c0_i32_0 : i32, i32
  }
  func.func @transform_14(%arg0: i32, %arg1: i32) -> (i32, i32) {
    %c0_i32 = arith.constant 0 : i32
    %c0_i32_0 = arith.constant 0 : i32
    %c0_i32_1 = arith.constant 0 : i32
    return %c0_i32, %c0_i32_0 : i32, i32
  }
  func.func @transform_15(%arg0: i32, %arg1: i32) -> (i32, i32) {
    %c0_i32 = arith.constant 0 : i32
    %c0_i32_0 = arith.constant 0 : i32
    %c0_i32_1 = arith.constant 0 : i32
    return %c0_i32, %c0_i32_0 : i32, i32
  }
  func.func @transform_16(%arg0: i32, %arg1: i32) -> (i32, i32, i32) {
    %c0_i32 = arith.constant 0 : i32
    %c0_i32_0 = arith.constant 0 : i32
    return %arg0, %arg1, %c0_i32 : i32, i32, i32
  }
}

</mosaic_0001>

<llo_original>
// kernel: tpu_custom_call.1
$region0: #{tpu_custom_call.1}
  #allocation0 [shape = 'u32[]', space=smem, size = 0x4, offset = 0x4, fixed_abs, tag = 'smem constant byte address 0x4 - core index']
  #allocation1 [shape = 'u32[144,128]{1,0:T(1,128)}', space=vmem, size = 0x12000, scoped, tag = 'internal scratch']
  #allocation2 [shape = 'bf16[4,16,32]{2,1,0:T(8,128)(2,1)}', space=vmem, size = 0x4000, scoped, tag = 'scratch operand']
  #allocation3 [shape = 'bf16[4,16,32]{2,1,0:T(8,128)(2,1)}', space=vmem, size = 0x4000, scoped, tag = 'scratch operand']
  %s0 = inlined_call_operand.hbm [shape: f32[2,16,128], index: 0, kind: input, shape index: {}]
  %s1 = inlined_call_operand.hbm [shape: f32[2,16,128], index: 1, kind: input, shape index: {}]
  %s2 = inlined_call_operand.hbm [shape: bf16[128,128], index: 2, kind: input, shape index: {}]
  %s3 = inlined_call_operand.vmem [shape: f32[1,128], index: 3, kind: input, shape index: {}]
  %s4 = inlined_call_operand.hbm [shape: bf16[128,256], index: 4, kind: input, shape index: {}]
  %s5 = inlined_call_operand.vmem [shape: f32[1,256], index: 5, kind: input, shape index: {}]
  %s6 = inlined_call_operand.hbm [shape: bf16[128,128], index: 6, kind: input, shape index: {}]
  %s7 = inlined_call_operand.vmem [shape: f32[1,128], index: 7, kind: input, shape index: {}]
  %s8 = inlined_call_operand.vmem [shape: f32[1,128], index: 8, kind: input, shape index: {}]
  %s9 = inlined_call_operand.vmem [shape: f32[1,128], index: 9, kind: input, shape index: {}]
  %s10 = inlined_call_operand.vmem [shape: f32[1,128], index: 10, kind: input, shape index: {}]
  %s11 = inlined_call_operand.hbm [shape: f32[1,128], index: 11, kind: input, shape index: {}]
  %s12 = inlined_call_operand.hbm [shape: bf16[128,2048], index: 12, kind: input, shape index: {}]
  %s13 = inlined_call_operand.vmem [shape: f32[1,2048], index: 13, kind: input, shape index: {}]
  %s14 = inlined_call_operand.hbm [shape: bf16[2048,128], index: 14, kind: input, shape index: {}]
  %s15 = inlined_call_operand.vmem [shape: f32[1,128], index: 15, kind: input, shape index: {}]
  %s16 = inlined_call_operand.hbm [shape: f32[2,16,128], index: 16, kind: output, shape index: {}]
  %s17 = sld [smem:[#allocation0]]
  $region133: #{tpu_custom_call.1} parent=0
    _
  %s19 = ssub.s32 1, %s17
  %s20 = scalar_select 0, %s19, %s17
  $region1: #{tpu_custom_call.1} parent=0
    #allocation4 [shape = 'u8[16384]{0}', space=vmem, size = 0x4000, scoped, tag = 'input window, operand 0']
    #allocation5 [shape = 's32[2]{0}', space=sflag, size = 0x8, scoped, tag = 'scoped memory for tpu_custom_call.1']
    #allocation6 [shape = 's32[2]{0}', space=sflag, size = 0x8, scoped, tag = 'scoped memory for tpu_custom_call.1']
    #allocation7 [shape = 'u8[16384]{0}', space=vmem, size = 0x4000, scoped, tag = 'input window, operand 1']
    #allocation8 [shape = 's32[2]{0}', space=sflag, size = 0x8, scoped, tag = 'scoped memory for tpu_custom_call.1']
    #allocation9 [shape = 'u8[32768]{0}', space=vmem, size = 0x8000, scoped, tag = 'input window, operand 2, single buffered']
    #allocation10 [shape = 'u8[65536]{0}', space=vmem, size = 0x10000, scoped, tag = 'input window, operand 4, single buffered']
    #allocation11 [shape = 's32[1]{0}', space=sflag, size = 0x4, scoped, tag = 'scoped memory for tpu_custom_call.1']
    #allocation12 [shape = 'u8[32768]{0}', space=vmem, size = 0x8000, scoped, tag = 'input window, operand 6, single buffered']
    #allocation13 [shape = 'u8[512]{0}', space=vmem, size = 0x400, scoped, tag = 'input window, operand 11, single buffered']
    #allocation14 [shape = 's32[1]{0}', space=sflag, size = 0x4, scoped, tag = 'scoped memory for tpu_custom_call.1']
    #allocation15 [shape = 'u8[524288]{0}', space=vmem, size = 0x80000, scoped, tag = 'input window, operand 12, single buffered']
    #allocation16 [shape = 'u8[524288]{0}', space=vmem, size = 0x80000, scoped, tag = 'input window, operand 14, single buffered']
    #allocation17 [shape = 's32[1]{0}', space=sflag, size = 0x4, scoped, tag = 'scoped memory for tpu_custom_call.1']
    #allocation18 [shape = 'u8[16384]{0}', space=vmem, size = 0x4000, scoped, tag = 'output window, operand 0']
    %21 = vsyncpa [#allocation5], 0
    %s22 = scalar_lea.sflag [#allocation5], 1
    %23 = vsyncpa %s22, 0
    %24 = vsyncpa [#allocation8], 0
    %s25 = scalar_lea.sflag [#allocation8], 1
    %26 = vsyncpa %s25, 0
    %27 = vsyncpa [#allocation11], 0
    %28 = vsyncpa [#allocation14], 0
    %29 = vsyncpa [#allocation17], 0
    %30 = vsyncpa [#allocation6], 0
    %s31 = scalar_lea.sflag [#allocation6], 1
    %32 = vsyncpa %s31, 0
    loop: start=0, step=1, limit=4
    $region2: #{tpu_custom_call.1} parent=1 // loop_pre_header
      _
    $region3: #{tpu_custom_call.1} parent=1 // loop_header
      %s34 = sphi 0, %s38
      %p35 = scmp.ge.s32.totalorder %s34, 4
      %s41 = sphi 0, %s53
      %s42 = sphi 0, %s49
      %s43 = sphi 0, %s41
      %s44 = sphi 0, %s42
      %s45 = sphi 0, %s43
      %s46 = sphi 0, %s44
      %s58 = sphi 0, %s60
      %s61 = sphi 0, %s58
      %s62 = sphi 0, %s61
      %s78 = sphi 0, %s62
      %s84 = sphi 0, %s86
      %s87 = sphi 0, %s84
      %s88 = sphi 0, %s87
      %s104 = sphi 0, %s88
      %s108 = sphi 0, %s108
      %s110 = sphi 0, %s108
      %s111 = sphi 0, %s110
      %s125 = sphi 0, %s111
      %s129 = sphi 0, %s129
      %s131 = sphi 0, %s129
      %s132 = sphi 0, %s131
      %s146 = sphi 0, %s132
      %s150 = sphi 0, %s150
      %s152 = sphi 0, %s150
      %s153 = sphi 0, %s152
      %s167 = sphi 0, %s153
      %s171 = sphi 0, %s171
      %s173 = sphi 0, %s171
      %s174 = sphi 0, %s173
      %s188 = sphi 0, %s174
      %s192 = sphi 0, %s192
      %s194 = sphi 0, %s192
      %s195 = sphi 0, %s194
      %s209 = sphi 0, %s195
      %s213 = sphi 0, %s213
      %s215 = sphi 0, %s213
      %s216 = sphi 0, %s215
      %s230 = sphi 0, %s216
      %s234 = sphi 0, %s234
      %s236 = sphi 0, %s234
      %s237 = sphi 0, %s236
      %s251 = sphi 0, %s237
      %s255 = sphi 0, %s255
      %s257 = sphi 0, %s255
      %s258 = sphi 0, %s257
      %s272 = sphi 0, %s258
      %s276 = sphi 0, %s276
      %s278 = sphi 0, %s276
      %s279 = sphi 0, %s278
      %s293 = sphi 0, %s279
      %s297 = sphi 0, %s297
      %s299 = sphi 0, %s297
      %s300 = sphi 0, %s299
      %s314 = sphi 0, %s300
      %s318 = sphi 0, %s318
      %s320 = sphi 0, %s318
      %s321 = sphi 0, %s320
      %s335 = sphi 0, %s321
      %s339 = sphi 0, %s339
      %s341 = sphi 0, %s339
      %s342 = sphi 0, %s341
      %s356 = sphi 0, %s342
      %s360 = sphi 0, %s360
      %s362 = sphi 0, %s360
      %s363 = sphi 0, %s362
      %s377 = sphi 0, %s363
      %s381 = sphi 0, %s381
      %s383 = sphi 0, %s381
      %s384 = sphi 0, %s383
      %s398 = sphi 0, %s384
      %s406 = sphi 0, %s408
      %s409 = sphi 0, %s406
      %s410 = sphi 0, %s409
      %s426 = sphi 0, %s410
    $region4: #{tpu_custom_call.1} parent=1 // loop_header_branch
      %37 = sbr.rel (%p35) target = $region8
    $region5: #{tpu_custom_call.1} parent=1 // loop_body
      %s39 = ssub.s32 %s34, 1
      %s40 = ssub.s32 %s34, 2
      %s47 = sadd.s32 1, %s42
      %p48 = scmp.ge.s32.totalorder %s47, 1
      %s49 = scalar_select %p48, 0, %s47
      %s50 = sadd.s32 1, %s41
      %s51 = scalar_select %p48, %s50, %s41
      %p52 = scmp.ge.s32.totalorder %s51, 2
      %s53 = scalar_select %p52, 0, %s51
      %s54 = ssub.s32 %s41, %s53
      %s55 = ssub.s32 %s42, %s49
      %s56 = sor.u32 %s54, %s55
      %p57 = scmp.eq.s32.totalorder %s56, 0
      %s59 = sadd.s32 %s58, 1
      %s60 = scalar_select %p57, %s58, %s59
      %p63 = pneg %p57
      %p64 = scmp.eq.s32.totalorder %s34, 1
      %p65 = por %p63, %p64
      %p66 = scmp.ne.s32.totalorder %s58, %s61
      %p67 = scmp.eq.s32.totalorder %s34, 0
      %p68 = por %p66, %p67
      %p69 = scmp.ne.s32.totalorder %s58, %s61
      %p70 = scmp.eq.s32.totalorder %s39, 1
      %p71 = por %p69, %p70
      %p72 = scmp.ne.s32.totalorder %s61, %s62
      %p73 = scmp.eq.s32.totalorder %s39, 0
      %p74 = por %p72, %p73
      %p75 = scmp.ne.s32.totalorder %s61, %s62
      %p76 = scmp.eq.s32.totalorder %s40, 1
      %p77 = por %p75, %p76
      %p79 = scmp.ne.s32.totalorder %s62, %s78
      %p80 = scmp.eq.s32.totalorder %s40, 0
      %p81 = por %p79, %p80
      %s82 = ssub.s32 %s41, %s53
      %p83 = scmp.eq.s32.totalorder %s82, 0
      %s85 = sadd.s32 %s84, 1
      %s86 = scalar_select %p83, %s84, %s85
      %p89 = pneg %p83
      %p90 = scmp.eq.s32.totalorder %s34, 1
      %p91 = por %p89, %p90
      %p92 = scmp.ne.s32.totalorder %s84, %s87
      %p93 = scmp.eq.s32.totalorder %s34, 0
      %p94 = por %p92, %p93
      %p95 = scmp.ne.s32.totalorder %s84, %s87
      %p96 = scmp.eq.s32.totalorder %s39, 1
      %p97 = por %p95, %p96
      %p98 = scmp.ne.s32.totalorder %s87, %s88
      %p99 = scmp.eq.s32.totalorder %s39, 0
      %p100 = por %p98, %p99
      %p101 = scmp.ne.s32.totalorder %s87, %s88
      %p102 = scmp.eq.s32.totalorder %s40, 1
      %p103 = por %p101, %p102
      %p105 = scmp.ne.s32.totalorder %s88, %s104
      %p106 = scmp.eq.s32.totalorder %s40, 0
      %p107 = por %p105, %p106
      %s109 = sadd.s32 %s108, 1
      %p112 = scmp.eq.s32.totalorder %s34, 1
      %p113 = scmp.ne.s32.totalorder %s108, %s110
      %p114 = scmp.eq.s32.totalorder %s34, 0
      %p115 = por %p113, %p114
      %p116 = scmp.ne.s32.totalorder %s108, %s110
      %p117 = scmp.eq.s32.totalorder %s39, 1
      %p118 = por %p116, %p117
      %p119 = scmp.ne.s32.totalorder %s110, %s111
      %p120 = scmp.eq.s32.totalorder %s39, 0
      %p121 = por %p119, %p120
      %p122 = scmp.ne.s32.totalorder %s110, %s111
      %p123 = scmp.eq.s32.totalorder %s40, 1
      %p124 = por %p122, %p123
      %p126 = scmp.ne.s32.totalorder %s111, %s125
      %p127 = scmp.eq.s32.totalorder %s40, 0
      %p128 = por %p126, %p127
      %s130 = sadd.s32 %s129, 1
      %p133 = scmp.eq.s32.totalorder %s34, 1
      %p134 = scmp.ne.s32.totalorder %s129, %s131
      %p135 = scmp.eq.s32.totalorder %s34, 0
      %p136 = por %p134, %p135
      %p137 = scmp.ne.s32.totalorder %s129, %s131
      %p138 = scmp.eq.s32.totalorder %s39, 1
      %p139 = por %p137, %p138
      %p140 = scmp.ne.s32.totalorder %s131, %s132
      %p141 = scmp.eq.s32.totalorder %s39, 0
      %p142 = por %p140, %p141
      %p143 = scmp.ne.s32.totalorder %s131, %s132
      %p144 = scmp.eq.s32.totalorder %s40, 1
      %p145 = por %p143, %p144
      %p147 = scmp.ne.s32.totalorder %s132, %s146
      %p148 = scmp.eq.s32.totalorder %s40, 0
      %p149 = por %p147, %p148
      %s151 = sadd.s32 %s150, 1
      %p154 = scmp.eq.s32.totalorder %s34, 1
      %p155 = scmp.ne.s32.totalorder %s150, %s152
      %p156 = scmp.eq.s32.totalorder %s34, 0
      %p157 = por %p155, %p156
      %p158 = scmp.ne.s32.totalorder %s150, %s152
      %p159 = scmp.eq.s32.totalorder %s39, 1
      %p160 = por %p158, %p159
      %p161 = scmp.ne.s32.totalorder %s152, %s153
      %p162 = scmp.eq.s32.totalorder %s39, 0
      %p163 = por %p161, %p162
      %p164 = scmp.ne.s32.totalorder %s152, %s153
      %p165 = scmp.eq.s32.totalorder %s40, 1
      %p166 = por %p164, %p165
      %p168 = scmp.ne.s32.totalorder %s153, %s167
      %p169 = scmp.eq.s32.totalorder %s40, 0
      %p170 = por %p168, %p169
      %s172 = sadd.s32 %s171, 1
      %p175 = scmp.eq.s32.totalorder %s34, 1
      %p176 = scmp.ne.s32.totalorder %s171, %s173
      %p177 = scmp.eq.s32.totalorder %s34, 0
      %p178 = por %p176, %p177
      %p179 = scmp.ne.s32.totalorder %s171, %s173
      %p180 = scmp.eq.s32.totalorder %s39, 1
      %p181 = por %p179, %p180
      %p182 = scmp.ne.s32.totalorder %s173, %s174
      %p183 = scmp.eq.s32.totalorder %s39, 0
      %p184 = por %p182, %p183
      %p185 = scmp.ne.s32.totalorder %s173, %s174
      %p186 = scmp.eq.s32.totalorder %s40, 1
      %p187 = por %p185, %p186
      %p189 = scmp.ne.s32.totalorder %s174, %s188
      %p190 = scmp.eq.s32.totalorder %s40, 0
      %p191 = por %p189, %p190
      %s193 = sadd.s32 %s192, 1
      %p196 = scmp.eq.s32.totalorder %s34, 1
      %p197 = scmp.ne.s32.totalorder %s192, %s194
      %p198 = scmp.eq.s32.totalorder %s34, 0
      %p199 = por %p197, %p198
      %p200 = scmp.ne.s32.totalorder %s192, %s194
      %p201 = scmp.eq.s32.totalorder %s39, 1
      %p202 = por %p200, %p201
      %p203 = scmp.ne.s32.totalorder %s194, %s195
      %p204 = scmp.eq.s32.totalorder %s39, 0
      %p205 = por %p203, %p204
      %p206 = scmp.ne.s32.totalorder %s194, %s195
      %p207 = scmp.eq.s32.totalorder %s40, 1
      %p208 = por %p206, %p207
      %p210 = scmp.ne.s32.totalorder %s195, %s209
      %p211 = scmp.eq.s32.totalorder %s40, 0
      %p212 = por %p210, %p211
      %s214 = sadd.s32 %s213, 1
      %p217 = scmp.eq.s32.totalorder %s34, 1
      %p218 = scmp.ne.s32.totalorder %s213, %s215
      %p219 = scmp.eq.s32.totalorder %s34, 0
      %p220 = por %p218, %p219
      %p221 = scmp.ne.s32.totalorder %s213, %s215
      %p222 = scmp.eq.s32.totalorder %s39, 1
      %p223 = por %p221, %p222
      %p224 = scmp.ne.s32.totalorder %s215, %s216
      %p225 = scmp.eq.s32.totalorder %s39, 0
      %p226 = por %p224, %p225
      %p227 = scmp.ne.s32.totalorder %s215, %s216
      %p228 = scmp.eq.s32.totalorder %s40, 1
      %p229 = por %p227, %p228
      %p231 = scmp.ne.s32.totalorder %s216, %s230
      %p232 = scmp.eq.s32.totalorder %s40, 0
      %p233 = por %p231, %p232
      %s235 = sadd.s32 %s234, 1
      %p238 = scmp.eq.s32.totalorder %s34, 1
      %p239 = scmp.ne.s32.totalorder %s234, %s236
      %p240 = scmp.eq.s32.totalorder %s34, 0
      %p241 = por %p239, %p240
      %p242 = scmp.ne.s32.totalorder %s234, %s236
      %p243 = scmp.eq.s32.totalorder %s39, 1
      %p244 = por %p242, %p243
      %p245 = scmp.ne.s32.totalorder %s236, %s237
      %p246 = scmp.eq.s32.totalorder %s39, 0
      %p247 = por %p245, %p246
      %p248 = scmp.ne.s32.totalorder %s236, %s237
      %p249 = scmp.eq.s32.totalorder %s40, 1
      %p250 = por %p248, %p249
      %p252 = scmp.ne.s32.totalorder %s237, %s251
      %p253 = scmp.eq.s32.totalorder %s40, 0
      %p254 = por %p252, %p253
      %s256 = sadd.s32 %s255, 1
      %p259 = scmp.eq.s32.totalorder %s34, 1
      %p260 = scmp.ne.s32.totalorder %s255, %s257
      %p261 = scmp.eq.s32.totalorder %s34, 0
      %p262 = por %p260, %p261
      %p263 = scmp.ne.s32.totalorder %s255, %s257
      %p264 = scmp.eq.s32.totalorder %s39, 1
      %p265 = por %p263, %p264
      %p266 = scmp.ne.s32.totalorder %s257, %s258
      %p267 = scmp.eq.s32.totalorder %s39, 0
      %p268 = por %p266, %p267
      %p269 = scmp.ne.s32.totalorder %s257, %s258
      %p270 = scmp.eq.s32.totalorder %s40, 1
      %p271 = por %p269, %p270
      %p273 = scmp.ne.s32.totalorder %s258, %s272
      %p274 = scmp.eq.s32.totalorder %s40, 0
      %p275 = por %p273, %p274
      %s277 = sadd.s32 %s276, 1
      %p280 = scmp.eq.s32.totalorder %s34, 1
      %p281 = scmp.ne.s32.totalorder %s276, %s278
      %p282 = scmp.eq.s32.totalorder %s34, 0
      %p283 = por %p281, %p282
      %p284 = scmp.ne.s32.totalorder %s276, %s278
      %p285 = scmp.eq.s32.totalorder %s39, 1
      %p286 = por %p284, %p285
      %p287 = scmp.ne.s32.totalorder %s278, %s279
      %p288 = scmp.eq.s32.totalorder %s39, 0
      %p289 = por %p287, %p288
      %p290 = scmp.ne.s32.totalorder %s278, %s279
      %p291 = scmp.eq.s32.totalorder %s40, 1
      %p292 = por %p290, %p291
      %p294 = scmp.ne.s32.totalorder %s279, %s293
      %p295 = scmp.eq.s32.totalorder %s40, 0
      %p296 = por %p294, %p295
      %s298 = sadd.s32 %s297, 1
      %p301 = scmp.eq.s32.totalorder %s34, 1
      %p302 = scmp.ne.s32.totalorder %s297, %s299
      %p303 = scmp.eq.s32.totalorder %s34, 0
      %p304 = por %p302, %p303
      %p305 = scmp.ne.s32.totalorder %s297, %s299
      %p306 = scmp.eq.s32.totalorder %s39, 1
      %p307 = por %p305, %p306
      %p308 = scmp.ne.s32.totalorder %s299, %s300
      %p309 = scmp.eq.s32.totalorder %s39, 0
      %p310 = por %p308, %p309
      %p311 = scmp.ne.s32.totalorder %s299, %s300
      %p312 = scmp.eq.s32.totalorder %s40, 1
      %p313 = por %p311, %p312
      %p315 = scmp.ne.s32.totalorder %s300, %s314
      %p316 = scmp.eq.s32.totalorder %s40, 0
      %p317 = por %p315, %p316
      %s319 = sadd.s32 %s318, 1
      %p322 = scmp.eq.s32.totalorder %s34, 1
      %p323 = scmp.ne.s32.totalorder %s318, %s320
      %p324 = scmp.eq.s32.totalorder %s34, 0
      %p325 = por %p323, %p324
      %p326 = scmp.ne.s32.totalorder %s318, %s320
      %p327 = scmp.eq.s32.totalorder %s39, 1
      %p328 = por %p326, %p327
      %p329 = scmp.ne.s32.totalorder %s320, %s321
      %p330 = scmp.eq.s32.totalorder %s39, 0
      %p331 = por %p329, %p330
      %p332 = scmp.ne.s32.totalorder %s320, %s321
      %p333 = scmp.eq.s32.totalorder %s40, 1
      %p334 = por %p332, %p333
      %p336 = scmp.ne.s32.totalorder %s321, %s335
      %p337 = scmp.eq.s32.totalorder %s40, 0
      %p338 = por %p336, %p337
      %s340 = sadd.s32 %s339, 1
      %p343 = scmp.eq.s32.totalorder %s34, 1
      %p344 = scmp.ne.s32.totalorder %s339, %s341
      %p345 = scmp.eq.s32.totalorder %s34, 0
      %p346 = por %p344, %p345
      %p347 = scmp.ne.s32.totalorder %s339, %s341
      %p348 = scmp.eq.s32.totalorder %s39, 1
      %p349 = por %p347, %p348
      %p350 = scmp.ne.s32.totalorder %s341, %s342
      %p351 = scmp.eq.s32.totalorder %s39, 0
      %p352 = por %p350, %p351
      %p353 = scmp.ne.s32.totalorder %s341, %s342
      %p354 = scmp.eq.s32.totalorder %s40, 1
      %p355 = por %p353, %p354
      %p357 = scmp.ne.s32.totalorder %s342, %s356
      %p358 = scmp.eq.s32.totalorder %s40, 0
      %p359 = por %p357, %p358
      %s361 = sadd.s32 %s360, 1
      %p364 = scmp.eq.s32.totalorder %s34, 1
      %p365 = scmp.ne.s32.totalorder %s360, %s362
      %p366 = scmp.eq.s32.totalorder %s34, 0
      %p367 = por %p365, %p366
      %p368 = scmp.ne.s32.totalorder %s360, %s362
      %p369 = scmp.eq.s32.totalorder %s39, 1
      %p370 = por %p368, %p369
      %p371 = scmp.ne.s32.totalorder %s362, %s363
      %p372 = scmp.eq.s32.totalorder %s39, 0
      %p373 = por %p371, %p372
      %p374 = scmp.ne.s32.totalorder %s362, %s363
      %p375 = scmp.eq.s32.totalorder %s40, 1
      %p376 = por %p374, %p375
      %p378 = scmp.ne.s32.totalorder %s363, %s377
      %p379 = scmp.eq.s32.totalorder %s40, 0
      %p380 = por %p378, %p379
      %s382 = sadd.s32 %s381, 1
      %p385 = scmp.eq.s32.totalorder %s34, 1
      %p386 = scmp.ne.s32.totalorder %s381, %s383
      %p387 = scmp.eq.s32.totalorder %s34, 0
      %p388 = por %p386, %p387
      %p389 = scmp.ne.s32.totalorder %s381, %s383
      %p390 = scmp.eq.s32.totalorder %s39, 1
      %p391 = por %p389, %p390
      %p392 = scmp.ne.s32.totalorder %s383, %s384
      %p393 = scmp.eq.s32.totalorder %s39, 0
      %p394 = por %p392, %p393
      %p395 = scmp.ne.s32.totalorder %s383, %s384
      %p396 = scmp.eq.s32.totalorder %s40, 1
      %p397 = por %p395, %p396
      %p399 = scmp.ne.s32.totalorder %s384, %s398
      %p400 = scmp.eq.s32.totalorder %s40, 0
      %p401 = por %p399, %p400
      %s402 = ssub.s32 %s41, %s53
      %s403 = ssub.s32 %s42, %s49
      %s404 = sor.u32 %s402, %s403
      %p405 = scmp.eq.s32.totalorder %s404, 0
      %s407 = sadd.s32 %s406, 1
      %s408 = scalar_select %p405, %s406, %s407
      %p411 = pneg %p405
      %p412 = scmp.eq.s32.totalorder %s34, 1
      %p413 = por %p411, %p412
      %p414 = scmp.ne.s32.totalorder %s406, %s409
      %p415 = scmp.eq.s32.totalorder %s34, 0
      %p416 = por %p414, %p415
      %p417 = scmp.ne.s32.totalorder %s406, %s409
      %p418 = scmp.eq.s32.totalorder %s39, 1
      %p419 = por %p417, %p418
      %p420 = scmp.ne.s32.totalorder %s409, %s410
      %p421 = scmp.eq.s32.totalorder %s39, 0
      %p422 = por %p420, %p421
      %p423 = scmp.ne.s32.totalorder %s409, %s410
      %p424 = scmp.eq.s32.totalorder %s40, 1
      %p425 = por %p423, %p424
      %p427 = scmp.ne.s32.totalorder %s410, %s426
      %p428 = scmp.eq.s32.totalorder %s40, 0
      %p429 = por %p427, %p428
      %p430 = scmp.le.s32.totalorder 1, %s34
      %p431 = scmp.lt.s32.totalorder %s34, 3
      %p432 = pnand %p430, %p431
      %p433 = pneg %p432
      // Predicated region
      $region9: #{tpu_custom_call.1} parent=5 // pred_check
        _
      $region10: #{tpu_custom_call.1} parent=5 // pred_check_branch
        %435 = sbr.rel (%p432) target = $region12
      $region11: #{tpu_custom_call.1} parent=5 // pred_region
        %s436 = ssub.s32 %s34, 1
        // Predicated region
        $region13: #{tpu_custom_call.1} parent=11 // pred_check
          %p437 = pneg %p121
        $region14: #{tpu_custom_call.1} parent=11 // pred_check_branch
          %439 = sbr.rel (%p437) target = $region16
        $region15: #{tpu_custom_call.1} parent=11 // pred_region
          %s441 = ssub.s32 1024, 1024
          %442 = vsyncadd [#allocation8], %s441
          %s443 = sshll.u32 [#allocation9], 4
          %s444 = int_to_ptr.vmem [resolvable:$true] %s443
          %449 = dma.hbm_to_vmem [thread:$0]  %s2, 1024, %s444, [#allocation8], 64, 64, 4
        $region16: #{tpu_custom_call.1} parent=11 // pred_fallthru
          _
        // Predicated region
        $region17: #{tpu_custom_call.1} parent=11 // pred_check
          %p450 = pneg %p142
        $region18: #{tpu_custom_call.1} parent=11 // pred_check_branch
          %452 = sbr.rel (%p450) target = $region20
        $region19: #{tpu_custom_call.1} parent=11 // pred_region
          _
        $region20: #{tpu_custom_call.1} parent=11 // pred_fallthru
          _
        // Predicated region
        $region21: #{tpu_custom_call.1} parent=11 // pred_check
          %p453 = pneg %p163
        $region22: #{tpu_custom_call.1} parent=11 // pred_check_branch
          %455 = sbr.rel (%p453) target = $region24
        $region23: #{tpu_custom_call.1} parent=11 // pred_region
          %s457 = ssub.s32 2048, 2048
          %458 = vsyncadd [#allocation11], %s457
          %s459 = sshll.u32 [#allocation10], 4
          %s460 = int_to_ptr.vmem [resolvable:$true] %s459
          %465 = dma.hbm_to_vmem [thread:$0]  %s4, 2048, %s460, [#allocation11], 128, 128, 8
        $region24: #{tpu_custom_call.1} parent=11 // pred_fallthru
          _
        // Predicated region
        $region25: #{tpu_custom_call.1} parent=11 // pred_check
          %p466 = pneg %p184
        $region26: #{tpu_custom_call.1} parent=11 // pred_check_branch
          %468 = sbr.rel (%p466) target = $region28
        $region27: #{tpu_custom_call.1} parent=11 // pred_region
          _
        $region28: #{tpu_custom_call.1} parent=11 // pred_fallthru
          _
        // Predicated region
        $region29: #{tpu_custom_call.1} parent=11 // pred_check
          %p469 = pneg %p205
        $region30: #{tpu_custom_call.1} parent=11 // pred_check_branch
          %471 = sbr.rel (%p469) target = $region32
        $region31: #{tpu_custom_call.1} parent=11 // pred_region
          %s473 = ssub.s32 1024, 1024
          %474 = vsyncadd [#allocation11], %s473
          %s475 = sshll.u32 [#allocation12], 4
          %s476 = int_to_ptr.vmem [resolvable:$true] %s475
          %481 = dma.hbm_to_vmem [thread:$0]  %s6, 1024, %s476, [#allocation11], 64, 64, 4
        $region32: #{tpu_custom_call.1} parent=11 // pred_fallthru
          _
        // Predicated region
        $region33: #{tpu_custom_call.1} parent=11 // pred_check
          %p482 = pneg %p226
        $region34: #{tpu_custom_call.1} parent=11 // pred_check_branch
          %484 = sbr.rel (%p482) target = $region36
        $region35: #{tpu_custom_call.1} parent=11 // pred_region
          _
        $region36: #{tpu_custom_call.1} parent=11 // pred_fallthru
          _
        // Predicated region
        $region37: #{tpu_custom_call.1} parent=11 // pred_check
          %p485 = pneg %p247
        $region38: #{tpu_custom_call.1} parent=11 // pred_check_branch
          %487 = sbr.rel (%p485) target = $region40
        $region39: #{tpu_custom_call.1} parent=11 // pred_region
          _
        $region40: #{tpu_custom_call.1} parent=11 // pred_fallthru
          _
        // Predicated region
        $region41: #{tpu_custom_call.1} parent=11 // pred_check
          %p488 = pneg %p268
        $region42: #{tpu_custom_call.1} parent=11 // pred_check_branch
          %490 = sbr.rel (%p488) target = $region44
        $region43: #{tpu_custom_call.1} parent=11 // pred_region
          _
        $region44: #{tpu_custom_call.1} parent=11 // pred_fallthru
          _
        // Predicated region
        $region45: #{tpu_custom_call.1} parent=11 // pred_check
          %p491 = pneg %p289
        $region46: #{tpu_custom_call.1} parent=11 // pred_check_branch
          %493 = sbr.rel (%p491) target = $region48
        $region47: #{tpu_custom_call.1} parent=11 // pred_region
          _
        $region48: #{tpu_custom_call.1} parent=11 // pred_fallthru
          _
        // Predicated region
        $region49: #{tpu_custom_call.1} parent=11 // pred_check
          %p494 = pneg %p310
        $region50: #{tpu_custom_call.1} parent=11 // pred_check_branch
          %496 = sbr.rel (%p494) target = $region52
        $region51: #{tpu_custom_call.1} parent=11 // pred_region
          %s498 = ssub.s32 16, 16
          %499 = vsyncadd [#allocation14], %s498
          %s501 = sshll.u32 [#allocation13], 4
          %s502 = int_to_ptr.vmem [resolvable:$true] %s501
          %504 = dma.hbm_to_vmem [thread:$0]  %s11, 16, %s502, [#allocation14]
        $region52: #{tpu_custom_call.1} parent=11 // pred_fallthru
          _
        // Predicated region
        $region53: #{tpu_custom_call.1} parent=11 // pred_check
          %p505 = pneg %p331
        $region54: #{tpu_custom_call.1} parent=11 // pred_check_branch
          %507 = sbr.rel (%p505) target = $region56
        $region55: #{tpu_custom_call.1} parent=11 // pred_region
          %s509 = ssub.s32 16384, 16384
          %510 = vsyncadd [#allocation14], %s509
          %s511 = sshll.u32 [#allocation15], 4
          %s512 = int_to_ptr.vmem [resolvable:$true] %s511
          %517 = dma.hbm_to_vmem [thread:$0]  %s12, 16384, %s512, [#allocation14], 1024, 1024, 64
        $region56: #{tpu_custom_call.1} parent=11 // pred_fallthru
          _
        // Predicated region
        $region57: #{tpu_custom_call.1} parent=11 // pred_check
          %p518 = pneg %p352
        $region58: #{tpu_custom_call.1} parent=11 // pred_check_branch
          %520 = sbr.rel (%p518) target = $region60
        $region59: #{tpu_custom_call.1} parent=11 // pred_region
          _
        $region60: #{tpu_custom_call.1} parent=11 // pred_fallthru
          _
        // Predicated region
        $region61: #{tpu_custom_call.1} parent=11 // pred_check
          %p521 = pneg %p373
        $region62: #{tpu_custom_call.1} parent=11 // pred_check_branch
          %523 = sbr.rel (%p521) target = $region64
        $region63: #{tpu_custom_call.1} parent=11 // pred_region
          %s525 = ssub.s32 16384, 16384
          %526 = vsyncadd [#allocation17], %s525
          %s527 = sshll.u32 [#allocation16], 4
          %s528 = int_to_ptr.vmem [resolvable:$true] %s527
          %533 = dma.hbm_to_vmem [thread:$0]  %s14, 16384, %s528, [#allocation17], 64, 64, 4
        $region64: #{tpu_custom_call.1} parent=11 // pred_fallthru
          _
        // Predicated region
        $region65: #{tpu_custom_call.1} parent=11 // pred_check
          %p534 = pneg %p394
        $region66: #{tpu_custom_call.1} parent=11 // pred_check_branch
          %536 = sbr.rel (%p534) target = $region68
        $region67: #{tpu_custom_call.1} parent=11 // pred_region
          _
        $region68: #{tpu_custom_call.1} parent=11 // pred_fallthru
          _
      $region12: #{tpu_custom_call.1} parent=5 // pred_fallthru
        _
      %p537 = scmp.lt.s32.totalorder %s34, 2
      // Predicated region
      $region69: #{tpu_custom_call.1} parent=5 // pred_check
        %p538 = pneg %p537
      $region70: #{tpu_custom_call.1} parent=5 // pred_check_branch
        %540 = sbr.rel (%p538) target = $region72
      $region71: #{tpu_custom_call.1} parent=5 // pred_region
        // Predicated region
        $region73: #{tpu_custom_call.1} parent=71 // pred_check
          %p541 = pneg %p68
        $region74: #{tpu_custom_call.1} parent=71 // pred_check_branch
          %543 = sbr.rel (%p541) target = $region76
        $region75: #{tpu_custom_call.1} parent=71 // pred_region
          %s544 = sand.u32 %s58, 1
          %s545 = scalar_lea.sflag [#allocation5], %s544
          %s546 = sand.u32 %s58, 1
          %s547 = smul.addr %s546, 16
          %s548 = scalar_lea.vmem [#allocation4], %s547
          %s549 = smul.u32 2, %s42
          %s551 = ssub.s32 256, 256
          %552 = vsyncadd %s545, %s551
          %s553 = smul.addr %s41, 2
          %s554 = sadd.s32 %s549, %s553
          %s555 = smul.addr %s554, 128
          %s556 = scalar_lea.hbm %s0, %s555
          %s557 = sshll.u32 %s548, 4
          %s558 = int_to_ptr.vmem [resolvable:$true] %s557
          %563 = dma.hbm_to_vmem [thread:$0]  %s556, 256, %s558, %s545, 128, 128, 8
        $region76: #{tpu_custom_call.1} parent=71 // pred_fallthru
          _
        // Predicated region
        $region77: #{tpu_custom_call.1} parent=71 // pred_check
          %p564 = pneg %p94
        $region78: #{tpu_custom_call.1} parent=71 // pred_check_branch
          %566 = sbr.rel (%p564) target = $region80
        $region79: #{tpu_custom_call.1} parent=71 // pred_region
          %s567 = sand.u32 %s34, 1
          %s568 = scalar_lea.sflag [#allocation8], %s567
          %s569 = sand.u32 %s84, 1
          %s570 = smul.addr %s569, 16
          %s571 = scalar_lea.vmem [#allocation7], %s570
          %s573 = ssub.s32 256, 256
          %574 = vsyncadd %s568, %s573
          %s575 = smul.addr %s41, 2
          %s576 = smul.addr %s575, 128
          %s577 = scalar_lea.hbm %s1, %s576
          %s578 = sshll.u32 %s571, 4
          %s579 = int_to_ptr.vmem [resolvable:$true] %s578
          %584 = dma.hbm_to_vmem [thread:$0]  %s577, 256, %s579, %s568, 128, 128, 8
        $region80: #{tpu_custom_call.1} parent=71 // pred_fallthru
          _
      $region72: #{tpu_custom_call.1} parent=5 // pred_fallthru
        _
      %p585 = scmp.le.s32.totalorder 1, %s34
      %p586 = scmp.lt.s32.totalorder %s34, 3
      %p587 = pnand %p585, %p586
      %p588 = pneg %p587
      // Predicated region
      $region81: #{tpu_custom_call.1} parent=5 // pred_check
        _
      $region82: #{tpu_custom_call.1} parent=5 // pred_check_branch
        %590 = sbr.rel (%p587) target = $region84
      $region83: #{tpu_custom_call.1} parent=5 // pred_region
        %s591 = ssub.s32 %s34, 1
        %s592 = sand.u32 %s61, 1
        %s593 = scalar_lea.sflag [#allocation5], %s592
        %s594 = sand.u32 %s61, 1
        %s595 = smul.addr %s594, 16
        %s596 = scalar_lea.vmem [#allocation4], %s595
        // Predicated region
        $region85: #{tpu_custom_call.1} parent=83 // pred_check
          %p597 = pneg %p74
        $region86: #{tpu_custom_call.1} parent=83 // pred_check_branch
          %599 = sbr.rel (%p597) target = $region88
        $region87: #{tpu_custom_call.1} parent=83 // pred_region
          %600 = dma.done %s593, 256
        $region88: #{tpu_custom_call.1} parent=83 // pred_fallthru
          _
        %s601 = sand.u32 %s39, 1
        %s602 = scalar_lea.sflag [#allocation8], %s601
        %s603 = sand.u32 %s87, 1
        %s604 = smul.addr %s603, 16
        %s605 = scalar_lea.vmem [#allocation7], %s604
        // Predicated region
        $region89: #{tpu_custom_call.1} parent=83 // pred_check
          %p606 = pneg %p100
        $region90: #{tpu_custom_call.1} parent=83 // pred_check_branch
          %608 = sbr.rel (%p606) target = $region92
        $region91: #{tpu_custom_call.1} parent=83 // pred_region
          %609 = dma.done %s602, 256
        $region92: #{tpu_custom_call.1} parent=83 // pred_fallthru
          _
        // Predicated region
        $region93: #{tpu_custom_call.1} parent=83 // pred_check
          %p610 = pneg %p121
        $region94: #{tpu_custom_call.1} parent=83 // pred_check_branch
          %612 = sbr.rel (%p610) target = $region96
        $region95: #{tpu_custom_call.1} parent=83 // pred_region
          %613 = dma.done [#allocation8], 1024
        $region96: #{tpu_custom_call.1} parent=83 // pred_fallthru
          _
        // Predicated region
        $region97: #{tpu_custom_call.1} parent=83 // pred_check
          %p614 = pneg %p163
        $region98: #{tpu_custom_call.1} parent=83 // pred_check_branch
          %616 = sbr.rel (%p614) target = $region100
        $region99: #{tpu_custom_call.1} parent=83 // pred_region
          %617 = dma.done [#allocation11], 2048
        $region100: #{tpu_custom_call.1} parent=83 // pred_fallthru
          _
        // Predicated region
        $region101: #{tpu_custom_call.1} parent=83 // pred_check
          %p618 = pneg %p205
        $region102: #{tpu_custom_call.1} parent=83 // pred_check_branch
          %620 = sbr.rel (%p618) target = $region104
        $region103: #{tpu_custom_call.1} parent=83 // pred_region
          %621 = dma.done [#allocation11], 1024
        $region104: #{tpu_custom_call.1} parent=83 // pred_fallthru
          _
        // Predicated region
        $region105: #{tpu_custom_call.1} parent=83 // pred_check
          %p622 = pneg %p310
        $region106: #{tpu_custom_call.1} parent=83 // pred_check_branch
          %624 = sbr.rel (%p622) target = $region108
        $region107: #{tpu_custom_call.1} parent=83 // pred_region
          %625 = dma.done [#allocation14], 16
        $region108: #{tpu_custom_call.1} parent=83 // pred_fallthru
          _
        // Predicated region
        $region109: #{tpu_custom_call.1} parent=83 // pred_check
          %p626 = pneg %p331
        $region110: #{tpu_custom_call.1} parent=83 // pred_check_branch
          %628 = sbr.rel (%p626) target = $region112
        $region111: #{tpu_custom_call.1} parent=83 // pred_region
          %629 = dma.done [#allocation14], 16384
        $region112: #{tpu_custom_call.1} parent=83 // pred_fallthru
          _
        // Predicated region
        $region113: #{tpu_custom_call.1} parent=83 // pred_check
          %p630 = pneg %p373
        $region114: #{tpu_custom_call.1} parent=83 // pred_check_branch
          %632 = sbr.rel (%p630) target = $region116
        $region115: #{tpu_custom_call.1} parent=83 // pred_region
          %633 = dma.done [#allocation17], 16384
        $region116: #{tpu_custom_call.1} parent=83 // pred_fallthru
          _
        %s634 = sand.u32 %s61, 1
        %s635 = scalar_lea.sflag [#allocation5], %s634
        %s636 = sand.u32 %s61, 1
        %s637 = smul.addr %s636, 16
        %s638 = scalar_lea.vmem [#allocation4], %s637
        %p639 = pneg %p74
        %p640 = pneg %p71
        %s641 = sand.u32 %s39, 1
        %s642 = scalar_lea.sflag [#allocation8], %s641
        %s643 = sand.u32 %s87, 1
        %s644 = smul.addr %s643, 16
        %s645 = scalar_lea.vmem [#allocation7], %s644
        %p646 = pneg %p100
        %p647 = pneg %p97
        %p648 = pneg %p121
        %p649 = pneg %p118
        %p650 = pneg %p142
        %p651 = pneg %p139
        %p652 = pneg %p163
        %p653 = pneg %p160
        %p654 = pneg %p184
        %p655 = pneg %p181
        %p656 = pneg %p205
        %p657 = pneg %p202
        %p658 = pneg %p226
        %p659 = pneg %p223
        %p660 = pneg %p247
        %p661 = pneg %p244
        %p662 = pneg %p268
        %p663 = pneg %p265
        %p664 = pneg %p289
        %p665 = pneg %p286
        %p666 = pneg %p310
        %p667 = pneg %p307
        %p668 = pneg %p331
        %p669 = pneg %p328
        %p670 = pneg %p352
        %p671 = pneg %p349
        %p672 = pneg %p373
        %p673 = pneg %p370
        %p674 = pneg %p394
        %p675 = pneg %p391
        %p676 = pneg %p422
        %p677 = pneg %p419
        %s678 = sand.u32 %s409, 1
        %s679 = scalar_lea.sflag [#allocation6], %s678
        %s680 = sand.u32 %s409, 1
        %s681 = smul.addr %s680, 16
        %s682 = scalar_lea.vmem [#allocation18], %s681
        %s683 = smul.u32 2, %s44
        %s684 = smul.u32 2, %s44
        %p686 = scmp.eq.s32.totalorder %s44, 0
        // Predicated region
        $region117: #{tpu_custom_call.1} parent=83 // pred_check
          %p687 = pneg %p686
        $region118: #{tpu_custom_call.1} parent=83 // pred_check_branch
          %689 = sbr.rel (%p687) target = $region120
        $region119: #{tpu_custom_call.1} parent=83 // pred_region
          %v690 = vld [vmem:[%s605] sm:$0xff]
          %v691 = vld [vmem:[%s605 + $0x8] sm:$0xff]
          %v692 = vpack.c.bf16 %v691, %v690
          %v693 = vld [vmem:[#allocation10] sm:$0xff]
          %v694 = vld [vmem:[#allocation10 + $0x8] sm:$0xff]
          %v695 = vld [vmem:[#allocation10 + $0x10] sm:$0xff]
          %v696 = vld [vmem:[#allocation10 + $0x18] sm:$0xff]
          %v697 = vld [vmem:[#allocation10 + $0x20] sm:$0xff]
          %v698 = vld [vmem:[#allocation10 + $0x28] sm:$0xff]
          %v699 = vld [vmem:[#allocation10 + $0x30] sm:$0xff]
          %v700 = vld [vmem:[#allocation10 + $0x38] sm:$0xff]
          %v701 = vld [vmem:[#allocation10 + $0x40] sm:$0xff]
          %v702 = vld [vmem:[#allocation10 + $0x48] sm:$0xff]
          %v703 = vld [vmem:[#allocation10 + $0x50] sm:$0xff]
          %v704 = vld [vmem:[#allocation10 + $0x58] sm:$0xff]
          %v705 = vld [vmem:[#allocation10 + $0x60] sm:$0xff]
          %v706 = vld [vmem:[#allocation10 + $0x68] sm:$0xff]
          %v707 = vld [vmem:[#allocation10 + $0x70] sm:$0xff]
          %v708 = vld [vmem:[#allocation10 + $0x78] sm:$0xff]
          %v709 = vld [vmem:[%s5] sm:$0x3]
          %v711 = vlaneseq
          %v712 = vshrl.u32 %v711, 7
          %v713 = vsub.s32 0, %v712
          %v714 = vrot.slane %v709, %v713
          %v715 = vlaneseq
          %v716 = vshrl.u32 %v715, 7
          %v717 = vsub.s32 1, %v716
          %v718 = vrot.slane %v709, %v717
          %v737 = vunpack.c.l.b16 %v693
          %v738 = vunpack.c.h.b16 %v693
          %v739 = vunpack.c.l.b16 %v694
          %v740 = vunpack.c.h.b16 %v694
          %v741 = vunpack.c.l.b16 %v695
          %v742 = vunpack.c.h.b16 %v695
          %v743 = vunpack.c.l.b16 %v696
          %v744 = vunpack.c.h.b16 %v696
          %v745 = vunpack.c.l.b16 %v697
          %v746 = vunpack.c.h.b16 %v697
          %v747 = vunpack.c.l.b16 %v698
          %v748 = vunpack.c.h.b16 %v698
          %v749 = vunpack.c.l.b16 %v699
          %v750 = vunpack.c.h.b16 %v699
          %v751 = vunpack.c.l.b16 %v700
          %v752 = vunpack.c.h.b16 %v700
          %v753 = vunpack.c.l.b16 %v701
          %v754 = vunpack.c.h.b16 %v701
          %v755 = vunpack.c.l.b16 %v702
          %v756 = vunpack.c.h.b16 %v702
          %v757 = vunpack.c.l.b16 %v703
          %v758 = vunpack.c.h.b16 %v703
          %v759 = vunpack.c.l.b16 %v704
          %v760 = vunpack.c.h.b16 %v704
          %v761 = vunpack.c.l.b16 %v705
          %v762 = vunpack.c.h.b16 %v705
          %v763 = vunpack.c.l.b16 %v706
          %v764 = vunpack.c.h.b16 %v706
          %v765 = vunpack.c.l.b16 %v707
          %v766 = vunpack.c.h.b16 %v707
          %v767 = vunpack.c.l.b16 %v708
          %v768 = vunpack.c.h.b16 %v708
          %v769 = vpack.c.b16 %v739, %v737
          %v770 = vpack.c.b16 %v740, %v738
          %v771 = vpack.c.b16 %v743, %v741
          %v772 = vpack.c.b16 %v744, %v742
          %v773 = vpack.c.b16 %v747, %v745
          %v774 = vpack.c.b16 %v748, %v746
          %v775 = vpack.c.b16 %v751, %v749
          %v776 = vpack.c.b16 %v752, %v750
          %v777 = vpack.c.b16 %v755, %v753
          %v778 = vpack.c.b16 %v756, %v754
          %v779 = vpack.c.b16 %v759, %v757
          %v780 = vpack.c.b16 %v760, %v758
          %v781 = vpack.c.b16 %v763, %v761
          %v782 = vpack.c.b16 %v764, %v762
          %v783 = vpack.c.b16 %v767, %v765
          %v784 = vpack.c.b16 %v768, %v766
          %801 = vmatprep.subr.bf16.mxu0 %v784
          %802 = vmatpush1.bf16.msra.mxu0 %v783
          %803 = vmatprep.subr.bf16.mxu0 %v782
          %804 = vmatpush1.bf16.msra.mxu0 %v781
          %805 = vmatprep.subr.bf16.mxu0 %v780
          %806 = vmatpush1.bf16.msra.mxu0 %v779
          %807 = vmatprep.subr.bf16.mxu0 %v778
          %808 = vmatpush1.bf16.msra.mxu0 %v777
          %809 = vmatprep.subr.bf16.mxu0 %v776
          %810 = vmatpush1.bf16.msra.mxu0 %v775
          %811 = vmatprep.subr.bf16.mxu0 %v774
          %812 = vmatpush1.bf16.msra.mxu0 %v773
          %813 = vmatprep.subr.bf16.mxu0 %v772
          %814 = vmatpush1.bf16.msra.mxu0 %v771
          %815 = vmatprep.subr.bf16.mxu0 %v770
          %816 = vmatpush1.bf16.msra.mxu0 %v769
          %817 = vmatprep.subr.bf16.mxu0 0
          %818 = vmatpush2.bf16.msra.mxu0 0
          %819 = vmatprep.subr.bf16.mxu0 0
          %820 = vmatpush2.bf16.msra.mxu0 0
          %821 = vmatprep.subr.bf16.mxu0 0
          %822 = vmatpush2.bf16.msra.mxu0 0
          %823 = vmatprep.subr.bf16.mxu0 0
          %824 = vmatpush2.bf16.msra.mxu0 0
          %825 = vmatprep.subr.bf16.mxu0 0
          %826 = vmatpush2.bf16.msra.mxu0 0
          %827 = vmatprep.subr.bf16.mxu0 0
          %828 = vmatpush2.bf16.msra.mxu0 0
          %829 = vmatprep.subr.bf16.mxu0 0
          %830 = vmatpush2.bf16.msra.mxu0 0
          %831 = vmatprep.subr.bf16.mxu0 0
          %832 = vmatpush2.bf16.msra.mxu0 0
          %833 = vmatprep.mubr.bf16.mxu0 0
          %834 = vmatmul.mubr.bf16.gmra.mxu0 %v692
          %v835 = vpop.f32.mrf.mxu0
          %v836 = vadd.f32 %v714, %v835
          %v837 = vpop.f32.mrf.mxu0
          %v838 = vadd.f32 %v718, %v837
          %v839 = vpop.f32.mrf.mxu0
          %v840 = vadd.f32 %v714, %v839
          %v841 = vpop.f32.mrf.mxu0
          %v842 = vadd.f32 %v718, %v841
          %843 = vdwg.mxu0
          %v844 = vpack.c.bf16 %v840, %v836
          %v845 = vpack.c.bf16 %v842, %v838
          %847 = vrot.lane.b32.xlu0 %v844, 96
          %v848 = vpop.permute.xlu0 %847
          %849 = vrot.lane.b32.xlu0 %v844, 64
          %v850 = vpop.permute.xlu0 %849
          %851 = vrot.lane.b32.xlu0 %v844, 32
          %v852 = vpop.permute.xlu0 %851
          %v853 = vunpack.c.l.b16 %v844
          %v854 = vunpack.c.h.b16 %v844
          %v855 = vunpack.c.l.b16 %v848
          %v856 = vunpack.c.h.b16 %v848
          %v857 = vunpack.c.l.b16 %v850
          %v858 = vunpack.c.h.b16 %v850
          %v859 = vunpack.c.l.b16 %v852
          %v860 = vunpack.c.h.b16 %v852
          %v861 = vpack.c.b16 %v853, %v853
          %v862 = vpack.c.b16 %v854, %v854
          %v863 = vpack.c.b16 %v855, %v855
          %v864 = vpack.c.b16 %v856, %v856
          %v865 = vpack.c.b16 %v857, %v857
          %v866 = vpack.c.b16 %v858, %v858
          %v867 = vpack.c.b16 %v859, %v859
          %v868 = vpack.c.b16 %v860, %v860
          %vm877 = vcmask 257024
          %878 = vst.msk [vmem:[#allocation2] sm:$0xf] %vm877, %v861
          %879 = vst.msk [vmem:[#allocation2 + $0x4] sm:$0xf] %vm877, %v862
          %880 = vst.msk [vmem:[#allocation2 + $0x8] sm:$0xf] %vm877, %v863
          %881 = vst.msk [vmem:[#allocation2 + $0xc] sm:$0xf] %vm877, %v864
          %882 = vst.msk [vmem:[#allocation2 + $0x10] sm:$0xf] %vm877, %v865
          %883 = vst.msk [vmem:[#allocation2 + $0x14] sm:$0xf] %vm877, %v866
          %884 = vst.msk [vmem:[#allocation2 + $0x18] sm:$0xf] %vm877, %v867
          %885 = vst.msk [vmem:[#allocation2 + $0x1c] sm:$0xf] %vm877, %v868
          %887 = vrot.lane.b32.xlu0 %v845, 96
          %v888 = vpop.permute.xlu0 %887
          %889 = vrot.lane.b32.xlu0 %v845, 64
          %v890 = vpop.permute.xlu0 %889
          %891 = vrot.lane.b32.xlu0 %v845, 32
          %v892 = vpop.permute.xlu0 %891
          %v893 = vunpack.c.l.b16 %v845
          %v894 = vunpack.c.h.b16 %v845
          %v895 = vunpack.c.l.b16 %v888
          %v896 = vunpack.c.h.b16 %v888
          %v897 = vunpack.c.l.b16 %v890
          %v898 = vunpack.c.h.b16 %v890
          %v899 = vunpack.c.l.b16 %v892
          %v900 = vunpack.c.h.b16 %v892
          %v901 = vpack.c.b16 %v893, %v893
          %v902 = vpack.c.b16 %v894, %v894
          %v903 = vpack.c.b16 %v895, %v895
          %v904 = vpack.c.b16 %v896, %v896
          %v905 = vpack.c.b16 %v897, %v897
          %v906 = vpack.c.b16 %v898, %v898
          %v907 = vpack.c.b16 %v899, %v899
          %v908 = vpack.c.b16 %v900, %v900
          %917 = vst.msk [vmem:[#allocation3] sm:$0xf] %vm877, %v901
          %918 = vst.msk [vmem:[#allocation3 + $0x4] sm:$0xf] %vm877, %v902
          %919 = vst.msk [vmem:[#allocation3 + $0x8] sm:$0xf] %vm877, %v903
          %920 = vst.msk [vmem:[#allocation3 + $0xc] sm:$0xf] %vm877, %v904
          %921 = vst.msk [vmem:[#allocation3 + $0x10] sm:$0xf] %vm877, %v905
          %922 = vst.msk [vmem:[#allocation3 + $0x14] sm:$0xf] %vm877, %v906
          %923 = vst.msk [vmem:[#allocation3 + $0x18] sm:$0xf] %vm877, %v907
          %924 = vst.msk [vmem:[#allocation3 + $0x1c] sm:$0xf] %vm877, %v908
        $region120: #{tpu_custom_call.1} parent=83 // pred_fallthru
          _
        %v925 = vld [vmem:[%s596] sm:$0xff]
        %v926 = vld [vmem:[%s596 + $0x8] sm:$0xff]
        %v927 = vpack.c.bf16 %v926, %v925
        %v928 = vld [vmem:[#allocation9] sm:$0xf]
        %v929 = vld [vmem:[#allocation9 + $0x4] sm:$0xf]
        %v930 = vld [vmem:[#allocation9 + $0x8] sm:$0xf]
        %v931 = vld [vmem:[#allocation9 + $0xc] sm:$0xf]
        %v932 = vld [vmem:[#allocation9 + $0x10] sm:$0xf]
        %v933 = vld [vmem:[#allocation9 + $0x14] sm:$0xf]
        %v934 = vld [vmem:[#allocation9 + $0x18] sm:$0xf]
        %v935 = vld [vmem:[#allocation9 + $0x1c] sm:$0xf]
        %v936 = vld [vmem:[#allocation9 + $0x20] sm:$0xf]
        %v937 = vld [vmem:[#allocation9 + $0x24] sm:$0xf]
        %v938 = vld [vmem:[#allocation9 + $0x28] sm:$0xf]
        %v939 = vld [vmem:[#allocation9 + $0x2c] sm:$0xf]
        %v940 = vld [vmem:[#allocation9 + $0x30] sm:$0xf]
        %v941 = vld [vmem:[#allocation9 + $0x34] sm:$0xf]
        %v942 = vld [vmem:[#allocation9 + $0x38] sm:$0xf]
        %v943 = vld [vmem:[#allocation9 + $0x3c] sm:$0xf]
        %v944 = vld [vmem:[%s3] sm:$0x1]
        %v946 = vlaneseq
        %v947 = vshrl.u32 %v946, 7
        %v948 = vsub.s32 0, %v947
        %v949 = vrot.slane %v944, %v948
        %v967 = vunpack.c.l.b16 %v928
        %v968 = vunpack.c.l.b16 %v929
        %v969 = vunpack.c.l.b16 %v930
        %v970 = vunpack.c.l.b16 %v931
        %v971 = vunpack.c.l.b16 %v932
        %v972 = vunpack.c.l.b16 %v933
        %v973 = vunpack.c.l.b16 %v934
        %v974 = vunpack.c.l.b16 %v935
        %v975 = vunpack.c.l.b16 %v936
        %v976 = vunpack.c.l.b16 %v937
        %v977 = vunpack.c.l.b16 %v938
        %v978 = vunpack.c.l.b16 %v939
        %v979 = vunpack.c.l.b16 %v940
        %v980 = vunpack.c.l.b16 %v941
        %v981 = vunpack.c.l.b16 %v942
        %v982 = vunpack.c.l.b16 %v943
        %v983 = vpack.c.b16 %v968, %v967
        %v984 = vpack.c.b16 %v970, %v969
        %v985 = vpack.c.b16 %v972, %v971
        %v986 = vpack.c.b16 %v974, %v973
        %v987 = vpack.c.b16 %v976, %v975
        %v988 = vpack.c.b16 %v978, %v977
        %v989 = vpack.c.b16 %v980, %v979
        %v990 = vpack.c.b16 %v982, %v981
        %999 = vmatprep.subr.bf16.mxu0 0
        %1000 = vmatpush1.bf16.msra.mxu0 %v990
        %1001 = vmatprep.subr.bf16.mxu0 0
        %1002 = vmatpush1.bf16.msra.mxu0 %v989
        %1003 = vmatprep.subr.bf16.mxu0 0
        %1004 = vmatpush1.bf16.msra.mxu0 %v988
        %1005 = vmatprep.subr.bf16.mxu0 0
        %1006 = vmatpush1.bf16.msra.mxu0 %v987
        %1007 = vmatprep.subr.bf16.mxu0 0
        %1008 = vmatpush1.bf16.msra.mxu0 %v986
        %1009 = vmatprep.subr.bf16.mxu0 0
        %1010 = vmatpush1.bf16.msra.mxu0 %v985
        %1011 = vmatprep.subr.bf16.mxu0 0
        %1012 = vmatpush1.bf16.msra.mxu0 %v984
        %1013 = vmatprep.subr.bf16.mxu0 0
        %1014 = vmatpush1.bf16.msra.mxu0 %v983
        %1015 = vmatprep.subr.bf16.mxu0 0
        %1016 = vmatpush2.bf16.msra.mxu0 0
        %1017 = vmatprep.subr.bf16.mxu0 0
        %1018 = vmatpush2.bf16.msra.mxu0 0
        %1019 = vmatprep.subr.bf16.mxu0 0
        %1020 = vmatpush2.bf16.msra.mxu0 0
        %1021 = vmatprep.subr.bf16.mxu0 0
        %1022 = vmatpush2.bf16.msra.mxu0 0
        %1023 = vmatprep.subr.bf16.mxu0 0
        %1024 = vmatpush2.bf16.msra.mxu0 0
        %1025 = vmatprep.subr.bf16.mxu0 0
        %1026 = vmatpush2.bf16.msra.mxu0 0
        %1027 = vmatprep.subr.bf16.mxu0 0
        %1028 = vmatpush2.bf16.msra.mxu0 0
        %1029 = vmatprep.subr.bf16.mxu0 0
        %1030 = vmatpush2.bf16.msra.mxu0 0
        %1031 = vmatprep.mubr.bf16.mxu0 0
        %1032 = vmatmul.mubr.bf16.gmra.mxu0 %v927
        %v1033 = vpop.f32.mrf.mxu0
        %v1034 = vadd.f32 %v949, %v1033
        %v1035 = vpop.f32.mrf.mxu0
        %v1036 = vpop.f32.mrf.mxu0
        %v1037 = vadd.f32 %v949, %v1036
        %v1038 = vpop.f32.mrf.mxu0
        %1039 = vdwg.mxu0
        %v1040 = vpack.c.bf16 %v1037, %v1034
        %1042 = vrot.lane.b32.xlu0 %v1040, 96
        %v1043 = vpop.permute.xlu0 %1042
        %1044 = vrot.lane.b32.xlu0 %v1040, 64
        %v1045 = vpop.permute.xlu0 %1044
        %1046 = vrot.lane.b32.xlu0 %v1040, 32
        %v1047 = vpop.permute.xlu0 %1046
        %v1048 = vld [vmem:[#allocation2] sm:$0xf]
        %v1049 = vld [vmem:[#allocation2 + $0x4] sm:$0xf]
        %v1050 = vld [vmem:[#allocation2 + $0x8] sm:$0xf]
        %v1051 = vld [vmem:[#allocation2 + $0xc] sm:$0xf]
        %v1052 = vld [vmem:[#allocation2 + $0x10] sm:$0xf]
        %v1053 = vld [vmem:[#allocation2 + $0x14] sm:$0xf]
        %v1054 = vld [vmem:[#allocation2 + $0x18] sm:$0xf]
        %v1055 = vld [vmem:[#allocation2 + $0x1c] sm:$0xf]
        %v1056 = vld [vmem:[#allocation3] sm:$0xf]
        %v1057 = vld [vmem:[#allocation3 + $0x4] sm:$0xf]
        %v1058 = vld [vmem:[#allocation3 + $0x8] sm:$0xf]
        %v1059 = vld [vmem:[#allocation3 + $0xc] sm:$0xf]
        %v1060 = vld [vmem:[#allocation3 + $0x10] sm:$0xf]
        %v1061 = vld [vmem:[#allocation3 + $0x14] sm:$0xf]
        %v1062 = vld [vmem:[#allocation3 + $0x18] sm:$0xf]
        %v1063 = vld [vmem:[#allocation3 + $0x1c] sm:$0xf]
        %v1066 = vunpack.c.l.b16 %v1048
        %v1067 = vunpack.c.l.b16 %v1049
        %v1068 = vpack.c.b16 %v1067, %v1066
        %vm1069 = vcmask 261120
        %v1071 = vsel %vm1069, %v1040, 0
        %v1074 = vsel %vm1069, %v1068, 0
        %1076 = vmatprep.subr.bf16.mxu0 0
        %1077 = vmatpush1.bf16.xpose.msra.mxu0 0
        %1078 = vmatprep.subr.bf16.mxu0 0
        %1079 = vmatpush1.bf16.xpose.msra.mxu0 0
        %1080 = vmatprep.subr.bf16.mxu0 0
        %1081 = vmatpush1.bf16.xpose.msra.mxu0 0
        %1082 = vmatprep.subr.bf16.mxu0 0
        %1083 = vmatpush1.bf16.xpose.msra.mxu0 0
        %1084 = vmatprep.subr.bf16.mxu0 0
        %1085 = vmatpush1.bf16.xpose.msra.mxu0 0
        %1086 = vmatprep.subr.bf16.mxu0 0
        %1087 = vmatpush1.bf16.xpose.msra.mxu0 0
        %1088 = vmatprep.subr.bf16.mxu0 0
        %1089 = vmatpush1.bf16.xpose.msra.mxu0 0
        %1090 = vmatprep.subr.bf16.mxu0 0
        %1091 = vmatpush1.bf16.xpose.msra.mxu0 %v1074
        %1092 = vmatprep.subr.bf16.mxu0 0
        %1093 = vmatpush2.bf16.xpose.msra.mxu0 0
        %1094 = vmatprep.subr.bf16.mxu0 0
        %1095 = vmatpush2.bf16.xpose.msra.mxu0 0
        %1096 = vmatprep.subr.bf16.mxu0 0
        %1097 = vmatpush2.bf16.xpose.msra.mxu0 0
        %1098 = vmatprep.subr.bf16.mxu0 0
        %1099 = vmatpush2.bf16.xpose.msra.mxu0 0
        %1100 = vmatprep.subr.bf16.mxu0 0
        %1101 = vmatpush2.bf16.xpose.msra.mxu0 0
        %1102 = vmatprep.subr.bf16.mxu0 0
        %1103 = vmatpush2.bf16.xpose.msra.mxu0 0
        %1104 = vmatprep.subr.bf16.mxu0 0
        %1105 = vmatpush2.bf16.xpose.msra.mxu0 0
        %1106 = vmatprep.subr.bf16.mxu0 0
        %1107 = vmatpush2.bf16.xpose.msra.mxu0 0
        %1108 = vmatprep.mubr.bf16.mxu0 0
        %1109 = vmatmul.mubr.bf16.gmra.mxu0 %v1071
        %v1110 = vpop.f32.mrf.mxu0
        %v1111 = vadd.f32 0.0, %v1110
        %v1112 = vpop.f32.mrf.mxu0
        %v1113 = vpop.f32.mrf.mxu0
        %v1114 = vadd.f32 0.0, %v1113
        %v1115 = vpop.f32.mrf.mxu0
        %1116 = vdwg.mxu0
        %v1119 = vunpack.c.l.b16 %v1050
        %v1120 = vunpack.c.l.b16 %v1051
        %v1121 = vpack.c.b16 %v1120, %v1119
        %v1123 = vsel %vm1069, %v1043, 0
        %v1126 = vsel %vm1069, %v1121, 0
        %1128 = vmatprep.subr.bf16.mxu0 0
        %1129 = vmatpush1.bf16.xpose.msra.mxu0 0
        %1130 = vmatprep.subr.bf16.mxu0 0
        %1131 = vmatpush1.bf16.xpose.msra.mxu0 0
        %1132 = vmatprep.subr.bf16.mxu0 0
        %1133 = vmatpush1.bf16.xpose.msra.mxu0 0
        %1134 = vmatprep.subr.bf16.mxu0 0
        %1135 = vmatpush1.bf16.xpose.msra.mxu0 0
        %1136 = vmatprep.subr.bf16.mxu0 0
        %1137 = vmatpush1.bf16.xpose.msra.mxu0 0
        %1138 = vmatprep.subr.bf16.mxu0 0
        %1139 = vmatpush1.bf16.xpose.msra.mxu0 0
        %1140 = vmatprep.subr.bf16.mxu0 0
        %1141 = vmatpush1.bf16.xpose.msra.mxu0 0
        %1142 = vmatprep.subr.bf16.mxu0 0
        %1143 = vmatpush1.bf16.xpose.msra.mxu0 %v1126
        %1144 = vmatprep.subr.bf16.mxu0 0
        %1145 = vmatpush2.bf16.xpose.msra.mxu0 0
        %1146 = vmatprep.subr.bf16.mxu0 0
        %1147 = vmatpush2.bf16.xpose.msra.mxu0 0
        %1148 = vmatprep.subr.bf16.mxu0 0
        %1149 = vmatpush2.bf16.xpose.msra.mxu0 0
        %1150 = vmatprep.subr.bf16.mxu0 0
        %1151 = vmatpush2.bf16.xpose.msra.mxu0 0
        %1152 = vmatprep.subr.bf16.mxu0 0
        %1153 = vmatpush2.bf16.xpose.msra.mxu0 0
        %1154 = vmatprep.subr.bf16.mxu0 0
        %1155 = vmatpush2.bf16.xpose.msra.mxu0 0
        %1156 = vmatprep.subr.bf16.mxu0 0
        %1157 = vmatpush2.bf16.xpose.msra.mxu0 0
        %1158 = vmatprep.subr.bf16.mxu0 0
        %1159 = vmatpush2.bf16.xpose.msra.mxu0 0
        %1160 = vmatprep.mubr.bf16.mxu0 0
        %1161 = vmatmul.mubr.bf16.gmra.mxu0 %v1123
        %v1162 = vpop.f32.mrf.mxu0
        %v1163 = vadd.f32 0.0, %v1162
        %v1164 = vpop.f32.mrf.mxu0
        %v1165 = vpop.f32.mrf.mxu0
        %v1166 = vadd.f32 0.0, %v1165
        %v1167 = vpop.f32.mrf.mxu0
        %1168 = vdwg.mxu0
        %v1171 = vunpack.c.l.b16 %v1052
        %v1172 = vunpack.c.l.b16 %v1053
        %v1173 = vpack.c.b16 %v1172, %v1171
        %v1175 = vsel %vm1069, %v1045, 0
        %v1178 = vsel %vm1069, %v1173, 0
        %1180 = vmatprep.subr.bf16.mxu0 0
        %1181 = vmatpush1.bf16.xpose.msra.mxu0 0
        %1182 = vmatprep.subr.bf16.mxu0 0
        %1183 = vmatpush1.bf16.xpose.msra.mxu0 0
        %1184 = vmatprep.subr.bf16.mxu0 0
        %1185 = vmatpush1.bf16.xpose.msra.mxu0 0
        %1186 = vmatprep.subr.bf16.mxu0 0
        %1187 = vmatpush1.bf16.xpose.msra.mxu0 0
        %1188 = vmatprep.subr.bf16.mxu0 0
        %1189 = vmatpush1.bf16.xpose.msra.mxu0 0
        %1190 = vmatprep.subr.bf16.mxu0 0
        %1191 = vmatpush1.bf16.xpose.msra.mxu0 0
        %1192 = vmatprep.subr.bf16.mxu0 0
        %1193 = vmatpush1.bf16.xpose.msra.mxu0 0
        %1194 = vmatprep.subr.bf16.mxu0 0
        %1195 = vmatpush1.bf16.xpose.msra.mxu0 %v1178
        %1196 = vmatprep.subr.bf16.mxu0 0
        %1197 = vmatpush2.bf16.xpose.msra.mxu0 0
        %1198 = vmatprep.subr.bf16.mxu0 0
        %1199 = vmatpush2.bf16.xpose.msra.mxu0 0
        %1200 = vmatprep.subr.bf16.mxu0 0
        %1201 = vmatpush2.bf16.xpose.msra.mxu0 0
        %1202 = vmatprep.subr.bf16.mxu0 0
        %1203 = vmatpush2.bf16.xpose.msra.mxu0 0
        %1204 = vmatprep.subr.bf16.mxu0 0
        %1205 = vmatpush2.bf16.xpose.msra.mxu0 0
        %1206 = vmatprep.subr.bf16.mxu0 0
        %1207 = vmatpush2.bf16.xpose.msra.mxu0 0
        %1208 = vmatprep.subr.bf16.mxu0 0
        %1209 = vmatpush2.bf16.xpose.msra.mxu0 0
        %1210 = vmatprep.subr.bf16.mxu0 0
        %1211 = vmatpush2.bf16.xpose.msra.mxu0 0
        %1212 = vmatprep.mubr.bf16.mxu0 0
        %1213 = vmatmul.mubr.bf16.gmra.mxu0 %v1175
        %v1214 = vpop.f32.mrf.mxu0
        %v1215 = vadd.f32 0.0, %v1214
        %v1216 = vpop.f32.mrf.mxu0
        %v1217 = vpop.f32.mrf.mxu0
        %v1218 = vadd.f32 0.0, %v1217
        %v1219 = vpop.f32.mrf.mxu0
        %1220 = vdwg.mxu0
        %v1223 = vunpack.c.l.b16 %v1054
        %v1224 = vunpack.c.l.b16 %v1055
        %v1225 = vpack.c.b16 %v1224, %v1223
        %v1227 = vsel %vm1069, %v1047, 0
        %v1230 = vsel %vm1069, %v1225, 0
        %1232 = vmatprep.subr.bf16.mxu0 0
        %1233 = vmatpush1.bf16.xpose.msra.mxu0 0
        %1234 = vmatprep.subr.bf16.mxu0 0
        %1235 = vmatpush1.bf16.xpose.msra.mxu0 0
        %1236 = vmatprep.subr.bf16.mxu0 0
        %1237 = vmatpush1.bf16.xpose.msra.mxu0 0
        %1238 = vmatprep.subr.bf16.mxu0 0
        %1239 = vmatpush1.bf16.xpose.msra.mxu0 0
        %1240 = vmatprep.subr.bf16.mxu0 0
        %1241 = vmatpush1.bf16.xpose.msra.mxu0 0
        %1242 = vmatprep.subr.bf16.mxu0 0
        %1243 = vmatpush1.bf16.xpose.msra.mxu0 0
        %1244 = vmatprep.subr.bf16.mxu0 0
        %1245 = vmatpush1.bf16.xpose.msra.mxu0 0
        %1246 = vmatprep.subr.bf16.mxu0 0
        %1247 = vmatpush1.bf16.xpose.msra.mxu0 %v1230
        %1248 = vmatprep.subr.bf16.mxu0 0
        %1249 = vmatpush2.bf16.xpose.msra.mxu0 0
        %1250 = vmatprep.subr.bf16.mxu0 0
        %1251 = vmatpush2.bf16.xpose.msra.mxu0 0
        %1252 = vmatprep.subr.bf16.mxu0 0
        %1253 = vmatpush2.bf16.xpose.msra.mxu0 0
        %1254 = vmatprep.subr.bf16.mxu0 0
        %1255 = vmatpush2.bf16.xpose.msra.mxu0 0
        %1256 = vmatprep.subr.bf16.mxu0 0
        %1257 = vmatpush2.bf16.xpose.msra.mxu0 0
        %1258 = vmatprep.subr.bf16.mxu0 0
        %1259 = vmatpush2.bf16.xpose.msra.mxu0 0
        %1260 = vmatprep.subr.bf16.mxu0 0
        %1261 = vmatpush2.bf16.xpose.msra.mxu0 0
        %1262 = vmatprep.subr.bf16.mxu0 0
        %1263 = vmatpush2.bf16.xpose.msra.mxu0 0
        %1264 = vmatprep.mubr.bf16.mxu0 0
        %1265 = vmatmul.mubr.bf16.gmra.mxu0 %v1227
        %v1266 = vpop.f32.mrf.mxu0
        %v1267 = vadd.f32 0.0, %v1266
        %v1268 = vpop.f32.mrf.mxu0
        %v1269 = vpop.f32.mrf.mxu0
        %v1270 = vadd.f32 0.0, %v1269
        %v1271 = vpop.f32.mrf.mxu0
        %1272 = vdwg.mxu0
        %s1273 = smul.u32 %s44, 16
        %v1274 = vlaneseq
        %v1275 = vshrl.u32 %v1274, 7
        %v1276 = vadd.s32 %v1275, 8
        %v1277 = vstv %s1273
        %v1278 = vadd.s32 %v1275, %v1277
        %v1279 = vadd.s32 %v1276, %v1277
        %v1280 = vlaneseq
        %v1281 = vand.u32 %v1280, 127
        %vm1282 = vcmp.le.s32.totalorder %v1281, %v1278
        %vm1283 = vcmp.le.s32.totalorder %v1281, %v1279
        %v1284 = vsel %vm1282, 1, 0
        %v1285 = vsel %vm1283, 1, 0
        %vm1286 = vcmp.eq.s32.totalorder %v1284, 1
        %vm1287 = vcmp.eq.s32.totalorder %v1285, 1
        %v1288 = vsel %vm1286, %v1111, -1e+30
        %v1289 = vsel %vm1287, %v1114, -1e+30
        %v1290 = vsel %vm1286, %v1163, -1e+30
        %v1291 = vsel %vm1287, %v1166, -1e+30
        %v1292 = vsel %vm1286, %v1215, -1e+30
        %v1293 = vsel %vm1287, %v1218, -1e+30
        %v1294 = vsel %vm1286, %v1267, -1e+30
        %v1295 = vsel %vm1287, %v1270, -1e+30
        %vm1296 = vcmask 130048
        %v1297 = vsel %vm1296, %v1288, -inf
        %1298 = vmax.xlane.f32.xlu0 %v1297
        %v1299 = vpop.xlane.xlu0 %1298
        %v1300 = vsel %vm1296, %v1289, -inf
        %1301 = vmax.xlane.f32.xlu0 %v1300
        %v1302 = vpop.xlane.xlu0 %1301
        %v1303 = vsel %vm1296, %v1290, -inf
        %1304 = vmax.xlane.f32.xlu0 %v1303
        %v1305 = vpop.xlane.xlu0 %1304
        %v1306 = vsel %vm1296, %v1291, -inf
        %1307 = vmax.xlane.f32.xlu0 %v1306
        %v1308 = vpop.xlane.xlu0 %1307
        %v1309 = vsel %vm1296, %v1292, -inf
        %1310 = vmax.xlane.f32.xlu0 %v1309
        %v1311 = vpop.xlane.xlu0 %1310
        %v1312 = vsel %vm1296, %v1293, -inf
        %1313 = vmax.xlane.f32.xlu0 %v1312
        %v1314 = vpop.xlane.xlu0 %1313
        %v1315 = vsel %vm1296, %v1294, -inf
        %1316 = vmax.xlane.f32.xlu0 %v1315
        %v1317 = vpop.xlane.xlu0 %1316
        %v1318 = vsel %vm1296, %v1295, -inf
        %1319 = vmax.xlane.f32.xlu0 %v1318
        %v1320 = vpop.xlane.xlu0 %1319
        %v1321 = vsub.f32 %v1288, %v1299
        %v1322 = vsub.f32 %v1289, %v1302
        %v1323 = vsub.f32 %v1290, %v1305
        %v1324 = vsub.f32 %v1291, %v1308
        %v1325 = vsub.f32 %v1292, %v1311
        %v1326 = vsub.f32 %v1293, %v1314
        %v1327 = vsub.f32 %v1294, %v1317
        %v1328 = vsub.f32 %v1295, %v1320
        %v1329 = vmul.f32 %v1321, 1.442695
        %v1330 = vpow.pop %v1329
        %v1331 = vmul.f32 %v1322, 1.442695
        %v1332 = vpow.pop %v1331
        %v1333 = vmul.f32 %v1323, 1.442695
        %v1334 = vpow.pop %v1333
        %v1335 = vmul.f32 %v1324, 1.442695
        %v1336 = vpow.pop %v1335
        %v1337 = vmul.f32 %v1325, 1.442695
        %v1338 = vpow.pop %v1337
        %v1339 = vmul.f32 %v1326, 1.442695
        %v1340 = vpow.pop %v1339
        %v1341 = vmul.f32 %v1327, 1.442695
        %v1342 = vpow.pop %v1341
        %v1343 = vmul.f32 %v1328, 1.442695
        %v1344 = vpow.pop %v1343
        %v1345 = vsel %vm1296, %v1330, 0.0
        %1346 = vadd.xlane.f32.xlu0 %v1345
        %v1347 = vpop.xlane.xlu0 %1346
        %v1348 = vsel %vm1296, %v1332, 0.0
        %1349 = vadd.xlane.f32.xlu0 %v1348
        %v1350 = vpop.xlane.xlu0 %1349
        %v1351 = vsel %vm1296, %v1334, 0.0
        %1352 = vadd.xlane.f32.xlu0 %v1351
        %v1353 = vpop.xlane.xlu0 %1352
        %v1354 = vsel %vm1296, %v1336, 0.0
        %1355 = vadd.xlane.f32.xlu0 %v1354
        %v1356 = vpop.xlane.xlu0 %1355
        %v1357 = vsel %vm1296, %v1338, 0.0
        %1358 = vadd.xlane.f32.xlu0 %v1357
        %v1359 = vpop.xlane.xlu0 %1358
        %v1360 = vsel %vm1296, %v1340, 0.0
        %1361 = vadd.xlane.f32.xlu0 %v1360
        %v1362 = vpop.xlane.xlu0 %1361
        %v1363 = vsel %vm1296, %v1342, 0.0
        %1364 = vadd.xlane.f32.xlu0 %v1363
        %v1365 = vpop.xlane.xlu0 %1364
        %v1366 = vsel %vm1296, %v1344, 0.0
        %1367 = vadd.xlane.f32.xlu0 %v1366
        %v1368 = vpop.xlane.xlu0 %1367
        %v1369 = vrcp.pop %v1347
        %v1370 = vrcp.pop %v1350
        %v1371 = vrcp.pop %v1353
        %v1372 = vrcp.pop %v1356
        %v1373 = vrcp.pop %v1359
        %v1374 = vrcp.pop %v1362
        %v1375 = vrcp.pop %v1365
        %v1376 = vrcp.pop %v1368
        %v1377 = vmul.f32 %v1330, %v1369
        %v1378 = vmul.f32 %v1332, %v1370
        %v1379 = vmul.f32 %v1334, %v1371
        %v1380 = vmul.f32 %v1336, %v1372
        %v1381 = vmul.f32 %v1338, %v1373
        %v1382 = vmul.f32 %v1340, %v1374
        %v1383 = vmul.f32 %v1342, %v1375
        %v1384 = vmul.f32 %v1344, %v1376
        %v1385 = vpack.c.bf16 %v1378, %v1377
        %v1386 = vpack.c.bf16 %v1380, %v1379
        %v1387 = vpack.c.bf16 %v1382, %v1381
        %v1388 = vpack.c.bf16 %v1384, %v1383
        %v1391 = vunpack.c.l.b16 %v1056
        %v1392 = vunpack.c.l.b16 %v1057
        %v1393 = vpack.c.b16 %v1392, %v1391
        %v1396 = vsel %vm1296, %v1385, 0
        %1398 = vmatprep.subr.bf16.mxu0 0
        %1399 = vmatpush1.bf16.msra.mxu0 0
        %1400 = vmatprep.subr.bf16.mxu0 0
        %1401 = vmatpush1.bf16.msra.mxu0 0
        %1402 = vmatprep.subr.bf16.mxu0 0
        %1403 = vmatpush1.bf16.msra.mxu0 0
        %1404 = vmatprep.subr.bf16.mxu0 0
        %1405 = vmatpush1.bf16.msra.mxu0 0
        %1406 = vmatprep.subr.bf16.mxu0 0
        %1407 = vmatpush1.bf16.msra.mxu0 0
        %1408 = vmatprep.subr.bf16.mxu0 0
        %1409 = vmatpush1.bf16.msra.mxu0 0
        %1410 = vmatprep.subr.bf16.mxu0 0
        %1411 = vmatpush1.bf16.msra.mxu0 0
        %1412 = vmatprep.subr.bf16.mxu0 0
        %1413 = vmatpush1.bf16.msra.mxu0 %v1393
        %1414 = vmatprep.subr.bf16.mxu0 0
        %1415 = vmatpush2.bf16.msra.mxu0 0
        %1416 = vmatprep.subr.bf16.mxu0 0
        %1417 = vmatpush2.bf16.msra.mxu0 0
        %1418 = vmatprep.subr.bf16.mxu0 0
        %1419 = vmatpush2.bf16.msra.mxu0 0
        %1420 = vmatprep.subr.bf16.mxu0 0
        %1421 = vmatpush2.bf16.msra.mxu0 0
        %1422 = vmatprep.subr.bf16.mxu0 0
        %1423 = vmatpush2.bf16.msra.mxu0 0
        %1424 = vmatprep.subr.bf16.mxu0 0
        %1425 = vmatpush2.bf16.msra.mxu0 0
        %1426 = vmatprep.subr.bf16.mxu0 0
        %1427 = vmatpush2.bf16.msra.mxu0 0
        %1428 = vmatprep.subr.bf16.mxu0 0
        %1429 = vmatpush2.bf16.msra.mxu0 0
        %1430 = vmatprep.mubr.bf16.mxu0 0
        %1431 = vmatmul.mubr.bf16.gmra.mxu0 %v1396
        %v1432 = vpop.f32.mrf.mxu0
        %v1433 = vadd.f32 0.0, %v1432
        %v1434 = vpop.f32.mrf.mxu0
        %v1435 = vpop.f32.mrf.mxu0
        %v1436 = vadd.f32 0.0, %v1435
        %v1437 = vpop.f32.mrf.mxu0
        %1438 = vdwg.mxu0
        %v1441 = vunpack.c.l.b16 %v1058
        %v1442 = vunpack.c.l.b16 %v1059
        %v1443 = vpack.c.b16 %v1442, %v1441
        %v1446 = vsel %vm1296, %v1386, 0
        %1448 = vmatprep.subr.bf16.mxu0 0
        %1449 = vmatpush1.bf16.msra.mxu0 0
        %1450 = vmatprep.subr.bf16.mxu0 0
        %1451 = vmatpush1.bf16.msra.mxu0 0
        %1452 = vmatprep.subr.bf16.mxu0 0
        %1453 = vmatpush1.bf16.msra.mxu0 0
        %1454 = vmatprep.subr.bf16.mxu0 0
        %1455 = vmatpush1.bf16.msra.mxu0 0
        %1456 = vmatprep.subr.bf16.mxu0 0
        %1457 = vmatpush1.bf16.msra.mxu0 0
        %1458 = vmatprep.subr.bf16.mxu0 0
        %1459 = vmatpush1.bf16.msra.mxu0 0
        %1460 = vmatprep.subr.bf16.mxu0 0
        %1461 = vmatpush1.bf16.msra.mxu0 0
        %1462 = vmatprep.subr.bf16.mxu0 0
        %1463 = vmatpush1.bf16.msra.mxu0 %v1443
        %1464 = vmatprep.subr.bf16.mxu0 0
        %1465 = vmatpush2.bf16.msra.mxu0 0
        %1466 = vmatprep.subr.bf16.mxu0 0
        %1467 = vmatpush2.bf16.msra.mxu0 0
        %1468 = vmatprep.subr.bf16.mxu0 0
        %1469 = vmatpush2.bf16.msra.mxu0 0
        %1470 = vmatprep.subr.bf16.mxu0 0
        %1471 = vmatpush2.bf16.msra.mxu0 0
        %1472 = vmatprep.subr.bf16.mxu0 0
        %1473 = vmatpush2.bf16.msra.mxu0 0
        %1474 = vmatprep.subr.bf16.mxu0 0
        %1475 = vmatpush2.bf16.msra.mxu0 0
        %1476 = vmatprep.subr.bf16.mxu0 0
        %1477 = vmatpush2.bf16.msra.mxu0 0
        %1478 = vmatprep.subr.bf16.mxu0 0
        %1479 = vmatpush2.bf16.msra.mxu0 0
        %1480 = vmatprep.mubr.bf16.mxu0 0
        %1481 = vmatmul.mubr.bf16.gmra.mxu0 %v1446
        %v1482 = vpop.f32.mrf.mxu0
        %v1483 = vadd.f32 0.0, %v1482
        %v1484 = vpop.f32.mrf.mxu0
        %v1485 = vpop.f32.mrf.mxu0
        %v1486 = vadd.f32 0.0, %v1485
        %v1487 = vpop.f32.mrf.mxu0
        %1488 = vdwg.mxu0
        %v1491 = vunpack.c.l.b16 %v1060
        %v1492 = vunpack.c.l.b16 %v1061
        %v1493 = vpack.c.b16 %v1492, %v1491
        %v1496 = vsel %vm1296, %v1387, 0
        %1498 = vmatprep.subr.bf16.mxu0 0
        %1499 = vmatpush1.bf16.msra.mxu0 0
        %1500 = vmatprep.subr.bf16.mxu0 0
        %1501 = vmatpush1.bf16.msra.mxu0 0
        %1502 = vmatprep.subr.bf16.mxu0 0
        %1503 = vmatpush1.bf16.msra.mxu0 0
        %1504 = vmatprep.subr.bf16.mxu0 0
        %1505 = vmatpush1.bf16.msra.mxu0 0
        %1506 = vmatprep.subr.bf16.mxu0 0
        %1507 = vmatpush1.bf16.msra.mxu0 0
        %1508 = vmatprep.subr.bf16.mxu0 0
        %1509 = vmatpush1.bf16.msra.mxu0 0
        %1510 = vmatprep.subr.bf16.mxu0 0
        %1511 = vmatpush1.bf16.msra.mxu0 0
        %1512 = vmatprep.subr.bf16.mxu0 0
        %1513 = vmatpush1.bf16.msra.mxu0 %v1493
        %1514 = vmatprep.subr.bf16.mxu0 0
        %1515 = vmatpush2.bf16.msra.mxu0 0
        %1516 = vmatprep.subr.bf16.mxu0 0
        %1517 = vmatpush2.bf16.msra.mxu0 0
        %1518 = vmatprep.subr.bf16.mxu0 0
        %1519 = vmatpush2.bf16.msra.mxu0 0
        %1520 = vmatprep.subr.bf16.mxu0 0
        %1521 = vmatpush2.bf16.msra.mxu0 0
        %1522 = vmatprep.subr.bf16.mxu0 0
        %1523 = vmatpush2.bf16.msra.mxu0 0
        %1524 = vmatprep.subr.bf16.mxu0 0
        %1525 = vmatpush2.bf16.msra.mxu0 0
        %1526 = vmatprep.subr.bf16.mxu0 0
        %1527 = vmatpush2.bf16.msra.mxu0 0
        %1528 = vmatprep.subr.bf16.mxu0 0
        %1529 = vmatpush2.bf16.msra.mxu0 0
        %1530 = vmatprep.mubr.bf16.mxu0 0
        %1531 = vmatmul.mubr.bf16.gmra.mxu0 %v1496
        %v1532 = vpop.f32.mrf.mxu0
        %v1533 = vadd.f32 0.0, %v1532
        %v1534 = vpop.f32.mrf.mxu0
        %v1535 = vpop.f32.mrf.mxu0
        %v1536 = vadd.f32 0.0, %v1535
        %v1537 = vpop.f32.mrf.mxu0
        %1538 = vdwg.mxu0
        %v1541 = vunpack.c.l.b16 %v1062
        %v1542 = vunpack.c.l.b16 %v1063
        %v1543 = vpack.c.b16 %v1542, %v1541
        %v1546 = vsel %vm1296, %v1388, 0
        %1548 = vmatprep.subr.bf16.mxu0 0
        %1549 = vmatpush1.bf16.msra.mxu0 0
        %1550 = vmatprep.subr.bf16.mxu0 0
        %1551 = vmatpush1.bf16.msra.mxu0 0
        %1552 = vmatprep.subr.bf16.mxu0 0
        %1553 = vmatpush1.bf16.msra.mxu0 0
        %1554 = vmatprep.subr.bf16.mxu0 0
        %1555 = vmatpush1.bf16.msra.mxu0 0
        %1556 = vmatprep.subr.bf16.mxu0 0
        %1557 = vmatpush1.bf16.msra.mxu0 0
        %1558 = vmatprep.subr.bf16.mxu0 0
        %1559 = vmatpush1.bf16.msra.mxu0 0
        %1560 = vmatprep.subr.bf16.mxu0 0
        %1561 = vmatpush1.bf16.msra.mxu0 0
        %1562 = vmatprep.subr.bf16.mxu0 0
        %1563 = vmatpush1.bf16.msra.mxu0 %v1543
        %1564 = vmatprep.subr.bf16.mxu0 0
        %1565 = vmatpush2.bf16.msra.mxu0 0
        %1566 = vmatprep.subr.bf16.mxu0 0
        %1567 = vmatpush2.bf16.msra.mxu0 0
        %1568 = vmatprep.subr.bf16.mxu0 0
        %1569 = vmatpush2.bf16.msra.mxu0 0
        %1570 = vmatprep.subr.bf16.mxu0 0
        %1571 = vmatpush2.bf16.msra.mxu0 0
        %1572 = vmatprep.subr.bf16.mxu0 0
        %1573 = vmatpush2.bf16.msra.mxu0 0
        %1574 = vmatprep.subr.bf16.mxu0 0
        %1575 = vmatpush2.bf16.msra.mxu0 0
        %1576 = vmatprep.subr.bf16.mxu0 0
        %1577 = vmatpush2.bf16.msra.mxu0 0
        %1578 = vmatprep.subr.bf16.mxu0 0
        %1579 = vmatpush2.bf16.msra.mxu0 0
        %1580 = vmatprep.mubr.bf16.mxu0 0
        %1581 = vmatmul.mubr.bf16.gmra.mxu0 %v1546
        %v1582 = vpop.f32.mrf.mxu0
        %v1583 = vadd.f32 0.0, %v1582
        %v1584 = vpop.f32.mrf.mxu0
        %v1585 = vpop.f32.mrf.mxu0
        %v1586 = vadd.f32 0.0, %v1585
        %v1587 = vpop.f32.mrf.mxu0
        %1588 = vdwg.mxu0
        %1591 = vrot.lane.b32.xlu0 %v1483, 32
        %v1592 = vpop.permute.xlu0 %1591
        %1593 = vrot.lane.b32.xlu0 %v1486, 32
        %v1594 = vpop.permute.xlu0 %1593
        %1599 = vrot.lane.b32.xlu0 %v1533, 64
        %v1600 = vpop.permute.xlu0 %1599
        %1601 = vrot.lane.b32.xlu0 %v1536, 64
        %v1602 = vpop.permute.xlu0 %1601
        %1607 = vrot.lane.b32.xlu0 %v1583, 96
        %v1608 = vpop.permute.xlu0 %1607
        %1609 = vrot.lane.b32.xlu0 %v1586, 96
        %v1610 = vpop.permute.xlu0 %1609
        %v1613 = vsel %vm1069, %v1433, %v1592
        %v1614 = vsel %vm1069, %v1436, %v1594
        %vm1615 = vcmask 523264
        %v1616 = vsel %vm1615, %v1613, %v1600
        %v1617 = vsel %vm1615, %v1614, %v1602
        %vm1618 = vcmask 785408
        %v1619 = vsel %vm1618, %v1616, %v1608
        %v1620 = vsel %vm1618, %v1617, %v1610
        %v1621 = vpack.c.bf16 %v1620, %v1619
        %v1622 = vld [vmem:[#allocation12] sm:$0xf]
        %v1623 = vld [vmem:[#allocation12 + $0x4] sm:$0xf]
        %v1624 = vld [vmem:[#allocation12 + $0x8] sm:$0xf]
        %v1625 = vld [vmem:[#allocation12 + $0xc] sm:$0xf]
        %v1626 = vld [vmem:[#allocation12 + $0x10] sm:$0xf]
        %v1627 = vld [vmem:[#allocation12 + $0x14] sm:$0xf]
        %v1628 = vld [vmem:[#allocation12 + $0x18] sm:$0xf]
        %v1629 = vld [vmem:[#allocation12 + $0x1c] sm:$0xf]
        %v1630 = vld [vmem:[#allocation12 + $0x20] sm:$0xf]
        %v1631 = vld [vmem:[#allocation12 + $0x24] sm:$0xf]
        %v1632 = vld [vmem:[#allocation12 + $0x28] sm:$0xf]
        %v1633 = vld [vmem:[#allocation12 + $0x2c] sm:$0xf]
        %v1634 = vld [vmem:[#allocation12 + $0x30] sm:$0xf]
        %v1635 = vld [vmem:[#allocation12 + $0x34] sm:$0xf]
        %v1636 = vld [vmem:[#allocation12 + $0x38] sm:$0xf]
        %v1637 = vld [vmem:[#allocation12 + $0x3c] sm:$0xf]
        %v1638 = vld [vmem:[%s7] sm:$0x1]
        %v1640 = vlaneseq
        %v1641 = vshrl.u32 %v1640, 7
        %v1642 = vsub.s32 0, %v1641
        %v1643 = vrot.slane %v1638, %v1642
        %v1661 = vunpack.c.l.b16 %v1622
        %v1662 = vunpack.c.l.b16 %v1623
        %v1663 = vunpack.c.l.b16 %v1624
        %v1664 = vunpack.c.l.b16 %v1625
        %v1665 = vunpack.c.l.b16 %v1626
        %v1666 = vunpack.c.l.b16 %v1627
        %v1667 = vunpack.c.l.b16 %v1628
        %v1668 = vunpack.c.l.b16 %v1629
        %v1669 = vunpack.c.l.b16 %v1630
        %v1670 = vunpack.c.l.b16 %v1631
        %v1671 = vunpack.c.l.b16 %v1632
        %v1672 = vunpack.c.l.b16 %v1633
        %v1673 = vunpack.c.l.b16 %v1634
        %v1674 = vunpack.c.l.b16 %v1635
        %v1675 = vunpack.c.l.b16 %v1636
        %v1676 = vunpack.c.l.b16 %v1637
        %v1677 = vpack.c.b16 %v1662, %v1661
        %v1678 = vpack.c.b16 %v1664, %v1663
        %v1679 = vpack.c.b16 %v1666, %v1665
        %v1680 = vpack.c.b16 %v1668, %v1667
        %v1681 = vpack.c.b16 %v1670, %v1669
        %v1682 = vpack.c.b16 %v1672, %v1671
        %v1683 = vpack.c.b16 %v1674, %v1673
        %v1684 = vpack.c.b16 %v1676, %v1675
        %1693 = vmatprep.subr.bf16.mxu0 0
        %1694 = vmatpush1.bf16.msra.mxu0 %v1684
        %1695 = vmatprep.subr.bf16.mxu0 0
        %1696 = vmatpush1.bf16.msra.mxu0 %v1683
        %1697 = vmatprep.subr.bf16.mxu0 0
        %1698 = vmatpush1.bf16.msra.mxu0 %v1682
        %1699 = vmatprep.subr.bf16.mxu0 0
        %1700 = vmatpush1.bf16.msra.mxu0 %v1681
        %1701 = vmatprep.subr.bf16.mxu0 0
        %1702 = vmatpush1.bf16.msra.mxu0 %v1680
        %1703 = vmatprep.subr.bf16.mxu0 0
        %1704 = vmatpush1.bf16.msra.mxu0 %v1679
        %1705 = vmatprep.subr.bf16.mxu0 0
        %1706 = vmatpush1.bf16.msra.mxu0 %v1678
        %1707 = vmatprep.subr.bf16.mxu0 0
        %1708 = vmatpush1.bf16.msra.mxu0 %v1677
        %1709 = vmatprep.subr.bf16.mxu0 0
        %1710 = vmatpush2.bf16.msra.mxu0 0
        %1711 = vmatprep.subr.bf16.mxu0 0
        %1712 = vmatpush2.bf16.msra.mxu0 0
        %1713 = vmatprep.subr.bf16.mxu0 0
        %1714 = vmatpush2.bf16.msra.mxu0 0
        %1715 = vmatprep.subr.bf16.mxu0 0
        %1716 = vmatpush2.bf16.msra.mxu0 0
        %1717 = vmatprep.subr.bf16.mxu0 0
        %1718 = vmatpush2.bf16.msra.mxu0 0
        %1719 = vmatprep.subr.bf16.mxu0 0
        %1720 = vmatpush2.bf16.msra.mxu0 0
        %1721 = vmatprep.subr.bf16.mxu0 0
        %1722 = vmatpush2.bf16.msra.mxu0 0
        %1723 = vmatprep.subr.bf16.mxu0 0
        %1724 = vmatpush2.bf16.msra.mxu0 0
        %1725 = vmatprep.mubr.bf16.mxu0 0
        %1726 = vmatmul.mubr.bf16.gmra.mxu0 %v1621
        %v1727 = vpop.f32.mrf.mxu0
        %v1728 = vadd.f32 %v1643, %v1727
        %v1729 = vpop.f32.mrf.mxu0
        %v1730 = vpop.f32.mrf.mxu0
        %v1731 = vadd.f32 %v1643, %v1730
        %v1732 = vpop.f32.mrf.mxu0
        %1733 = vdwg.mxu0
        %v1734 = vadd.f32 %v925, %v1728
        %v1735 = vadd.f32 %v926, %v1731
        %v1736 = vld [vmem:[%s8] sm:$0x1]
        %v1737 = vld [vmem:[%s9] sm:$0x1]
        %1738 = vadd.xlane.f32.xlu0 %v1734
        %v1739 = vpop.xlane.xlu0 %1738
        %1740 = vadd.xlane.f32.xlu0 %v1735
        %v1741 = vpop.xlane.xlu0 %1740
        %v1742 = vrcp.pop 128.0
        %v1743 = vmul.f32 %v1739, %v1742
        %v1744 = vmul.f32 %v1741, %v1742
        %v1745 = vmul.f32 %v1734, %v1734
        %v1746 = vmul.f32 %v1735, %v1735
        %1747 = vadd.xlane.f32.xlu0 %v1745
        %v1748 = vpop.xlane.xlu0 %1747
        %1749 = vadd.xlane.f32.xlu0 %v1746
        %v1750 = vpop.xlane.xlu0 %1749
        %v1751 = vmul.f32 %v1748, %v1742
        %v1752 = vmul.f32 %v1750, %v1742
        %v1753 = vmul.f32 %v1743, %v1743
        %v1754 = vmul.f32 %v1744, %v1744
        %v1755 = vsub.f32 %v1751, %v1753
        %v1756 = vsub.f32 %v1752, %v1754
        %v1757 = vsub.f32 %v1734, %v1743
        %v1758 = vsub.f32 %v1735, %v1744
        %v1759 = vadd.f32 %v1755, 1e-05
        %v1760 = vadd.f32 %v1756, 1e-05
        %v1761 = vrsqrt.pop %v1759
        %v1762 = vrsqrt.pop %v1760
        %v1763 = vmul.f32 %v1757, %v1761
        %v1764 = vmul.f32 %v1758, %v1762
        %v1766 = vlaneseq
        %v1767 = vshrl.u32 %v1766, 7
        %v1768 = vsub.s32 0, %v1767
        %v1769 = vrot.slane %v1736, %v1768
        %v1771 = vmul.f32 %v1763, %v1769
        %v1772 = vmul.f32 %v1764, %v1769
        %v1774 = vlaneseq
        %v1775 = vshrl.u32 %v1774, 7
        %v1776 = vsub.s32 0, %v1775
        %v1777 = vrot.slane %v1737, %v1776
        %v1779 = vadd.f32 %v1771, %v1777
        %v1780 = vadd.f32 %v1772, %v1777
        %v1781 = vpack.c.bf16 %v1780, %v1779
        %v1782 = vld [vmem:[#allocation15] sm:$0xff]
        %v1783 = vld [vmem:[#allocation15 + $0x8] sm:$0xff]
        %v1784 = vld [vmem:[#allocation15 + $0x10] sm:$0xff]
        %v1785 = vld [vmem:[#allocation15 + $0x18] sm:$0xff]
        %v1786 = vld [vmem:[#allocation15 + $0x20] sm:$0xff]
        %v1787 = vld [vmem:[#allocation15 + $0x28] sm:$0xff]
        %v1788 = vld [vmem:[#allocation15 + $0x30] sm:$0xff]
        %v1789 = vld [vmem:[#allocation15 + $0x38] sm:$0xff]
        %v1790 = vld [vmem:[#allocation15 + $0x40] sm:$0xff]
        %v1791 = vld [vmem:[#allocation15 + $0x48] sm:$0xff]
        %v1792 = vld [vmem:[#allocation15 + $0x50] sm:$0xff]
        %v1793 = vld [vmem:[#allocation15 + $0x58] sm:$0xff]
        %v1794 = vld [vmem:[#allocation15 + $0x60] sm:$0xff]
        %v1795 = vld [vmem:[#allocation15 + $0x68] sm:$0xff]
        %v1796 = vld [vmem:[#allocation15 + $0x70] sm:$0xff]
        %v1797 = vld [vmem:[#allocation15 + $0x78] sm:$0xff]
        %v1798 = vld [vmem:[#allocation15 + $0x80] sm:$0xff]
        %v1799 = vld [vmem:[#allocation15 + $0x88] sm:$0xff]
        %v1800 = vld [vmem:[#allocation15 + $0x90] sm:$0xff]
        %v1801 = vld [vmem:[#allocation15 + $0x98] sm:$0xff]
        %v1802 = vld [vmem:[#allocation15 + $0xa0] sm:$0xff]
        %v1803 = vld [vmem:[#allocation15 + $0xa8] sm:$0xff]
        %v1804 = vld [vmem:[#allocation15 + $0xb0] sm:$0xff]
        %v1805 = vld [vmem:[#allocation15 + $0xb8] sm:$0xff]
        %v1806 = vld [vmem:[#allocation15 + $0xc0] sm:$0xff]
        %v1807 = vld [vmem:[#allocation15 + $0xc8] sm:$0xff]
        %v1808 = vld [vmem:[#allocation15 + $0xd0] sm:$0xff]
        %v1809 = vld [vmem:[#allocation15 + $0xd8] sm:$0xff]
        %v1810 = vld [vmem:[#allocation15 + $0xe0] sm:$0xff]
        %v1811 = vld [vmem:[#allocation15 + $0xe8] sm:$0xff]
        %v1812 = vld [vmem:[#allocation15 + $0xf0] sm:$0xff]
        %v1813 = vld [vmem:[#allocation15 + $0xf8] sm:$0xff]
        %v1814 = vld [vmem:[#allocation15 + $0x100] sm:$0xff]
        %v1815 = vld [vmem:[#allocation15 + $0x108] sm:$0xff]
        %v1816 = vld [vmem:[#allocation15 + $0x110] sm:$0xff]
        %v1817 = vld [vmem:[#allocation15 + $0x118] sm:$0xff]
        %v1818 = vld [vmem:[#allocation15 + $0x120] sm:$0xff]
        %v1819 = vld [vmem:[#allocation15 + $0x128] sm:$0xff]
        %v1820 = vld [vmem:[#allocation15 + $0x130] sm:$0xff]
        %v1821 = vld [vmem:[#allocation15 + $0x138] sm:$0xff]
        %v1822 = vld [vmem:[#allocation15 + $0x140] sm:$0xff]
        %v1823 = vld [vmem:[#allocation15 + $0x148] sm:$0xff]
        %v1824 = vld [vmem:[#allocation15 + $0x150] sm:$0xff]
        %v1825 = vld [vmem:[#allocation15 + $0x158] sm:$0xff]
        %v1826 = vld [vmem:[#allocation15 + $0x160] sm:$0xff]
        %v1827 = vld [vmem:[#allocation15 + $0x168] sm:$0xff]
        %v1828 = vld [vmem:[#allocation15 + $0x170] sm:$0xff]
        %v1829 = vld [vmem:[#allocation15 + $0x178] sm:$0xff]
        %v1830 = vld [vmem:[#allocation15 + $0x180] sm:$0xff]
        %v1831 = vld [vmem:[#allocation15 + $0x188] sm:$0xff]
        %v1832 = vld [vmem:[#allocation15 + $0x190] sm:$0xff]
        %v1833 = vld [vmem:[#allocation15 + $0x198] sm:$0xff]
        %v1834 = vld [vmem:[#allocation15 + $0x1a0] sm:$0xff]
        %v1835 = vld [vmem:[#allocation15 + $0x1a8] sm:$0xff]
        %v1836 = vld [vmem:[#allocation15 + $0x1b0] sm:$0xff]
        %v1837 = vld [vmem:[#allocation15 + $0x1b8] sm:$0xff]
        %v1838 = vld [vmem:[#allocation15 + $0x1c0] sm:$0xff]
        %v1839 = vld [vmem:[#allocation15 + $0x1c8] sm:$0xff]
        %v1840 = vld [vmem:[#allocation15 + $0x1d0] sm:$0xff]
        %v1841 = vld [vmem:[#allocation15 + $0x1d8] sm:$0xff]
        %v1842 = vld [vmem:[#allocation15 + $0x1e0] sm:$0xff]
        %v1843 = vld [vmem:[#allocation15 + $0x1e8] sm:$0xff]
        %v1844 = vld [vmem:[#allocation15 + $0x1f0] sm:$0xff]
        %v1845 = vld [vmem:[#allocation15 + $0x1f8] sm:$0xff]
        %v1846 = vld [vmem:[#allocation15 + $0x200] sm:$0xff]
        %v1847 = vld [vmem:[#allocation15 + $0x208] sm:$0xff]
        %v1848 = vld [vmem:[#allocation15 + $0x210] sm:$0xff]
        %v1849 = vld [vmem:[#allocation15 + $0x218] sm:$0xff]
        %v1850 = vld [vmem:[#allocation15 + $0x220] sm:$0xff]
        %v1851 = vld [vmem:[#allocation15 + $0x228] sm:$0xff]
        %v1852 = vld [vmem:[#allocation15 + $0x230] sm:$0xff]
        %v1853 = vld [vmem:[#allocation15 + $0x238] sm:$0xff]
        %v1854 = vld [vmem:[#allocation15 + $0x240] sm:$0xff]
        %v1855 = vld [vmem:[#allocation15 + $0x248] sm:$0xff]
        %v1856 = vld [vmem:[#allocation15 + $0x250] sm:$0xff]
        %v1857 = vld [vmem:[#allocation15 + $0x258] sm:$0xff]
        %v1858 = vld [vmem:[#allocation15 + $0x260] sm:$0xff]
        %v1859 = vld [vmem:[#allocation15 + $0x268] sm:$0xff]
        %v1860 = vld [vmem:[#allocation15 + $0x270] sm:$0xff]
        %v1861 = vld [vmem:[#allocation15 + $0x278] sm:$0xff]
        %v1862 = vld [vmem:[#allocation15 + $0x280] sm:$0xff]
        %v1863 = vld [vmem:[#allocation15 + $0x288] sm:$0xff]
        %v1864 = vld [vmem:[#allocation15 + $0x290] sm:$0xff]
        %v1865 = vld [vmem:[#allocation15 + $0x298] sm:$0xff]
        %v1866 = vld [vmem:[#allocation15 + $0x2a0] sm:$0xff]
        %v1867 = vld [vmem:[#allocation15 + $0x2a8] sm:$0xff]
        %v1868 = vld [vmem:[#allocation15 + $0x2b0] sm:$0xff]
        %v1869 = vld [vmem:[#allocation15 + $0x2b8] sm:$0xff]
        %v1870 = vld [vmem:[#allocation15 + $0x2c0] sm:$0xff]
        %v1871 = vld [vmem:[#allocation15 + $0x2c8] sm:$0xff]
        %v1872 = vld [vmem:[#allocation15 + $0x2d0] sm:$0xff]
        %v1873 = vld [vmem:[#allocation15 + $0x2d8] sm:$0xff]
        %v1874 = vld [vmem:[#allocation15 + $0x2e0] sm:$0xff]
        %v1875 = vld [vmem:[#allocation15 + $0x2e8] sm:$0xff]
        %v1876 = vld [vmem:[#allocation15 + $0x2f0] sm:$0xff]
        %v1877 = vld [vmem:[#allocation15 + $0x2f8] sm:$0xff]
        %v1878 = vld [vmem:[#allocation15 + $0x300] sm:$0xff]
        %v1879 = vld [vmem:[#allocation15 + $0x308] sm:$0xff]
        %v1880 = vld [vmem:[#allocation15 + $0x310] sm:$0xff]
        %v1881 = vld [vmem:[#allocation15 + $0x318] sm:$0xff]
        %v1882 = vld [vmem:[#allocation15 + $0x320] sm:$0xff]
        %v1883 = vld [vmem:[#allocation15 + $0x328] sm:$0xff]
        %v1884 = vld [vmem:[#allocation15 + $0x330] sm:$0xff]
        %v1885 = vld [vmem:[#allocation15 + $0x338] sm:$0xff]
        %v1886 = vld [vmem:[#allocation15 + $0x340] sm:$0xff]
        %v1887 = vld [vmem:[#allocation15 + $0x348] sm:$0xff]
        %v1888 = vld [vmem:[#allocation15 + $0x350] sm:$0xff]
        %v1889 = vld [vmem:[#allocation15 + $0x358] sm:$0xff]
        %v1890 = vld [vmem:[#allocation15 + $0x360] sm:$0xff]
        %v1891 = vld [vmem:[#allocation15 + $0x368] sm:$0xff]
        %v1892 = vld [vmem:[#allocation15 + $0x370] sm:$0xff]
        %v1893 = vld [vmem:[#allocation15 + $0x378] sm:$0xff]
        %v1894 = vld [vmem:[#allocation15 + $0x380] sm:$0xff]
        %v1895 = vld [vmem:[#allocation15 + $0x388] sm:$0xff]
        %v1896 = vld [vmem:[#allocation15 + $0x390] sm:$0xff]
        %v1897 = vld [vmem:[#allocation15 + $0x398] sm:$0xff]
        %v1898 = vld [vmem:[#allocation15 + $0x3a0] sm:$0xff]
        %v1899 = vld [vmem:[#allocation15 + $0x3a8] sm:$0xff]
        %v1900 = vld [vmem:[#allocation15 + $0x3b0] sm:$0xff]
        %v1901 = vld [vmem:[#allocation15 + $0x3b8] sm:$0xff]
        %v1902 = vld [vmem:[#allocation15 + $0x3c0] sm:$0xff]
        %v1903 = vld [vmem:[#allocation15 + $0x3c8] sm:$0xff]
        %v1904 = vld [vmem:[#allocation15 + $0x3d0] sm:$0xff]
        %v1905 = vld [vmem:[#allocation15 + $0x3d8] sm:$0xff]
        %v1906 = vld [vmem:[#allocation15 + $0x3e0] sm:$0xff]
        %v1907 = vld [vmem:[#allocation15 + $0x3e8] sm:$0xff]
        %v1908 = vld [vmem:[#allocation15 + $0x3f0] sm:$0xff]
        %v1909 = vld [vmem:[#allocation15 + $0x3f8] sm:$0xff]
        %v1910 = vld [vmem:[%s13] sm:$0xff]
        %v1911 = vld [vmem:[%s13 + $0x8] sm:$0xff]
        %v1914 = vlaneseq
        %v1915 = vshrl.u32 %v1914, 7
        %v1916 = vsub.s32 0, %v1915
        %v1917 = vrot.slane %v1910, %v1916
        %v1918 = vlaneseq
        %v1919 = vshrl.u32 %v1918, 7
        %v1920 = vsub.s32 1, %v1919
        %v1921 = vrot.slane %v1910, %v1920
        %v1922 = vlaneseq
        %v1923 = vshrl.u32 %v1922, 7
        %v1924 = vsub.s32 2, %v1923
        %v1925 = vrot.slane %v1910, %v1924
        %v1926 = vlaneseq
        %v1927 = vshrl.u32 %v1926, 7
        %v1928 = vsub.s32 3, %v1927
        %v1929 = vrot.slane %v1910, %v1928
        %v1930 = vlaneseq
        %v1931 = vshrl.u32 %v1930, 7
        %v1932 = vsub.s32 4, %v1931
        %v1933 = vrot.slane %v1910, %v1932
        %v1934 = vlaneseq
        %v1935 = vshrl.u32 %v1934, 7
        %v1936 = vsub.s32 5, %v1935
        %v1937 = vrot.slane %v1910, %v1936
        %v1938 = vlaneseq
        %v1939 = vshrl.u32 %v1938, 7
        %v1940 = vsub.s32 6, %v1939
        %v1941 = vrot.slane %v1910, %v1940
        %v1942 = vlaneseq
        %v1943 = vshrl.u32 %v1942, 7
        %v1944 = vsub.s32 7, %v1943
        %v1945 = vrot.slane %v1910, %v1944
        %v1946 = vlaneseq
        %v1947 = vshrl.u32 %v1946, 7
        %v1948 = vsub.s32 0, %v1947
        %v1949 = vrot.slane %v1911, %v1948
        %v1950 = vlaneseq
        %v1951 = vshrl.u32 %v1950, 7
        %v1952 = vsub.s32 1, %v1951
        %v1953 = vrot.slane %v1911, %v1952
        %v1954 = vlaneseq
        %v1955 = vshrl.u32 %v1954, 7
        %v1956 = vsub.s32 2, %v1955
        %v1957 = vrot.slane %v1911, %v1956
        %v1958 = vlaneseq
        %v1959 = vshrl.u32 %v1958, 7
        %v1960 = vsub.s32 3, %v1959
        %v1961 = vrot.slane %v1911, %v1960
        %v1962 = vlaneseq
        %v1963 = vshrl.u32 %v1962, 7
        %v1964 = vsub.s32 4, %v1963
        %v1965 = vrot.slane %v1911, %v1964
        %v1966 = vlaneseq
        %v1967 = vshrl.u32 %v1966, 7
        %v1968 = vsub.s32 5, %v1967
        %v1969 = vrot.slane %v1911, %v1968
        %v1970 = vlaneseq
        %v1971 = vshrl.u32 %v1970, 7
        %v1972 = vsub.s32 6, %v1971
        %v1973 = vrot.slane %v1911, %v1972
        %v1974 = vlaneseq
        %v1975 = vshrl.u32 %v1974, 7
        %v1976 = vsub.s32 7, %v1975
        %v1977 = vrot.slane %v1911, %v1976
        %v2122 = vunpack.c.l.b16 %v1782
        %v2123 = vunpack.c.h.b16 %v1782
        %v2124 = vunpack.c.l.b16 %v1783
        %v2125 = vunpack.c.h.b16 %v1783
        %v2126 = vunpack.c.l.b16 %v1784
        %v2127 = vunpack.c.h.b16 %v1784
        %v2128 = vunpack.c.l.b16 %v1785
        %v2129 = vunpack.c.h.b16 %v1785
        %v2130 = vunpack.c.l.b16 %v1786
        %v2131 = vunpack.c.h.b16 %v1786
        %v2132 = vunpack.c.l.b16 %v1787
        %v2133 = vunpack.c.h.b16 %v1787
        %v2134 = vunpack.c.l.b16 %v1788
        %v2135 = vunpack.c.h.b16 %v1788
        %v2136 = vunpack.c.l.b16 %v1789
        %v2137 = vunpack.c.h.b16 %v1789
        %v2138 = vunpack.c.l.b16 %v1790
        %v2139 = vunpack.c.h.b16 %v1790
        %v2140 = vunpack.c.l.b16 %v1791
        %v2141 = vunpack.c.h.b16 %v1791
        %v2142 = vunpack.c.l.b16 %v1792
        %v2143 = vunpack.c.h.b16 %v1792
        %v2144 = vunpack.c.l.b16 %v1793
        %v2145 = vunpack.c.h.b16 %v1793
        %v2146 = vunpack.c.l.b16 %v1794
        %v2147 = vunpack.c.h.b16 %v1794
        %v2148 = vunpack.c.l.b16 %v1795
        %v2149 = vunpack.c.h.b16 %v1795
        %v2150 = vunpack.c.l.b16 %v1796
        %v2151 = vunpack.c.h.b16 %v1796
        %v2152 = vunpack.c.l.b16 %v1797
        %v2153 = vunpack.c.h.b16 %v1797
        %v2154 = vunpack.c.l.b16 %v1798
        %v2155 = vunpack.c.h.b16 %v1798
        %v2156 = vunpack.c.l.b16 %v1799
        %v2157 = vunpack.c.h.b16 %v1799
        %v2158 = vunpack.c.l.b16 %v1800
        %v2159 = vunpack.c.h.b16 %v1800
        %v2160 = vunpack.c.l.b16 %v1801
        %v2161 = vunpack.c.h.b16 %v1801
        %v2162 = vunpack.c.l.b16 %v1802
        %v2163 = vunpack.c.h.b16 %v1802
        %v2164 = vunpack.c.l.b16 %v1803
        %v2165 = vunpack.c.h.b16 %v1803
        %v2166 = vunpack.c.l.b16 %v1804
        %v2167 = vunpack.c.h.b16 %v1804
        %v2168 = vunpack.c.l.b16 %v1805
        %v2169 = vunpack.c.h.b16 %v1805
        %v2170 = vunpack.c.l.b16 %v1806
        %v2171 = vunpack.c.h.b16 %v1806
        %v2172 = vunpack.c.l.b16 %v1807
        %v2173 = vunpack.c.h.b16 %v1807
        %v2174 = vunpack.c.l.b16 %v1808
        %v2175 = vunpack.c.h.b16 %v1808
        %v2176 = vunpack.c.l.b16 %v1809
        %v2177 = vunpack.c.h.b16 %v1809
        %v2178 = vunpack.c.l.b16 %v1810
        %v2179 = vunpack.c.h.b16 %v1810
        %v2180 = vunpack.c.l.b16 %v1811
        %v2181 = vunpack.c.h.b16 %v1811
        %v2182 = vunpack.c.l.b16 %v1812
        %v2183 = vunpack.c.h.b16 %v1812
        %v2184 = vunpack.c.l.b16 %v1813
        %v2185 = vunpack.c.h.b16 %v1813
        %v2186 = vunpack.c.l.b16 %v1814
        %v2187 = vunpack.c.h.b16 %v1814
        %v2188 = vunpack.c.l.b16 %v1815
        %v2189 = vunpack.c.h.b16 %v1815
        %v2190 = vunpack.c.l.b16 %v1816
        %v2191 = vunpack.c.h.b16 %v1816
        %v2192 = vunpack.c.l.b16 %v1817
        %v2193 = vunpack.c.h.b16 %v1817
        %v2194 = vunpack.c.l.b16 %v1818
        %v2195 = vunpack.c.h.b16 %v1818
        %v2196 = vunpack.c.l.b16 %v1819
        %v2197 = vunpack.c.h.b16 %v1819
        %v2198 = vunpack.c.l.b16 %v1820
        %v2199 = vunpack.c.h.b16 %v1820
        %v2200 = vunpack.c.l.b16 %v1821
        %v2201 = vunpack.c.h.b16 %v1821
        %v2202 = vunpack.c.l.b16 %v1822
        %v2203 = vunpack.c.h.b16 %v1822
        %v2204 = vunpack.c.l.b16 %v1823
        %v2205 = vunpack.c.h.b16 %v1823
        %v2206 = vunpack.c.l.b16 %v1824
        %v2207 = vunpack.c.h.b16 %v1824
        %v2208 = vunpack.c.l.b16 %v1825
        %v2209 = vunpack.c.h.b16 %v1825
        %v2210 = vunpack.c.l.b16 %v1826
        %v2211 = vunpack.c.h.b16 %v1826
        %v2212 = vunpack.c.l.b16 %v1827
        %v2213 = vunpack.c.h.b16 %v1827
        %v2214 = vunpack.c.l.b16 %v1828
        %v2215 = vunpack.c.h.b16 %v1828
        %v2216 = vunpack.c.l.b16 %v1829
        %v2217 = vunpack.c.h.b16 %v1829
        %v2218 = vunpack.c.l.b16 %v1830
        %v2219 = vunpack.c.h.b16 %v1830
        %v2220 = vunpack.c.l.b16 %v1831
        %v2221 = vunpack.c.h.b16 %v1831
        %v2222 = vunpack.c.l.b16 %v1832
        %v2223 = vunpack.c.h.b16 %v1832
        %v2224 = vunpack.c.l.b16 %v1833
        %v2225 = vunpack.c.h.b16 %v1833
        %v2226 = vunpack.c.l.b16 %v1834
        %v2227 = vunpack.c.h.b16 %v1834
        %v2228 = vunpack.c.l.b16 %v1835
        %v2229 = vunpack.c.h.b16 %v1835
        %v2230 = vunpack.c.l.b16 %v1836
        %v2231 = vunpack.c.h.b16 %v1836
        %v2232 = vunpack.c.l.b16 %v1837
        %v2233 = vunpack.c.h.b16 %v1837
        %v2234 = vunpack.c.l.b16 %v1838
        %v2235 = vunpack.c.h.b16 %v1838
        %v2236 = vunpack.c.l.b16 %v1839
        %v2237 = vunpack.c.h.b16 %v1839
        %v2238 = vunpack.c.l.b16 %v1840
        %v2239 = vunpack.c.h.b16 %v1840
        %v2240 = vunpack.c.l.b16 %v1841
        %v2241 = vunpack.c.h.b16 %v1841
        %v2242 = vunpack.c.l.b16 %v1842
        %v2243 = vunpack.c.h.b16 %v1842
        %v2244 = vunpack.c.l.b16 %v1843
        %v2245 = vunpack.c.h.b16 %v1843
        %v2246 = vunpack.c.l.b16 %v1844
        %v2247 = vunpack.c.h.b16 %v1844
        %v2248 = vunpack.c.l.b16 %v1845
        %v2249 = vunpack.c.h.b16 %v1845
        %v2250 = vunpack.c.l.b16 %v1846
        %v2251 = vunpack.c.h.b16 %v1846
        %v2252 = vunpack.c.l.b16 %v1847
        %v2253 = vunpack.c.h.b16 %v1847
        %v2254 = vunpack.c.l.b16 %v1848
        %v2255 = vunpack.c.h.b16 %v1848
        %v2256 = vunpack.c.l.b16 %v1849
        %v2257 = vunpack.c.h.b16 %v1849
        %v2258 = vunpack.c.l.b16 %v1850
        %v2259 = vunpack.c.h.b16 %v1850
        %v2260 = vunpack.c.l.b16 %v1851
        %v2261 = vunpack.c.h.b16 %v1851
        %v2262 = vunpack.c.l.b16 %v1852
        %v2263 = vunpack.c.h.b16 %v1852
        %v2264 = vunpack.c.l.b16 %v1853
        %v2265 = vunpack.c.h.b16 %v1853
        %v2266 = vunpack.c.l.b16 %v1854
        %v2267 = vunpack.c.h.b16 %v1854
        %v2268 = vunpack.c.l.b16 %v1855
        %v2269 = vunpack.c.h.b16 %v1855
        %v2270 = vunpack.c.l.b16 %v1856
        %v2271 = vunpack.c.h.b16 %v1856
        %v2272 = vunpack.c.l.b16 %v1857
        %v2273 = vunpack.c.h.b16 %v1857
        %v2274 = vunpack.c.l.b16 %v1858
        %v2275 = vunpack.c.h.b16 %v1858
        %v2276 = vunpack.c.l.b16 %v1859
        %v2277 = vunpack.c.h.b16 %v1859
        %v2278 = vunpack.c.l.b16 %v1860
        %v2279 = vunpack.c.h.b16 %v1860
        %v2280 = vunpack.c.l.b16 %v1861
        %v2281 = vunpack.c.h.b16 %v1861
        %v2282 = vunpack.c.l.b16 %v1862
        %v2283 = vunpack.c.h.b16 %v1862
        %v2284 = vunpack.c.l.b16 %v1863
        %v2285 = vunpack.c.h.b16 %v1863
        %v2286 = vunpack.c.l.b16 %v1864
        %v2287 = vunpack.c.h.b16 %v1864
        %v2288 = vunpack.c.l.b16 %v1865
        %v2289 = vunpack.c.h.b16 %v1865
        %v2290 = vunpack.c.l.b16 %v1866
        %v2291 = vunpack.c.h.b16 %v1866
        %v2292 = vunpack.c.l.b16 %v1867
        %v2293 = vunpack.c.h.b16 %v1867
        %v2294 = vunpack.c.l.b16 %v1868
        %v2295 = vunpack.c.h.b16 %v1868
        %v2296 = vunpack.c.l.b16 %v1869
        %v2297 = vunpack.c.h.b16 %v1869
        %v2298 = vunpack.c.l.b16 %v1870
        %v2299 = vunpack.c.h.b16 %v1870
        %v2300 = vunpack.c.l.b16 %v1871
        %v2301 = vunpack.c.h.b16 %v1871
        %v2302 = vunpack.c.l.b16 %v1872
        %v2303 = vunpack.c.h.b16 %v1872
        %v2304 = vunpack.c.l.b16 %v1873
        %v2305 = vunpack.c.h.b16 %v1873
        %v2306 = vunpack.c.l.b16 %v1874
        %v2307 = vunpack.c.h.b16 %v1874
        %v2308 = vunpack.c.l.b16 %v1875
        %v2309 = vunpack.c.h.b16 %v1875
        %v2310 = vunpack.c.l.b16 %v1876
        %v2311 = vunpack.c.h.b16 %v1876
        %v2312 = vunpack.c.l.b16 %v1877
        %v2313 = vunpack.c.h.b16 %v1877
        %v2314 = vunpack.c.l.b16 %v1878
        %v2315 = vunpack.c.h.b16 %v1878
        %v2316 = vunpack.c.l.b16 %v1879
        %v2317 = vunpack.c.h.b16 %v1879
        %v2318 = vunpack.c.l.b16 %v1880
        %v2319 = vunpack.c.h.b16 %v1880
        %v2320 = vunpack.c.l.b16 %v1881
        %v2321 = vunpack.c.h.b16 %v1881
        %v2322 = vunpack.c.l.b16 %v1882
        %v2323 = vunpack.c.h.b16 %v1882
        %v2324 = vunpack.c.l.b16 %v1883
        %v2325 = vunpack.c.h.b16 %v1883
        %v2326 = vunpack.c.l.b16 %v1884
        %v2327 = vunpack.c.h.b16 %v1884
        %v2328 = vunpack.c.l.b16 %v1885
        %v2329 = vunpack.c.h.b16 %v1885
        %v2330 = vunpack.c.l.b16 %v1886
        %v2331 = vunpack.c.h.b16 %v1886
        %v2332 = vunpack.c.l.b16 %v1887
        %v2333 = vunpack.c.h.b16 %v1887
        %v2334 = vunpack.c.l.b16 %v1888
        %v2335 = vunpack.c.h.b16 %v1888
        %v2336 = vunpack.c.l.b16 %v1889
        %v2337 = vunpack.c.h.b16 %v1889
        %v2338 = vunpack.c.l.b16 %v1890
        %v2339 = vunpack.c.h.b16 %v1890
        %v2340 = vunpack.c.l.b16 %v1891
        %v2341 = vunpack.c.h.b16 %v1891
        %v2342 = vunpack.c.l.b16 %v1892
        %v2343 = vunpack.c.h.b16 %v1892
        %v2344 = vunpack.c.l.b16 %v1893
        %v2345 = vunpack.c.h.b16 %v1893
        %v2346 = vunpack.c.l.b16 %v1894
        %v2347 = vunpack.c.h.b16 %v1894
        %v2348 = vunpack.c.l.b16 %v1895
        %v2349 = vunpack.c.h.b16 %v1895
        %v2350 = vunpack.c.l.b16 %v1896
        %v2351 = vunpack.c.h.b16 %v1896
        %v2352 = vunpack.c.l.b16 %v1897
        %v2353 = vunpack.c.h.b16 %v1897
        %v2354 = vunpack.c.l.b16 %v1898
        %v2355 = vunpack.c.h.b16 %v1898
        %v2356 = vunpack.c.l.b16 %v1899
        %v2357 = vunpack.c.h.b16 %v1899
        %v2358 = vunpack.c.l.b16 %v1900
        %v2359 = vunpack.c.h.b16 %v1900
        %v2360 = vunpack.c.l.b16 %v1901
        %v2361 = vunpack.c.h.b16 %v1901
        %v2362 = vunpack.c.l.b16 %v1902
        %v2363 = vunpack.c.h.b16 %v1902
        %v2364 = vunpack.c.l.b16 %v1903
        %v2365 = vunpack.c.h.b16 %v1903
        %v2366 = vunpack.c.l.b16 %v1904
        %v2367 = vunpack.c.h.b16 %v1904
        %v2368 = vunpack.c.l.b16 %v1905
        %v2369 = vunpack.c.h.b16 %v1905
        %v2370 = vunpack.c.l.b16 %v1906
        %v2371 = vunpack.c.h.b16 %v1906
        %v2372 = vunpack.c.l.b16 %v1907
        %v2373 = vunpack.c.h.b16 %v1907
        %v2374 = vunpack.c.l.b16 %v1908
        %v2375 = vunpack.c.h.b16 %v1908
        %v2376 = vunpack.c.l.b16 %v1909
        %v2377 = vunpack.c.h.b16 %v1909
        %v2378 = vpack.c.b16 %v2138, %v2122
        %v2379 = vpack.c.b16 %v2139, %v2123
        %v2380 = vpack.c.b16 %v2140, %v2124
        %v2381 = vpack.c.b16 %v2141, %v2125
        %v2382 = vpack.c.b16 %v2142, %v2126
        %v2383 = vpack.c.b16 %v2143, %v2127
        %v2384 = vpack.c.b16 %v2144, %v2128
        %v2385 = vpack.c.b16 %v2145, %v2129
        %v2386 = vpack.c.b16 %v2146, %v2130
        %v2387 = vpack.c.b16 %v2147, %v2131
        %v2388 = vpack.c.b16 %v2148, %v2132
        %v2389 = vpack.c.b16 %v2149, %v2133
        %v2390 = vpack.c.b16 %v2150, %v2134
        %v2391 = vpack.c.b16 %v2151, %v2135
        %v2392 = vpack.c.b16 %v2152, %v2136
        %v2393 = vpack.c.b16 %v2153, %v2137
        %v2394 = vpack.c.b16 %v2170, %v2154
        %v2395 = vpack.c.b16 %v2171, %v2155
        %v2396 = vpack.c.b16 %v2172, %v2156
        %v2397 = vpack.c.b16 %v2173, %v2157
        %v2398 = vpack.c.b16 %v2174, %v2158
        %v2399 = vpack.c.b16 %v2175, %v2159
        %v2400 = vpack.c.b16 %v2176, %v2160
        %v2401 = vpack.c.b16 %v2177, %v2161
        %v2402 = vpack.c.b16 %v2178, %v2162
        %v2403 = vpack.c.b16 %v2179, %v2163
        %v2404 = vpack.c.b16 %v2180, %v2164
        %v2405 = vpack.c.b16 %v2181, %v2165
        %v2406 = vpack.c.b16 %v2182, %v2166
        %v2407 = vpack.c.b16 %v2183, %v2167
        %v2408 = vpack.c.b16 %v2184, %v2168
        %v2409 = vpack.c.b16 %v2185, %v2169
        %v2410 = vpack.c.b16 %v2202, %v2186
        %v2411 = vpack.c.b16 %v2203, %v2187
        %v2412 = vpack.c.b16 %v2204, %v2188
        %v2413 = vpack.c.b16 %v2205, %v2189
        %v2414 = vpack.c.b16 %v2206, %v2190
        %v2415 = vpack.c.b16 %v2207, %v2191
        %v2416 = vpack.c.b16 %v2208, %v2192
        %v2417 = vpack.c.b16 %v2209, %v2193
        %v2418 = vpack.c.b16 %v2210, %v2194
        %v2419 = vpack.c.b16 %v2211, %v2195
        %v2420 = vpack.c.b16 %v2212, %v2196
        %v2421 = vpack.c.b16 %v2213, %v2197
        %v2422 = vpack.c.b16 %v2214, %v2198
        %v2423 = vpack.c.b16 %v2215, %v2199
        %v2424 = vpack.c.b16 %v2216, %v2200
        %v2425 = vpack.c.b16 %v2217, %v2201
        %v2426 = vpack.c.b16 %v2234, %v2218
        %v2427 = vpack.c.b16 %v2235, %v2219
        %v2428 = vpack.c.b16 %v2236, %v2220
        %v2429 = vpack.c.b16 %v2237, %v2221
        %v2430 = vpack.c.b16 %v2238, %v2222
        %v2431 = vpack.c.b16 %v2239, %v2223
        %v2432 = vpack.c.b16 %v2240, %v2224
        %v2433 = vpack.c.b16 %v2241, %v2225
        %v2434 = vpack.c.b16 %v2242, %v2226
        %v2435 = vpack.c.b16 %v2243, %v2227
        %v2436 = vpack.c.b16 %v2244, %v2228
        %v2437 = vpack.c.b16 %v2245, %v2229
        %v2438 = vpack.c.b16 %v2246, %v2230
        %v2439 = vpack.c.b16 %v2247, %v2231
        %v2440 = vpack.c.b16 %v2248, %v2232
        %v2441 = vpack.c.b16 %v2249, %v2233
        %v2442 = vpack.c.b16 %v2266, %v2250
        %v2443 = vpack.c.b16 %v2267, %v2251
        %v2444 = vpack.c.b16 %v2268, %v2252
        %v2445 = vpack.c.b16 %v2269, %v2253
        %v2446 = vpack.c.b16 %v2270, %v2254
        %v2447 = vpack.c.b16 %v2271, %v2255
        %v2448 = vpack.c.b16 %v2272, %v2256
        %v2449 = vpack.c.b16 %v2273, %v2257
        %v2450 = vpack.c.b16 %v2274, %v2258
        %v2451 = vpack.c.b16 %v2275, %v2259
        %v2452 = vpack.c.b16 %v2276, %v2260
        %v2453 = vpack.c.b16 %v2277, %v2261
        %v2454 = vpack.c.b16 %v2278, %v2262
        %v2455 = vpack.c.b16 %v2279, %v2263
        %v2456 = vpack.c.b16 %v2280, %v2264
        %v2457 = vpack.c.b16 %v2281, %v2265
        %v2458 = vpack.c.b16 %v2298, %v2282
        %v2459 = vpack.c.b16 %v2299, %v2283
        %v2460 = vpack.c.b16 %v2300, %v2284
        %v2461 = vpack.c.b16 %v2301, %v2285
        %v2462 = vpack.c.b16 %v2302, %v2286
        %v2463 = vpack.c.b16 %v2303, %v2287
        %v2464 = vpack.c.b16 %v2304, %v2288
        %v2465 = vpack.c.b16 %v2305, %v2289
        %v2466 = vpack.c.b16 %v2306, %v2290
        %v2467 = vpack.c.b16 %v2307, %v2291
        %v2468 = vpack.c.b16 %v2308, %v2292
        %v2469 = vpack.c.b16 %v2309, %v2293
        %v2470 = vpack.c.b16 %v2310, %v2294
        %v2471 = vpack.c.b16 %v2311, %v2295
        %v2472 = vpack.c.b16 %v2312, %v2296
        %v2473 = vpack.c.b16 %v2313, %v2297
        %v2474 = vpack.c.b16 %v2330, %v2314
        %v2475 = vpack.c.b16 %v2331, %v2315
        %v2476 = vpack.c.b16 %v2332, %v2316
        %v2477 = vpack.c.b16 %v2333, %v2317
        %v2478 = vpack.c.b16 %v2334, %v2318
        %v2479 = vpack.c.b16 %v2335, %v2319
        %v2480 = vpack.c.b16 %v2336, %v2320
        %v2481 = vpack.c.b16 %v2337, %v2321
        %v2482 = vpack.c.b16 %v2338, %v2322
        %v2483 = vpack.c.b16 %v2339, %v2323
        %v2484 = vpack.c.b16 %v2340, %v2324
        %v2485 = vpack.c.b16 %v2341, %v2325
        %v2486 = vpack.c.b16 %v2342, %v2326
        %v2487 = vpack.c.b16 %v2343, %v2327
        %v2488 = vpack.c.b16 %v2344, %v2328
        %v2489 = vpack.c.b16 %v2345, %v2329
        %v2490 = vpack.c.b16 %v2362, %v2346
        %v2491 = vpack.c.b16 %v2363, %v2347
        %v2492 = vpack.c.b16 %v2364, %v2348
        %v2493 = vpack.c.b16 %v2365, %v2349
        %v2494 = vpack.c.b16 %v2366, %v2350
        %v2495 = vpack.c.b16 %v2367, %v2351
        %v2496 = vpack.c.b16 %v2368, %v2352
        %v2497 = vpack.c.b16 %v2369, %v2353
        %v2498 = vpack.c.b16 %v2370, %v2354
        %v2499 = vpack.c.b16 %v2371, %v2355
        %v2500 = vpack.c.b16 %v2372, %v2356
        %v2501 = vpack.c.b16 %v2373, %v2357
        %v2502 = vpack.c.b16 %v2374, %v2358
        %v2503 = vpack.c.b16 %v2375, %v2359
        %v2504 = vpack.c.b16 %v2376, %v2360
        %v2505 = vpack.c.b16 %v2377, %v2361
        %2634 = vmatprep.subr.bf16.mxu0 %v2491
        %2635 = vmatpush1.bf16.msra.mxu0 %v2490
        %2636 = vmatprep.subr.bf16.mxu0 %v2475
        %2637 = vmatpush1.bf16.msra.mxu0 %v2474
        %2638 = vmatprep.subr.bf16.mxu0 %v2459
        %2639 = vmatpush1.bf16.msra.mxu0 %v2458
        %2640 = vmatprep.subr.bf16.mxu0 %v2443
        %2641 = vmatpush1.bf16.msra.mxu0 %v2442
        %2642 = vmatprep.subr.bf16.mxu0 %v2427
        %2643 = vmatpush1.bf16.msra.mxu0 %v2426
        %2644 = vmatprep.subr.bf16.mxu0 %v2411
        %2645 = vmatpush1.bf16.msra.mxu0 %v2410
        %2646 = vmatprep.subr.bf16.mxu0 %v2395
        %2647 = vmatpush1.bf16.msra.mxu0 %v2394
        %2648 = vmatprep.subr.bf16.mxu0 %v2379
        %2649 = vmatpush1.bf16.msra.mxu0 %v2378
        %2650 = vmatprep.subr.bf16.mxu0 0
        %2651 = vmatpush2.bf16.msra.mxu0 0
        %2652 = vmatprep.subr.bf16.mxu0 0
        %2653 = vmatpush2.bf16.msra.mxu0 0
        %2654 = vmatprep.subr.bf16.mxu0 0
        %2655 = vmatpush2.bf16.msra.mxu0 0
        %2656 = vmatprep.subr.bf16.mxu0 0
        %2657 = vmatpush2.bf16.msra.mxu0 0
        %2658 = vmatprep.subr.bf16.mxu0 0
        %2659 = vmatpush2.bf16.msra.mxu0 0
        %2660 = vmatprep.subr.bf16.mxu0 0
        %2661 = vmatpush2.bf16.msra.mxu0 0
        %2662 = vmatprep.subr.bf16.mxu0 0
        %2663 = vmatpush2.bf16.msra.mxu0 0
        %2664 = vmatprep.subr.bf16.mxu0 0
        %2665 = vmatpush2.bf16.msra.mxu0 0
        %2666 = vmatprep.mubr.bf16.mxu0 0
        %2667 = vmatmul.mubr.bf16.gmra.mxu0 %v1781
        %v2668 = vpop.f32.mrf.mxu0
        %v2669 = vadd.f32 %v1917, %v2668
        %v2670 = vpop.f32.mrf.mxu0
        %v2671 = vadd.f32 %v1921, %v2670
        %v2672 = vpop.f32.mrf.mxu0
        %v2673 = vadd.f32 %v1917, %v2672
        %v2674 = vpop.f32.mrf.mxu0
        %v2675 = vadd.f32 %v1921, %v2674
        %2676 = vdwg.mxu0
        %2677 = vmatprep.subr.bf16.mxu0 %v2493
        %2678 = vmatpush1.bf16.msra.mxu0 %v2492
        %2679 = vmatprep.subr.bf16.mxu0 %v2477
        %2680 = vmatpush1.bf16.msra.mxu0 %v2476
        %2681 = vmatprep.subr.bf16.mxu0 %v2461
        %2682 = vmatpush1.bf16.msra.mxu0 %v2460
        %2683 = vmatprep.subr.bf16.mxu0 %v2445
        %2684 = vmatpush1.bf16.msra.mxu0 %v2444
        %2685 = vmatprep.subr.bf16.mxu0 %v2429
        %2686 = vmatpush1.bf16.msra.mxu0 %v2428
        %2687 = vmatprep.subr.bf16.mxu0 %v2413
        %2688 = vmatpush1.bf16.msra.mxu0 %v2412
        %2689 = vmatprep.subr.bf16.mxu0 %v2397
        %2690 = vmatpush1.bf16.msra.mxu0 %v2396
        %2691 = vmatprep.subr.bf16.mxu0 %v2381
        %2692 = vmatpush1.bf16.msra.mxu0 %v2380
        %2693 = vmatprep.subr.bf16.mxu0 0
        %2694 = vmatpush2.bf16.msra.mxu0 0
        %2695 = vmatprep.subr.bf16.mxu0 0
        %2696 = vmatpush2.bf16.msra.mxu0 0
        %2697 = vmatprep.subr.bf16.mxu0 0
        %2698 = vmatpush2.bf16.msra.mxu0 0
        %2699 = vmatprep.subr.bf16.mxu0 0
        %2700 = vmatpush2.bf16.msra.mxu0 0
        %2701 = vmatprep.subr.bf16.mxu0 0
        %2702 = vmatpush2.bf16.msra.mxu0 0
        %2703 = vmatprep.subr.bf16.mxu0 0
        %2704 = vmatpush2.bf16.msra.mxu0 0
        %2705 = vmatprep.subr.bf16.mxu0 0
        %2706 = vmatpush2.bf16.msra.mxu0 0
        %2707 = vmatprep.subr.bf16.mxu0 0
        %2708 = vmatpush2.bf16.msra.mxu0 0
        %2709 = vmatprep.mubr.bf16.mxu0 0
        %2710 = vmatmul.mubr.bf16.gmra.mxu0 %v1781
        %v2711 = vpop.f32.mrf.mxu0
        %v2712 = vadd.f32 %v1925, %v2711
        %v2713 = vpop.f32.mrf.mxu0
        %v2714 = vadd.f32 %v1929, %v2713
        %v2715 = vpop.f32.mrf.mxu0
        %v2716 = vadd.f32 %v1925, %v2715
        %v2717 = vpop.f32.mrf.mxu0
        %v2718 = vadd.f32 %v1929, %v2717
        %2719 = vdwg.mxu0
        %2720 = vmatprep.subr.bf16.mxu0 %v2495
        %2721 = vmatpush1.bf16.msra.mxu0 %v2494
        %2722 = vmatprep.subr.bf16.mxu0 %v2479
        %2723 = vmatpush1.bf16.msra.mxu0 %v2478
        %2724 = vmatprep.subr.bf16.mxu0 %v2463
        %2725 = vmatpush1.bf16.msra.mxu0 %v2462
        %2726 = vmatprep.subr.bf16.mxu0 %v2447
        %2727 = vmatpush1.bf16.msra.mxu0 %v2446
        %2728 = vmatprep.subr.bf16.mxu0 %v2431
        %2729 = vmatpush1.bf16.msra.mxu0 %v2430
        %2730 = vmatprep.subr.bf16.mxu0 %v2415
        %2731 = vmatpush1.bf16.msra.mxu0 %v2414
        %2732 = vmatprep.subr.bf16.mxu0 %v2399
        %2733 = vmatpush1.bf16.msra.mxu0 %v2398
        %2734 = vmatprep.subr.bf16.mxu0 %v2383
        %2735 = vmatpush1.bf16.msra.mxu0 %v2382
        %2736 = vmatprep.subr.bf16.mxu0 0
        %2737 = vmatpush2.bf16.msra.mxu0 0
        %2738 = vmatprep.subr.bf16.mxu0 0
        %2739 = vmatpush2.bf16.msra.mxu0 0
        %2740 = vmatprep.subr.bf16.mxu0 0
        %2741 = vmatpush2.bf16.msra.mxu0 0
        %2742 = vmatprep.subr.bf16.mxu0 0
        %2743 = vmatpush2.bf16.msra.mxu0 0
        %2744 = vmatprep.subr.bf16.mxu0 0
        %2745 = vmatpush2.bf16.msra.mxu0 0
        %2746 = vmatprep.subr.bf16.mxu0 0
        %2747 = vmatpush2.bf16.msra.mxu0 0
        %2748 = vmatprep.subr.bf16.mxu0 0
        %2749 = vmatpush2.bf16.msra.mxu0 0
        %2750 = vmatprep.subr.bf16.mxu0 0
        %2751 = vmatpush2.bf16.msra.mxu0 0
        %2752 = vmatprep.mubr.bf16.mxu0 0
        %2753 = vmatmul.mubr.bf16.gmra.mxu0 %v1781
        %v2754 = vpop.f32.mrf.mxu0
        %v2755 = vadd.f32 %v1933, %v2754
        %v2756 = vpop.f32.mrf.mxu0
        %v2757 = vadd.f32 %v1937, %v2756
        %v2758 = vpop.f32.mrf.mxu0
        %v2759 = vadd.f32 %v1933, %v2758
        %v2760 = vpop.f32.mrf.mxu0
        %v2761 = vadd.f32 %v1937, %v2760
        %2762 = vdwg.mxu0
        %2763 = vmatprep.subr.bf16.mxu0 %v2497
        %2764 = vmatpush1.bf16.msra.mxu0 %v2496
        %2765 = vmatprep.subr.bf16.mxu0 %v2481
        %2766 = vmatpush1.bf16.msra.mxu0 %v2480
        %2767 = vmatprep.subr.bf16.mxu0 %v2465
        %2768 = vmatpush1.bf16.msra.mxu0 %v2464
        %2769 = vmatprep.subr.bf16.mxu0 %v2449
        %2770 = vmatpush1.bf16.msra.mxu0 %v2448
        %2771 = vmatprep.subr.bf16.mxu0 %v2433
        %2772 = vmatpush1.bf16.msra.mxu0 %v2432
        %2773 = vmatprep.subr.bf16.mxu0 %v2417
        %2774 = vmatpush1.bf16.msra.mxu0 %v2416
        %2775 = vmatprep.subr.bf16.mxu0 %v2401
        %2776 = vmatpush1.bf16.msra.mxu0 %v2400
        %2777 = vmatprep.subr.bf16.mxu0 %v2385
        %2778 = vmatpush1.bf16.msra.mxu0 %v2384
        %2779 = vmatprep.subr.bf16.mxu0 0
        %2780 = vmatpush2.bf16.msra.mxu0 0
        %2781 = vmatprep.subr.bf16.mxu0 0
        %2782 = vmatpush2.bf16.msra.mxu0 0
        %2783 = vmatprep.subr.bf16.mxu0 0
        %2784 = vmatpush2.bf16.msra.mxu0 0
        %2785 = vmatprep.subr.bf16.mxu0 0
        %2786 = vmatpush2.bf16.msra.mxu0 0
        %2787 = vmatprep.subr.bf16.mxu0 0
        %2788 = vmatpush2.bf16.msra.mxu0 0
        %2789 = vmatprep.subr.bf16.mxu0 0
        %2790 = vmatpush2.bf16.msra.mxu0 0
        %2791 = vmatprep.subr.bf16.mxu0 0
        %2792 = vmatpush2.bf16.msra.mxu0 0
        %2793 = vmatprep.subr.bf16.mxu0 0
        %2794 = vmatpush2.bf16.msra.mxu0 0
        %2795 = vmatprep.mubr.bf16.mxu0 0
        %2796 = vmatmul.mubr.bf16.gmra.mxu0 %v1781
        %v2797 = vpop.f32.mrf.mxu0
        %v2798 = vadd.f32 %v1941, %v2797
        %v2799 = vpop.f32.mrf.mxu0
        %v2800 = vadd.f32 %v1945, %v2799
        %v2801 = vpop.f32.mrf.mxu0
        %v2802 = vadd.f32 %v1941, %v2801
        %v2803 = vpop.f32.mrf.mxu0
        %v2804 = vadd.f32 %v1945, %v2803
        %2805 = vdwg.mxu0
        %2806 = vmatprep.subr.bf16.mxu0 %v2499
        %2807 = vmatpush1.bf16.msra.mxu0 %v2498
        %2808 = vmatprep.subr.bf16.mxu0 %v2483
        %2809 = vmatpush1.bf16.msra.mxu0 %v2482
        %2810 = vmatprep.subr.bf16.mxu0 %v2467
        %2811 = vmatpush1.bf16.msra.mxu0 %v2466
        %2812 = vmatprep.subr.bf16.mxu0 %v2451
        %2813 = vmatpush1.bf16.msra.mxu0 %v2450
        %2814 = vmatprep.subr.bf16.mxu0 %v2435
        %2815 = vmatpush1.bf16.msra.mxu0 %v2434
        %2816 = vmatprep.subr.bf16.mxu0 %v2419
        %2817 = vmatpush1.bf16.msra.mxu0 %v2418
        %2818 = vmatprep.subr.bf16.mxu0 %v2403
        %2819 = vmatpush1.bf16.msra.mxu0 %v2402
        %2820 = vmatprep.subr.bf16.mxu0 %v2387
        %2821 = vmatpush1.bf16.msra.mxu0 %v2386
        %2822 = vmatprep.subr.bf16.mxu0 0
        %2823 = vmatpush2.bf16.msra.mxu0 0
        %2824 = vmatprep.subr.bf16.mxu0 0
        %2825 = vmatpush2.bf16.msra.mxu0 0
        %2826 = vmatprep.subr.bf16.mxu0 0
        %2827 = vmatpush2.bf16.msra.mxu0 0
        %2828 = vmatprep.subr.bf16.mxu0 0
        %2829 = vmatpush2.bf16.msra.mxu0 0
        %2830 = vmatprep.subr.bf16.mxu0 0
        %2831 = vmatpush2.bf16.msra.mxu0 0
        %2832 = vmatprep.subr.bf16.mxu0 0
        %2833 = vmatpush2.bf16.msra.mxu0 0
        %2834 = vmatprep.subr.bf16.mxu0 0
        %2835 = vmatpush2.bf16.msra.mxu0 0
        %2836 = vmatprep.subr.bf16.mxu0 0
        %2837 = vmatpush2.bf16.msra.mxu0 0
        %2838 = vmatprep.mubr.bf16.mxu0 0
        %2839 = vmatmul.mubr.bf16.gmra.mxu0 %v1781
        %v2840 = vpop.f32.mrf.mxu0
        %v2841 = vadd.f32 %v1949, %v2840
        %v2842 = vpop.f32.mrf.mxu0
        %v2843 = vadd.f32 %v1953, %v2842
        %v2844 = vpop.f32.mrf.mxu0
        %v2845 = vadd.f32 %v1949, %v2844
        %v2846 = vpop.f32.mrf.mxu0
        %v2847 = vadd.f32 %v1953, %v2846
        %2848 = vdwg.mxu0
        %2849 = vmatprep.subr.bf16.mxu0 %v2501
        %2850 = vmatpush1.bf16.msra.mxu0 %v2500
        %2851 = vmatprep.subr.bf16.mxu0 %v2485
        %2852 = vmatpush1.bf16.msra.mxu0 %v2484
        %2853 = vmatprep.subr.bf16.mxu0 %v2469
        %2854 = vmatpush1.bf16.msra.mxu0 %v2468
        %2855 = vmatprep.subr.bf16.mxu0 %v2453
        %2856 = vmatpush1.bf16.msra.mxu0 %v2452
        %2857 = vmatprep.subr.bf16.mxu0 %v2437
        %2858 = vmatpush1.bf16.msra.mxu0 %v2436
        %2859 = vmatprep.subr.bf16.mxu0 %v2421
        %2860 = vmatpush1.bf16.msra.mxu0 %v2420
        %2861 = vmatprep.subr.bf16.mxu0 %v2405
        %2862 = vmatpush1.bf16.msra.mxu0 %v2404
        %2863 = vmatprep.subr.bf16.mxu0 %v2389
        %2864 = vmatpush1.bf16.msra.mxu0 %v2388
        %2865 = vmatprep.subr.bf16.mxu0 0
        %2866 = vmatpush2.bf16.msra.mxu0 0
        %2867 = vmatprep.subr.bf16.mxu0 0
        %2868 = vmatpush2.bf16.msra.mxu0 0
        %2869 = vmatprep.subr.bf16.mxu0 0
        %2870 = vmatpush2.bf16.msra.mxu0 0
        %2871 = vmatprep.subr.bf16.mxu0 0
        %2872 = vmatpush2.bf16.msra.mxu0 0
        %2873 = vmatprep.subr.bf16.mxu0 0
        %2874 = vmatpush2.bf16.msra.mxu0 0
        %2875 = vmatprep.subr.bf16.mxu0 0
        %2876 = vmatpush2.bf16.msra.mxu0 0
        %2877 = vmatprep.subr.bf16.mxu0 0
        %2878 = vmatpush2.bf16.msra.mxu0 0
        %2879 = vmatprep.subr.bf16.mxu0 0
        %2880 = vmatpush2.bf16.msra.mxu0 0
        %2881 = vmatprep.mubr.bf16.mxu0 0
        %2882 = vmatmul.mubr.bf16.gmra.mxu0 %v1781
        %v2883 = vpop.f32.mrf.mxu0
        %v2884 = vadd.f32 %v1957, %v2883
        %v2885 = vpop.f32.mrf.mxu0
        %v2886 = vadd.f32 %v1961, %v2885
        %v2887 = vpop.f32.mrf.mxu0
        %v2888 = vadd.f32 %v1957, %v2887
        %v2889 = vpop.f32.mrf.mxu0
        %v2890 = vadd.f32 %v1961, %v2889
        %2891 = vdwg.mxu0
        %2892 = vmatprep.subr.bf16.mxu0 %v2503
        %2893 = vmatpush1.bf16.msra.mxu0 %v2502
        %2894 = vmatprep.subr.bf16.mxu0 %v2487
        %2895 = vmatpush1.bf16.msra.mxu0 %v2486
        %2896 = vmatprep.subr.bf16.mxu0 %v2471
        %2897 = vmatpush1.bf16.msra.mxu0 %v2470
        %2898 = vmatprep.subr.bf16.mxu0 %v2455
        %2899 = vmatpush1.bf16.msra.mxu0 %v2454
        %2900 = vmatprep.subr.bf16.mxu0 %v2439
        %2901 = vmatpush1.bf16.msra.mxu0 %v2438
        %2902 = vmatprep.subr.bf16.mxu0 %v2423
        %2903 = vmatpush1.bf16.msra.mxu0 %v2422
        %2904 = vmatprep.subr.bf16.mxu0 %v2407
        %2905 = vmatpush1.bf16.msra.mxu0 %v2406
        %2906 = vmatprep.subr.bf16.mxu0 %v2391
        %2907 = vmatpush1.bf16.msra.mxu0 %v2390
        %2908 = vmatprep.subr.bf16.mxu0 0
        %2909 = vmatpush2.bf16.msra.mxu0 0
        %2910 = vmatprep.subr.bf16.mxu0 0
        %2911 = vmatpush2.bf16.msra.mxu0 0
        %2912 = vmatprep.subr.bf16.mxu0 0
        %2913 = vmatpush2.bf16.msra.mxu0 0
        %2914 = vmatprep.subr.bf16.mxu0 0
        %2915 = vmatpush2.bf16.msra.mxu0 0
        %2916 = vmatprep.subr.bf16.mxu0 0
        %2917 = vmatpush2.bf16.msra.mxu0 0
        %2918 = vmatprep.subr.bf16.mxu0 0
        %2919 = vmatpush2.bf16.msra.mxu0 0
        %2920 = vmatprep.subr.bf16.mxu0 0
        %2921 = vmatpush2.bf16.msra.mxu0 0
        %2922 = vmatprep.subr.bf16.mxu0 0
        %2923 = vmatpush2.bf16.msra.mxu0 0
        %2924 = vmatprep.mubr.bf16.mxu0 0
        %2925 = vmatmul.mubr.bf16.gmra.mxu0 %v1781
        %v2926 = vpop.f32.mrf.mxu0
        %v2927 = vadd.f32 %v1965, %v2926
        %v2928 = vpop.f32.mrf.mxu0
        %v2929 = vadd.f32 %v1969, %v2928
        %v2930 = vpop.f32.mrf.mxu0
        %v2931 = vadd.f32 %v1965, %v2930
        %v2932 = vpop.f32.mrf.mxu0
        %v2933 = vadd.f32 %v1969, %v2932
        %2934 = vdwg.mxu0
        %2935 = vmatprep.subr.bf16.mxu0 %v2505
        %2936 = vmatpush1.bf16.msra.mxu0 %v2504
        %2937 = vmatprep.subr.bf16.mxu0 %v2489
        %2938 = vmatpush1.bf16.msra.mxu0 %v2488
        %2939 = vmatprep.subr.bf16.mxu0 %v2473
        %2940 = vmatpush1.bf16.msra.mxu0 %v2472
        %2941 = vmatprep.subr.bf16.mxu0 %v2457
        %2942 = vmatpush1.bf16.msra.mxu0 %v2456
        %2943 = vmatprep.subr.bf16.mxu0 %v2441
        %2944 = vmatpush1.bf16.msra.mxu0 %v2440
        %2945 = vmatprep.subr.bf16.mxu0 %v2425
        %2946 = vmatpush1.bf16.msra.mxu0 %v2424
        %2947 = vmatprep.subr.bf16.mxu0 %v2409
        %2948 = vmatpush1.bf16.msra.mxu0 %v2408
        %2949 = vmatprep.subr.bf16.mxu0 %v2393
        %2950 = vmatpush1.bf16.msra.mxu0 %v2392
        %2951 = vmatprep.subr.bf16.mxu0 0
        %2952 = vmatpush2.bf16.msra.mxu0 0
        %2953 = vmatprep.subr.bf16.mxu0 0
        %2954 = vmatpush2.bf16.msra.mxu0 0
        %2955 = vmatprep.subr.bf16.mxu0 0
        %2956 = vmatpush2.bf16.msra.mxu0 0
        %2957 = vmatprep.subr.bf16.mxu0 0
        %2958 = vmatpush2.bf16.msra.mxu0 0
        %2959 = vmatprep.subr.bf16.mxu0 0
        %2960 = vmatpush2.bf16.msra.mxu0 0
        %2961 = vmatprep.subr.bf16.mxu0 0
        %2962 = vmatpush2.bf16.msra.mxu0 0
        %2963 = vmatprep.subr.bf16.mxu0 0
        %2964 = vmatpush2.bf16.msra.mxu0 0
        %2965 = vmatprep.subr.bf16.mxu0 0
        %2966 = vmatpush2.bf16.msra.mxu0 0
        %2967 = vmatprep.mubr.bf16.mxu0 0
        %2968 = vmatmul.mubr.bf16.gmra.mxu0 %v1781
        %v2969 = vpop.f32.mrf.mxu0
        %v2970 = vadd.f32 %v1973, %v2969
        %v2971 = vpop.f32.mrf.mxu0
        %v2972 = vadd.f32 %v1977, %v2971
        %v2973 = vpop.f32.mrf.mxu0
        %v2974 = vadd.f32 %v1973, %v2973
        %v2975 = vpop.f32.mrf.mxu0
        %v2976 = vadd.f32 %v1977, %v2975
        %2977 = vdwg.mxu0
        %v2978 = vmax.f32 %v2669, 0.0
        %v2979 = vmax.f32 %v2671, 0.0
        %v2980 = vmax.f32 %v2712, 0.0
        %v2981 = vmax.f32 %v2714, 0.0
        %v2982 = vmax.f32 %v2755, 0.0
        %v2983 = vmax.f32 %v2757, 0.0
        %v2984 = vmax.f32 %v2798, 0.0
        %v2985 = vmax.f32 %v2800, 0.0
        %v2986 = vmax.f32 %v2841, 0.0
        %v2987 = vmax.f32 %v2843, 0.0
        %v2988 = vmax.f32 %v2884, 0.0
        %v2989 = vmax.f32 %v2886, 0.0
        %v2990 = vmax.f32 %v2927, 0.0
        %v2991 = vmax.f32 %v2929, 0.0
        %v2992 = vmax.f32 %v2970, 0.0
        %v2993 = vmax.f32 %v2972, 0.0
        %v2994 = vmax.f32 %v2673, 0.0
        %v2995 = vmax.f32 %v2675, 0.0
        %v2996 = vmax.f32 %v2716, 0.0
        %v2997 = vmax.f32 %v2718, 0.0
        %v2998 = vmax.f32 %v2759, 0.0
        %v2999 = vmax.f32 %v2761, 0.0
        %v3000 = vmax.f32 %v2802, 0.0
        %v3001 = vmax.f32 %v2804, 0.0
        %v3002 = vmax.f32 %v2845, 0.0
        %v3003 = vmax.f32 %v2847, 0.0
        %v3004 = vmax.f32 %v2888, 0.0
        %v3005 = vmax.f32 %v2890, 0.0
        %v3006 = vmax.f32 %v2931, 0.0
        %v3007 = vmax.f32 %v2933, 0.0
        %v3008 = vmax.f32 %v2974, 0.0
        %v3009 = vmax.f32 %v2976, 0.0
        %v3010 = vpack.c.bf16 %v2994, %v2978
        %v3011 = vpack.c.bf16 %v2995, %v2979
        %v3012 = vpack.c.bf16 %v2996, %v2980
        %v3013 = vpack.c.bf16 %v2997, %v2981
        %v3014 = vpack.c.bf16 %v2998, %v2982
        %v3015 = vpack.c.bf16 %v2999, %v2983
        %v3016 = vpack.c.bf16 %v3000, %v2984
        %v3017 = vpack.c.bf16 %v3001, %v2985
        %v3018 = vpack.c.bf16 %v3002, %v2986
        %v3019 = vpack.c.bf16 %v3003, %v2987
        %v3020 = vpack.c.bf16 %v3004, %v2988
        %v3021 = vpack.c.bf16 %v3005, %v2989
        %v3022 = vpack.c.bf16 %v3006, %v2990
        %v3023 = vpack.c.bf16 %v3007, %v2991
        %v3024 = vpack.c.bf16 %v3008, %v2992
        %v3025 = vpack.c.bf16 %v3009, %v2993
        %v3026 = vld [vmem:[#allocation16] sm:$0xf]
        %v3027 = vld [vmem:[#allocation16 + $0x4] sm:$0xf]
        %v3028 = vld [vmem:[#allocation16 + $0x8] sm:$0xf]
        %v3029 = vld [vmem:[#allocation16 + $0xc] sm:$0xf]
        %v3030 = vld [vmem:[#allocation16 + $0x10] sm:$0xf]
        %v3031 = vld [vmem:[#allocation16 + $0x14] sm:$0xf]
        %v3032 = vld [vmem:[#allocation16 + $0x18] sm:$0xf]
        %v3033 = vld [vmem:[#allocation16 + $0x1c] sm:$0xf]
        %v3034 = vld [vmem:[#allocation16 + $0x20] sm:$0xf]
        %v3035 = vld [vmem:[#allocation16 + $0x24] sm:$0xf]
        %v3036 = vld [vmem:[#allocation16 + $0x28] sm:$0xf]
        %v3037 = vld [vmem:[#allocation16 + $0x2c] sm:$0xf]
        %v3038 = vld [vmem:[#allocation16 + $0x30] sm:$0xf]
        %v3039 = vld [vmem:[#allocation16 + $0x34] sm:$0xf]
        %v3040 = vld [vmem:[#allocation16 + $0x38] sm:$0xf]
        %v3041 = vld [vmem:[#allocation16 + $0x3c] sm:$0xf]
        %v3042 = vld [vmem:[#allocation16 + $0x40] sm:$0xf]
        %v3043 = vld [vmem:[#allocation16 + $0x44] sm:$0xf]
        %v3044 = vld [vmem:[#allocation16 + $0x48] sm:$0xf]
        %v3045 = vld [vmem:[#allocation16 + $0x4c] sm:$0xf]
        %v3046 = vld [vmem:[#allocation16 + $0x50] sm:$0xf]
        %v3047 = vld [vmem:[#allocation16 + $0x54] sm:$0xf]
        %v3048 = vld [vmem:[#allocation16 + $0x58] sm:$0xf]
        %v3049 = vld [vmem:[#allocation16 + $0x5c] sm:$0xf]
        %v3050 = vld [vmem:[#allocation16 + $0x60] sm:$0xf]
        %v3051 = vld [vmem:[#allocation16 + $0x64] sm:$0xf]
        %v3052 = vld [vmem:[#allocation16 + $0x68] sm:$0xf]
        %v3053 = vld [vmem:[#allocation16 + $0x6c] sm:$0xf]
        %v3054 = vld [vmem:[#allocation16 + $0x70] sm:$0xf]
        %v3055 = vld [vmem:[#allocation16 + $0x74] sm:$0xf]
        %v3056 = vld [vmem:[#allocation16 + $0x78] sm:$0xf]
        %v3057 = vld [vmem:[#allocation16 + $0x7c] sm:$0xf]
        %v3058 = vld [vmem:[#allocation16 + $0x80] sm:$0xf]
        %v3059 = vld [vmem:[#allocation16 + $0x84] sm:$0xf]
        %v3060 = vld [vmem:[#allocation16 + $0x88] sm:$0xf]
        %v3061 = vld [vmem:[#allocation16 + $0x8c] sm:$0xf]
        %v3062 = vld [vmem:[#allocation16 + $0x90] sm:$0xf]
        %v3063 = vld [vmem:[#allocation16 + $0x94] sm:$0xf]
        %v3064 = vld [vmem:[#allocation16 + $0x98] sm:$0xf]
        %v3065 = vld [vmem:[#allocation16 + $0x9c] sm:$0xf]
        %v3066 = vld [vmem:[#allocation16 + $0xa0] sm:$0xf]
        %v3067 = vld [vmem:[#allocation16 + $0xa4] sm:$0xf]
        %v3068 = vld [vmem:[#allocation16 + $0xa8] sm:$0xf]
        %v3069 = vld [vmem:[#allocation16 + $0xac] sm:$0xf]
        %v3070 = vld [vmem:[#allocation16 + $0xb0] sm:$0xf]
        %v3071 = vld [vmem:[#allocation16 + $0xb4] sm:$0xf]
        %v3072 = vld [vmem:[#allocation16 + $0xb8] sm:$0xf]
        %v3073 = vld [vmem:[#allocation16 + $0xbc] sm:$0xf]
        %v3074 = vld [vmem:[#allocation16 + $0xc0] sm:$0xf]
        %v3075 = vld [vmem:[#allocation16 + $0xc4] sm:$0xf]
        %v3076 = vld [vmem:[#allocation16 + $0xc8] sm:$0xf]
        %v3077 = vld [vmem:[#allocation16 + $0xcc] sm:$0xf]
        %v3078 = vld [vmem:[#allocation16 + $0xd0] sm:$0xf]
        %v3079 = vld [vmem:[#allocation16 + $0xd4] sm:$0xf]
        %v3080 = vld [vmem:[#allocation16 + $0xd8] sm:$0xf]
        %v3081 = vld [vmem:[#allocation16 + $0xdc] sm:$0xf]
        %v3082 = vld [vmem:[#allocation16 + $0xe0] sm:$0xf]
        %v3083 = vld [vmem:[#allocation16 + $0xe4] sm:$0xf]
        %v3084 = vld [vmem:[#allocation16 + $0xe8] sm:$0xf]
        %v3085 = vld [vmem:[#allocation16 + $0xec] sm:$0xf]
        %v3086 = vld [vmem:[#allocation16 + $0xf0] sm:$0xf]
        %v3087 = vld [vmem:[#allocation16 + $0xf4] sm:$0xf]
        %v3088 = vld [vmem:[#allocation16 + $0xf8] sm:$0xf]
        %v3089 = vld [vmem:[#allocation16 + $0xfc] sm:$0xf]
        %v3090 = vld [vmem:[#allocation16 + $0x100] sm:$0xf]
        %v3091 = vld [vmem:[#allocation16 + $0x104] sm:$0xf]
        %v3092 = vld [vmem:[#allocation16 + $0x108] sm:$0xf]
        %v3093 = vld [vmem:[#allocation16 + $0x10c] sm:$0xf]
        %v3094 = vld [vmem:[#allocation16 + $0x110] sm:$0xf]
        %v3095 = vld [vmem:[#allocation16 + $0x114] sm:$0xf]
        %v3096 = vld [vmem:[#allocation16 + $0x118] sm:$0xf]
        %v3097 = vld [vmem:[#allocation16 + $0x11c] sm:$0xf]
        %v3098 = vld [vmem:[#allocation16 + $0x120] sm:$0xf]
        %v3099 = vld [vmem:[#allocation16 + $0x124] sm:$0xf]
        %v3100 = vld [vmem:[#allocation16 + $0x128] sm:$0xf]
        %v3101 = vld [vmem:[#allocation16 + $0x12c] sm:$0xf]
        %v3102 = vld [vmem:[#allocation16 + $0x130] sm:$0xf]
        %v3103 = vld [vmem:[#allocation16 + $0x134] sm:$0xf]
        %v3104 = vld [vmem:[#allocation16 + $0x138] sm:$0xf]
        %v3105 = vld [vmem:[#allocation16 + $0x13c] sm:$0xf]
        %v3106 = vld [vmem:[#allocation16 + $0x140] sm:$0xf]
        %v3107 = vld [vmem:[#allocation16 + $0x144] sm:$0xf]
        %v3108 = vld [vmem:[#allocation16 + $0x148] sm:$0xf]
        %v3109 = vld [vmem:[#allocation16 + $0x14c] sm:$0xf]
        %v3110 = vld [vmem:[#allocation16 + $0x150] sm:$0xf]
        %v3111 = vld [vmem:[#allocation16 + $0x154] sm:$0xf]
        %v3112 = vld [vmem:[#allocation16 + $0x158] sm:$0xf]
        %v3113 = vld [vmem:[#allocation16 + $0x15c] sm:$0xf]
        %v3114 = vld [vmem:[#allocation16 + $0x160] sm:$0xf]
        %v3115 = vld [vmem:[#allocation16 + $0x164] sm:$0xf]
        %v3116 = vld [vmem:[#allocation16 + $0x168] sm:$0xf]
        %v3117 = vld [vmem:[#allocation16 + $0x16c] sm:$0xf]
        %v3118 = vld [vmem:[#allocation16 + $0x170] sm:$0xf]
        %v3119 = vld [vmem:[#allocation16 + $0x174] sm:$0xf]
        %v3120 = vld [vmem:[#allocation16 + $0x178] sm:$0xf]
        %v3121 = vld [vmem:[#allocation16 + $0x17c] sm:$0xf]
        %v3122 = vld [vmem:[#allocation16 + $0x180] sm:$0xf]
        %v3123 = vld [vmem:[#allocation16 + $0x184] sm:$0xf]
        %v3124 = vld [vmem:[#allocation16 + $0x188] sm:$0xf]
        %v3125 = vld [vmem:[#allocation16 + $0x18c] sm:$0xf]
        %v3126 = vld [vmem:[#allocation16 + $0x190] sm:$0xf]
        %v3127 = vld [vmem:[#allocation16 + $0x194] sm:$0xf]
        %v3128 = vld [vmem:[#allocation16 + $0x198] sm:$0xf]
        %v3129 = vld [vmem:[#allocation16 + $0x19c] sm:$0xf]
        %v3130 = vld [vmem:[#allocation16 + $0x1a0] sm:$0xf]
        %v3131 = vld [vmem:[#allocation16 + $0x1a4] sm:$0xf]
        %v3132 = vld [vmem:[#allocation16 + $0x1a8] sm:$0xf]
        %v3133 = vld [vmem:[#allocation16 + $0x1ac] sm:$0xf]
        %v3134 = vld [vmem:[#allocation16 + $0x1b0] sm:$0xf]
        %v3135 = vld [vmem:[#allocation16 + $0x1b4] sm:$0xf]
        %v3136 = vld [vmem:[#allocation16 + $0x1b8] sm:$0xf]
        %v3137 = vld [vmem:[#allocation16 + $0x1bc] sm:$0xf]
        %v3138 = vld [vmem:[#allocation16 + $0x1c0] sm:$0xf]
        %v3139 = vld [vmem:[#allocation16 + $0x1c4] sm:$0xf]
        %v3140 = vld [vmem:[#allocation16 + $0x1c8] sm:$0xf]
        %v3141 = vld [vmem:[#allocation16 + $0x1cc] sm:$0xf]
        %v3142 = vld [vmem:[#allocation16 + $0x1d0] sm:$0xf]
        %v3143 = vld [vmem:[#allocation16 + $0x1d4] sm:$0xf]
        %v3144 = vld [vmem:[#allocation16 + $0x1d8] sm:$0xf]
        %v3145 = vld [vmem:[#allocation16 + $0x1dc] sm:$0xf]
        %v3146 = vld [vmem:[#allocation16 + $0x1e0] sm:$0xf]
        %v3147 = vld [vmem:[#allocation16 + $0x1e4] sm:$0xf]
        %v3148 = vld [vmem:[#allocation16 + $0x1e8] sm:$0xf]
        %v3149 = vld [vmem:[#allocation16 + $0x1ec] sm:$0xf]
        %v3150 = vld [vmem:[#allocation16 + $0x1f0] sm:$0xf]
        %v3151 = vld [vmem:[#allocation16 + $0x1f4] sm:$0xf]
        %v3152 = vld [vmem:[#allocation16 + $0x1f8] sm:$0xf]
        %v3153 = vld [vmem:[#allocation16 + $0x1fc] sm:$0xf]
        %v3154 = vld [vmem:[#allocation16 + $0x200] sm:$0xf]
        %v3155 = vld [vmem:[#allocation16 + $0x204] sm:$0xf]
        %v3156 = vld [vmem:[#allocation16 + $0x208] sm:$0xf]
        %v3157 = vld [vmem:[#allocation16 + $0x20c] sm:$0xf]
        %v3158 = vld [vmem:[#allocation16 + $0x210] sm:$0xf]
        %v3159 = vld [vmem:[#allocation16 + $0x214] sm:$0xf]
        %v3160 = vld [vmem:[#allocation16 + $0x218] sm:$0xf]
        %v3161 = vld [vmem:[#allocation16 + $0x21c] sm:$0xf]
        %v3162 = vld [vmem:[#allocation16 + $0x220] sm:$0xf]
        %v3163 = vld [vmem:[#allocation16 + $0x224] sm:$0xf]
        %v3164 = vld [vmem:[#allocation16 + $0x228] sm:$0xf]
        %v3165 = vld [vmem:[#allocation16 + $0x22c] sm:$0xf]
        %v3166 = vld [vmem:[#allocation16 + $0x230] sm:$0xf]
        %v3167 = vld [vmem:[#allocation16 + $0x234] sm:$0xf]
        %v3168 = vld [vmem:[#allocation16 + $0x238] sm:$0xf]
        %v3169 = vld [vmem:[#allocation16 + $0x23c] sm:$0xf]
        %v3170 = vld [vmem:[#allocation16 + $0x240] sm:$0xf]
        %v3171 = vld [vmem:[#allocation16 + $0x244] sm:$0xf]
        %v3172 = vld [vmem:[#allocation16 + $0x248] sm:$0xf]
        %v3173 = vld [vmem:[#allocation16 + $0x24c] sm:$0xf]
        %v3174 = vld [vmem:[#allocation16 + $0x250] sm:$0xf]
        %v3175 = vld [vmem:[#allocation16 + $0x254] sm:$0xf]
        %v3176 = vld [vmem:[#allocation16 + $0x258] sm:$0xf]
        %v3177 = vld [vmem:[#allocation16 + $0x25c] sm:$0xf]
        %v3178 = vld [vmem:[#allocation16 + $0x260] sm:$0xf]
        %v3179 = vld [vmem:[#allocation16 + $0x264] sm:$0xf]
        %v3180 = vld [vmem:[#allocation16 + $0x268] sm:$0xf]
        %v3181 = vld [vmem:[#allocation16 + $0x26c] sm:$0xf]
        %v3182 = vld [vmem:[#allocation16 + $0x270] sm:$0xf]
        %v3183 = vld [vmem:[#allocation16 + $0x274] sm:$0xf]
        %v3184 = vld [vmem:[#allocation16 + $0x278] sm:$0xf]
        %v3185 = vld [vmem:[#allocation16 + $0x27c] sm:$0xf]
        %v3186 = vld [vmem:[#allocation16 + $0x280] sm:$0xf]
        %v3187 = vld [vmem:[#allocation16 + $0x284] sm:$0xf]
        %v3188 = vld [vmem:[#allocation16 + $0x288] sm:$0xf]
        %v3189 = vld [vmem:[#allocation16 + $0x28c] sm:$0xf]
        %v3190 = vld [vmem:[#allocation16 + $0x290] sm:$0xf]
        %v3191 = vld [vmem:[#allocation16 + $0x294] sm:$0xf]
        %v3192 = vld [vmem:[#allocation16 + $0x298] sm:$0xf]
        %v3193 = vld [vmem:[#allocation16 + $0x29c] sm:$0xf]
        %v3194 = vld [vmem:[#allocation16 + $0x2a0] sm:$0xf]
        %v3195 = vld [vmem:[#allocation16 + $0x2a4] sm:$0xf]
        %v3196 = vld [vmem:[#allocation16 + $0x2a8] sm:$0xf]
        %v3197 = vld [vmem:[#allocation16 + $0x2ac] sm:$0xf]
        %v3198 = vld [vmem:[#allocation16 + $0x2b0] sm:$0xf]
        %v3199 = vld [vmem:[#allocation16 + $0x2b4] sm:$0xf]
        %v3200 = vld [vmem:[#allocation16 + $0x2b8] sm:$0xf]
        %v3201 = vld [vmem:[#allocation16 + $0x2bc] sm:$0xf]
        %v3202 = vld [vmem:[#allocation16 + $0x2c0] sm:$0xf]
        %v3203 = vld [vmem:[#allocation16 + $0x2c4] sm:$0xf]
        %v3204 = vld [vmem:[#allocation16 + $0x2c8] sm:$0xf]
        %v3205 = vld [vmem:[#allocation16 + $0x2cc] sm:$0xf]
        %v3206 = vld [vmem:[#allocation16 + $0x2d0] sm:$0xf]
        %v3207 = vld [vmem:[#allocation16 + $0x2d4] sm:$0xf]
        %v3208 = vld [vmem:[#allocation16 + $0x2d8] sm:$0xf]
        %v3209 = vld [vmem:[#allocation16 + $0x2dc] sm:$0xf]
        %v3210 = vld [vmem:[#allocation16 + $0x2e0] sm:$0xf]
        %v3211 = vld [vmem:[#allocation16 + $0x2e4] sm:$0xf]
        %v3212 = vld [vmem:[#allocation16 + $0x2e8] sm:$0xf]
        %v3213 = vld [vmem:[#allocation16 + $0x2ec] sm:$0xf]
        %v3214 = vld [vmem:[#allocation16 + $0x2f0] sm:$0xf]
        %v3215 = vld [vmem:[#allocation16 + $0x2f4] sm:$0xf]
        %v3216 = vld [vmem:[#allocation16 + $0x2f8] sm:$0xf]
        %v3217 = vld [vmem:[#allocation16 + $0x2fc] sm:$0xf]
        %v3218 = vld [vmem:[#allocation16 + $0x300] sm:$0xf]
        %v3219 = vld [vmem:[#allocation16 + $0x304] sm:$0xf]
        %v3220 = vld [vmem:[#allocation16 + $0x308] sm:$0xf]
        %v3221 = vld [vmem:[#allocation16 + $0x30c] sm:$0xf]
        %v3222 = vld [vmem:[#allocation16 + $0x310] sm:$0xf]
        %v3223 = vld [vmem:[#allocation16 + $0x314] sm:$0xf]
        %v3224 = vld [vmem:[#allocation16 + $0x318] sm:$0xf]
        %v3225 = vld [vmem:[#allocation16 + $0x31c] sm:$0xf]
        %v3226 = vld [vmem:[#allocation16 + $0x320] sm:$0xf]
        %v3227 = vld [vmem:[#allocation16 + $0x324] sm:$0xf]
        %v3228 = vld [vmem:[#allocation16 + $0x328] sm:$0xf]
        %v3229 = vld [vmem:[#allocation16 + $0x32c] sm:$0xf]
        %v3230 = vld [vmem:[#allocation16 + $0x330] sm:$0xf]
        %v3231 = vld [vmem:[#allocation16 + $0x334] sm:$0xf]
        %v3232 = vld [vmem:[#allocation16 + $0x338] sm:$0xf]
        %v3233 = vld [vmem:[#allocation16 + $0x33c] sm:$0xf]
        %v3234 = vld [vmem:[#allocation16 + $0x340] sm:$0xf]
        %v3235 = vld [vmem:[#allocation16 + $0x344] sm:$0xf]
        %v3236 = vld [vmem:[#allocation16 + $0x348] sm:$0xf]
        %v3237 = vld [vmem:[#allocation16 + $0x34c] sm:$0xf]
        %v3238 = vld [vmem:[#allocation16 + $0x350] sm:$0xf]
        %v3239 = vld [vmem:[#allocation16 + $0x354] sm:$0xf]
        %v3240 = vld [vmem:[#allocation16 + $0x358] sm:$0xf]
        %v3241 = vld [vmem:[#allocation16 + $0x35c] sm:$0xf]
        %v3242 = vld [vmem:[#allocation16 + $0x360] sm:$0xf]
        %v3243 = vld [vmem:[#allocation16 + $0x364] sm:$0xf]
        %v3244 = vld [vmem:[#allocation16 + $0x368] sm:$0xf]
        %v3245 = vld [vmem:[#allocation16 + $0x36c] sm:$0xf]
        %v3246 = vld [vmem:[#allocation16 + $0x370] sm:$0xf]
        %v3247 = vld [vmem:[#allocation16 + $0x374] sm:$0xf]
        %v3248 = vld [vmem:[#allocation16 + $0x378] sm:$0xf]
        %v3249 = vld [vmem:[#allocation16 + $0x37c] sm:$0xf]
        %v3250 = vld [vmem:[#allocation16 + $0x380] sm:$0xf]
        %v3251 = vld [vmem:[#allocation16 + $0x384] sm:$0xf]
        %v3252 = vld [vmem:[#allocation16 + $0x388] sm:$0xf]
        %v3253 = vld [vmem:[#allocation16 + $0x38c] sm:$0xf]
        %v3254 = vld [vmem:[#allocation16 + $0x390] sm:$0xf]
        %v3255 = vld [vmem:[#allocation16 + $0x394] sm:$0xf]
        %v3256 = vld [vmem:[#allocation16 + $0x398] sm:$0xf]
        %v3257 = vld [vmem:[#allocation16 + $0x39c] sm:$0xf]
        %v3258 = vld [vmem:[#allocation16 + $0x3a0] sm:$0xf]
        %v3259 = vld [vmem:[#allocation16 + $0x3a4] sm:$0xf]
        %v3260 = vld [vmem:[#allocation16 + $0x3a8] sm:$0xf]
        %v3261 = vld [vmem:[#allocation16 + $0x3ac] sm:$0xf]
        %v3262 = vld [vmem:[#allocation16 + $0x3b0] sm:$0xf]
        %v3263 = vld [vmem:[#allocation16 + $0x3b4] sm:$0xf]
        %v3264 = vld [vmem:[#allocation16 + $0x3b8] sm:$0xf]
        %v3265 = vld [vmem:[#allocation16 + $0x3bc] sm:$0xf]
        %v3266 = vld [vmem:[#allocation16 + $0x3c0] sm:$0xf]
        %v3267 = vld [vmem:[#allocation16 + $0x3c4] sm:$0xf]
        %v3268 = vld [vmem:[#allocation16 + $0x3c8] sm:$0xf]
        %v3269 = vld [vmem:[#allocation16 + $0x3cc] sm:$0xf]
        %v3270 = vld [vmem:[#allocation16 + $0x3d0] sm:$0xf]
        %v3271 = vld [vmem:[#allocation16 + $0x3d4] sm:$0xf]
        %v3272 = vld [vmem:[#allocation16 + $0x3d8] sm:$0xf]
        %v3273 = vld [vmem:[#allocation16 + $0x3dc] sm:$0xf]
        %v3274 = vld [vmem:[#allocation16 + $0x3e0] sm:$0xf]
        %v3275 = vld [vmem:[#allocation16 + $0x3e4] sm:$0xf]
        %v3276 = vld [vmem:[#allocation16 + $0x3e8] sm:$0xf]
        %v3277 = vld [vmem:[#allocation16 + $0x3ec] sm:$0xf]
        %v3278 = vld [vmem:[#allocation16 + $0x3f0] sm:$0xf]
        %v3279 = vld [vmem:[#allocation16 + $0x3f4] sm:$0xf]
        %v3280 = vld [vmem:[#allocation16 + $0x3f8] sm:$0xf]
        %v3281 = vld [vmem:[#allocation16 + $0x3fc] sm:$0xf]
        %v3282 = vld [vmem:[%s15] sm:$0x1]
        %v3284 = vlaneseq
        %v3285 = vshrl.u32 %v3284, 7
        %v3286 = vsub.s32 0, %v3285
        %v3287 = vrot.slane %v3282, %v3286
        %v3545 = vunpack.c.l.b16 %v3026
        %v3546 = vunpack.c.l.b16 %v3027
        %v3547 = vunpack.c.l.b16 %v3028
        %v3548 = vunpack.c.l.b16 %v3029
        %v3549 = vunpack.c.l.b16 %v3030
        %v3550 = vunpack.c.l.b16 %v3031
        %v3551 = vunpack.c.l.b16 %v3032
        %v3552 = vunpack.c.l.b16 %v3033
        %v3553 = vunpack.c.l.b16 %v3034
        %v3554 = vunpack.c.l.b16 %v3035
        %v3555 = vunpack.c.l.b16 %v3036
        %v3556 = vunpack.c.l.b16 %v3037
        %v3557 = vunpack.c.l.b16 %v3038
        %v3558 = vunpack.c.l.b16 %v3039
        %v3559 = vunpack.c.l.b16 %v3040
        %v3560 = vunpack.c.l.b16 %v3041
        %v3561 = vunpack.c.l.b16 %v3042
        %v3562 = vunpack.c.l.b16 %v3043
        %v3563 = vunpack.c.l.b16 %v3044
        %v3564 = vunpack.c.l.b16 %v3045
        %v3565 = vunpack.c.l.b16 %v3046
        %v3566 = vunpack.c.l.b16 %v3047
        %v3567 = vunpack.c.l.b16 %v3048
        %v3568 = vunpack.c.l.b16 %v3049
        %v3569 = vunpack.c.l.b16 %v3050
        %v3570 = vunpack.c.l.b16 %v3051
        %v3571 = vunpack.c.l.b16 %v3052
        %v3572 = vunpack.c.l.b16 %v3053
        %v3573 = vunpack.c.l.b16 %v3054
        %v3574 = vunpack.c.l.b16 %v3055
        %v3575 = vunpack.c.l.b16 %v3056
        %v3576 = vunpack.c.l.b16 %v3057
        %v3577 = vunpack.c.l.b16 %v3058
        %v3578 = vunpack.c.l.b16 %v3059
        %v3579 = vunpack.c.l.b16 %v3060
        %v3580 = vunpack.c.l.b16 %v3061
        %v3581 = vunpack.c.l.b16 %v3062
        %v3582 = vunpack.c.l.b16 %v3063
        %v3583 = vunpack.c.l.b16 %v3064
        %v3584 = vunpack.c.l.b16 %v3065
        %v3585 = vunpack.c.l.b16 %v3066
        %v3586 = vunpack.c.l.b16 %v3067
        %v3587 = vunpack.c.l.b16 %v3068
        %v3588 = vunpack.c.l.b16 %v3069
        %v3589 = vunpack.c.l.b16 %v3070
        %v3590 = vunpack.c.l.b16 %v3071
        %v3591 = vunpack.c.l.b16 %v3072
        %v3592 = vunpack.c.l.b16 %v3073
        %v3593 = vunpack.c.l.b16 %v3074
        %v3594 = vunpack.c.l.b16 %v3075
        %v3595 = vunpack.c.l.b16 %v3076
        %v3596 = vunpack.c.l.b16 %v3077
        %v3597 = vunpack.c.l.b16 %v3078
        %v3598 = vunpack.c.l.b16 %v3079
        %v3599 = vunpack.c.l.b16 %v3080
        %v3600 = vunpack.c.l.b16 %v3081
        %v3601 = vunpack.c.l.b16 %v3082
        %v3602 = vunpack.c.l.b16 %v3083
        %v3603 = vunpack.c.l.b16 %v3084
        %v3604 = vunpack.c.l.b16 %v3085
        %v3605 = vunpack.c.l.b16 %v3086
        %v3606 = vunpack.c.l.b16 %v3087
        %v3607 = vunpack.c.l.b16 %v3088
        %v3608 = vunpack.c.l.b16 %v3089
        %v3609 = vunpack.c.l.b16 %v3090
        %v3610 = vunpack.c.l.b16 %v3091
        %v3611 = vunpack.c.l.b16 %v3092
        %v3612 = vunpack.c.l.b16 %v3093
        %v3613 = vunpack.c.l.b16 %v3094
        %v3614 = vunpack.c.l.b16 %v3095
        %v3615 = vunpack.c.l.b16 %v3096
        %v3616 = vunpack.c.l.b16 %v3097
        %v3617 = vunpack.c.l.b16 %v3098
        %v3618 = vunpack.c.l.b16 %v3099
        %v3619 = vunpack.c.l.b16 %v3100
        %v3620 = vunpack.c.l.b16 %v3101
        %v3621 = vunpack.c.l.b16 %v3102
        %v3622 = vunpack.c.l.b16 %v3103
        %v3623 = vunpack.c.l.b16 %v3104
        %v3624 = vunpack.c.l.b16 %v3105
        %v3625 = vunpack.c.l.b16 %v3106
        %v3626 = vunpack.c.l.b16 %v3107
        %v3627 = vunpack.c.l.b16 %v3108
        %v3628 = vunpack.c.l.b16 %v3109
        %v3629 = vunpack.c.l.b16 %v3110
        %v3630 = vunpack.c.l.b16 %v3111
        %v3631 = vunpack.c.l.b16 %v3112
        %v3632 = vunpack.c.l.b16 %v3113
        %v3633 = vunpack.c.l.b16 %v3114
        %v3634 = vunpack.c.l.b16 %v3115
        %v3635 = vunpack.c.l.b16 %v3116
        %v3636 = vunpack.c.l.b16 %v3117
        %v3637 = vunpack.c.l.b16 %v3118
        %v3638 = vunpack.c.l.b16 %v3119
        %v3639 = vunpack.c.l.b16 %v3120
        %v3640 = vunpack.c.l.b16 %v3121
        %v3641 = vunpack.c.l.b16 %v3122
        %v3642 = vunpack.c.l.b16 %v3123
        %v3643 = vunpack.c.l.b16 %v3124
        %v3644 = vunpack.c.l.b16 %v3125
        %v3645 = vunpack.c.l.b16 %v3126
        %v3646 = vunpack.c.l.b16 %v3127
        %v3647 = vunpack.c.l.b16 %v3128
        %v3648 = vunpack.c.l.b16 %v3129
        %v3649 = vunpack.c.l.b16 %v3130
        %v3650 = vunpack.c.l.b16 %v3131
        %v3651 = vunpack.c.l.b16 %v3132
        %v3652 = vunpack.c.l.b16 %v3133
        %v3653 = vunpack.c.l.b16 %v3134
        %v3654 = vunpack.c.l.b16 %v3135
        %v3655 = vunpack.c.l.b16 %v3136
        %v3656 = vunpack.c.l.b16 %v3137
        %v3657 = vunpack.c.l.b16 %v3138
        %v3658 = vunpack.c.l.b16 %v3139
        %v3659 = vunpack.c.l.b16 %v3140
        %v3660 = vunpack.c.l.b16 %v3141
        %v3661 = vunpack.c.l.b16 %v3142
        %v3662 = vunpack.c.l.b16 %v3143
        %v3663 = vunpack.c.l.b16 %v3144
        %v3664 = vunpack.c.l.b16 %v3145
        %v3665 = vunpack.c.l.b16 %v3146
        %v3666 = vunpack.c.l.b16 %v3147
        %v3667 = vunpack.c.l.b16 %v3148
        %v3668 = vunpack.c.l.b16 %v3149
        %v3669 = vunpack.c.l.b16 %v3150
        %v3670 = vunpack.c.l.b16 %v3151
        %v3671 = vunpack.c.l.b16 %v3152
        %v3672 = vunpack.c.l.b16 %v3153
        %v3673 = vunpack.c.l.b16 %v3154
        %v3674 = vunpack.c.l.b16 %v3155
        %v3675 = vunpack.c.l.b16 %v3156
        %v3676 = vunpack.c.l.b16 %v3157
        %v3677 = vunpack.c.l.b16 %v3158
        %v3678 = vunpack.c.l.b16 %v3159
        %v3679 = vunpack.c.l.b16 %v3160
        %v3680 = vunpack.c.l.b16 %v3161
        %v3681 = vunpack.c.l.b16 %v3162
        %v3682 = vunpack.c.l.b16 %v3163
        %v3683 = vunpack.c.l.b16 %v3164
        %v3684 = vunpack.c.l.b16 %v3165
        %v3685 = vunpack.c.l.b16 %v3166
        %v3686 = vunpack.c.l.b16 %v3167
        %v3687 = vunpack.c.l.b16 %v3168
        %v3688 = vunpack.c.l.b16 %v3169
        %v3689 = vunpack.c.l.b16 %v3170
        %v3690 = vunpack.c.l.b16 %v3171
        %v3691 = vunpack.c.l.b16 %v3172
        %v3692 = vunpack.c.l.b16 %v3173
        %v3693 = vunpack.c.l.b16 %v3174
        %v3694 = vunpack.c.l.b16 %v3175
        %v3695 = vunpack.c.l.b16 %v3176
        %v3696 = vunpack.c.l.b16 %v3177
        %v3697 = vunpack.c.l.b16 %v3178
        %v3698 = vunpack.c.l.b16 %v3179
        %v3699 = vunpack.c.l.b16 %v3180
        %v3700 = vunpack.c.l.b16 %v3181
        %v3701 = vunpack.c.l.b16 %v3182
        %v3702 = vunpack.c.l.b16 %v3183
        %v3703 = vunpack.c.l.b16 %v3184
        %v3704 = vunpack.c.l.b16 %v3185
        %v3705 = vunpack.c.l.b16 %v3186
        %v3706 = vunpack.c.l.b16 %v3187
        %v3707 = vunpack.c.l.b16 %v3188
        %v3708 = vunpack.c.l.b16 %v3189
        %v3709 = vunpack.c.l.b16 %v3190
        %v3710 = vunpack.c.l.b16 %v3191
        %v3711 = vunpack.c.l.b16 %v3192
        %v3712 = vunpack.c.l.b16 %v3193
        %v3713 = vunpack.c.l.b16 %v3194
        %v3714 = vunpack.c.l.b16 %v3195
        %v3715 = vunpack.c.l.b16 %v3196
        %v3716 = vunpack.c.l.b16 %v3197
        %v3717 = vunpack.c.l.b16 %v3198
        %v3718 = vunpack.c.l.b16 %v3199
        %v3719 = vunpack.c.l.b16 %v3200
        %v3720 = vunpack.c.l.b16 %v3201
        %v3721 = vunpack.c.l.b16 %v3202
        %v3722 = vunpack.c.l.b16 %v3203
        %v3723 = vunpack.c.l.b16 %v3204
        %v3724 = vunpack.c.l.b16 %v3205
        %v3725 = vunpack.c.l.b16 %v3206
        %v3726 = vunpack.c.l.b16 %v3207
        %v3727 = vunpack.c.l.b16 %v3208
        %v3728 = vunpack.c.l.b16 %v3209
        %v3729 = vunpack.c.l.b16 %v3210
        %v3730 = vunpack.c.l.b16 %v3211
        %v3731 = vunpack.c.l.b16 %v3212
        %v3732 = vunpack.c.l.b16 %v3213
        %v3733 = vunpack.c.l.b16 %v3214
        %v3734 = vunpack.c.l.b16 %v3215
        %v3735 = vunpack.c.l.b16 %v3216
        %v3736 = vunpack.c.l.b16 %v3217
        %v3737 = vunpack.c.l.b16 %v3218
        %v3738 = vunpack.c.l.b16 %v3219
        %v3739 = vunpack.c.l.b16 %v3220
        %v3740 = vunpack.c.l.b16 %v3221
        %v3741 = vunpack.c.l.b16 %v3222
        %v3742 = vunpack.c.l.b16 %v3223
        %v3743 = vunpack.c.l.b16 %v3224
        %v3744 = vunpack.c.l.b16 %v3225
        %v3745 = vunpack.c.l.b16 %v3226
        %v3746 = vunpack.c.l.b16 %v3227
        %v3747 = vunpack.c.l.b16 %v3228
        %v3748 = vunpack.c.l.b16 %v3229
        %v3749 = vunpack.c.l.b16 %v3230
        %v3750 = vunpack.c.l.b16 %v3231
        %v3751 = vunpack.c.l.b16 %v3232
        %v3752 = vunpack.c.l.b16 %v3233
        %v3753 = vunpack.c.l.b16 %v3234
        %v3754 = vunpack.c.l.b16 %v3235
        %v3755 = vunpack.c.l.b16 %v3236
        %v3756 = vunpack.c.l.b16 %v3237
        %v3757 = vunpack.c.l.b16 %v3238
        %v3758 = vunpack.c.l.b16 %v3239
        %v3759 = vunpack.c.l.b16 %v3240
        %v3760 = vunpack.c.l.b16 %v3241
        %v3761 = vunpack.c.l.b16 %v3242
        %v3762 = vunpack.c.l.b16 %v3243
        %v3763 = vunpack.c.l.b16 %v3244
        %v3764 = vunpack.c.l.b16 %v3245
        %v3765 = vunpack.c.l.b16 %v3246
        %v3766 = vunpack.c.l.b16 %v3247
        %v3767 = vunpack.c.l.b16 %v3248
        %v3768 = vunpack.c.l.b16 %v3249
        %v3769 = vunpack.c.l.b16 %v3250
        %v3770 = vunpack.c.l.b16 %v3251
        %v3771 = vunpack.c.l.b16 %v3252
        %v3772 = vunpack.c.l.b16 %v3253
        %v3773 = vunpack.c.l.b16 %v3254
        %v3774 = vunpack.c.l.b16 %v3255
        %v3775 = vunpack.c.l.b16 %v3256
        %v3776 = vunpack.c.l.b16 %v3257
        %v3777 = vunpack.c.l.b16 %v3258
        %v3778 = vunpack.c.l.b16 %v3259
        %v3779 = vunpack.c.l.b16 %v3260
        %v3780 = vunpack.c.l.b16 %v3261
        %v3781 = vunpack.c.l.b16 %v3262
        %v3782 = vunpack.c.l.b16 %v3263
        %v3783 = vunpack.c.l.b16 %v3264
        %v3784 = vunpack.c.l.b16 %v3265
        %v3785 = vunpack.c.l.b16 %v3266
        %v3786 = vunpack.c.l.b16 %v3267
        %v3787 = vunpack.c.l.b16 %v3268
        %v3788 = vunpack.c.l.b16 %v3269
        %v3789 = vunpack.c.l.b16 %v3270
        %v3790 = vunpack.c.l.b16 %v3271
        %v3791 = vunpack.c.l.b16 %v3272
        %v3792 = vunpack.c.l.b16 %v3273
        %v3793 = vunpack.c.l.b16 %v3274
        %v3794 = vunpack.c.l.b16 %v3275
        %v3795 = vunpack.c.l.b16 %v3276
        %v3796 = vunpack.c.l.b16 %v3277
        %v3797 = vunpack.c.l.b16 %v3278
        %v3798 = vunpack.c.l.b16 %v3279
        %v3799 = vunpack.c.l.b16 %v3280
        %v3800 = vunpack.c.l.b16 %v3281
        %v3801 = vpack.c.b16 %v3546, %v3545
        %v3802 = vpack.c.b16 %v3548, %v3547
        %v3803 = vpack.c.b16 %v3550, %v3549
        %v3804 = vpack.c.b16 %v3552, %v3551
        %v3805 = vpack.c.b16 %v3554, %v3553
        %v3806 = vpack.c.b16 %v3556, %v3555
        %v3807 = vpack.c.b16 %v3558, %v3557
        %v3808 = vpack.c.b16 %v3560, %v3559
        %v3809 = vpack.c.b16 %v3562, %v3561
        %v3810 = vpack.c.b16 %v3564, %v3563
        %v3811 = vpack.c.b16 %v3566, %v3565
        %v3812 = vpack.c.b16 %v3568, %v3567
        %v3813 = vpack.c.b16 %v3570, %v3569
        %v3814 = vpack.c.b16 %v3572, %v3571
        %v3815 = vpack.c.b16 %v3574, %v3573
        %v3816 = vpack.c.b16 %v3576, %v3575
        %v3817 = vpack.c.b16 %v3578, %v3577
        %v3818 = vpack.c.b16 %v3580, %v3579
        %v3819 = vpack.c.b16 %v3582, %v3581
        %v3820 = vpack.c.b16 %v3584, %v3583
        %v3821 = vpack.c.b16 %v3586, %v3585
        %v3822 = vpack.c.b16 %v3588, %v3587
        %v3823 = vpack.c.b16 %v3590, %v3589
        %v3824 = vpack.c.b16 %v3592, %v3591
        %v3825 = vpack.c.b16 %v3594, %v3593
        %v3826 = vpack.c.b16 %v3596, %v3595
        %v3827 = vpack.c.b16 %v3598, %v3597
        %v3828 = vpack.c.b16 %v3600, %v3599
        %v3829 = vpack.c.b16 %v3602, %v3601
        %v3830 = vpack.c.b16 %v3604, %v3603
        %v3831 = vpack.c.b16 %v3606, %v3605
        %v3832 = vpack.c.b16 %v3608, %v3607
        %v3833 = vpack.c.b16 %v3610, %v3609
        %v3834 = vpack.c.b16 %v3612, %v3611
        %v3835 = vpack.c.b16 %v3614, %v3613
        %v3836 = vpack.c.b16 %v3616, %v3615
        %v3837 = vpack.c.b16 %v3618, %v3617
        %v3838 = vpack.c.b16 %v3620, %v3619
        %v3839 = vpack.c.b16 %v3622, %v3621
        %v3840 = vpack.c.b16 %v3624, %v3623
        %v3841 = vpack.c.b16 %v3626, %v3625
        %v3842 = vpack.c.b16 %v3628, %v3627
        %v3843 = vpack.c.b16 %v3630, %v3629
        %v3844 = vpack.c.b16 %v3632, %v3631
        %v3845 = vpack.c.b16 %v3634, %v3633
        %v3846 = vpack.c.b16 %v3636, %v3635
        %v3847 = vpack.c.b16 %v3638, %v3637
        %v3848 = vpack.c.b16 %v3640, %v3639
        %v3849 = vpack.c.b16 %v3642, %v3641
        %v3850 = vpack.c.b16 %v3644, %v3643
        %v3851 = vpack.c.b16 %v3646, %v3645
        %v3852 = vpack.c.b16 %v3648, %v3647
        %v3853 = vpack.c.b16 %v3650, %v3649
        %v3854 = vpack.c.b16 %v3652, %v3651
        %v3855 = vpack.c.b16 %v3654, %v3653
        %v3856 = vpack.c.b16 %v3656, %v3655
        %v3857 = vpack.c.b16 %v3658, %v3657
        %v3858 = vpack.c.b16 %v3660, %v3659
        %v3859 = vpack.c.b16 %v3662, %v3661
        %v3860 = vpack.c.b16 %v3664, %v3663
        %v3861 = vpack.c.b16 %v3666, %v3665
        %v3862 = vpack.c.b16 %v3668, %v3667
        %v3863 = vpack.c.b16 %v3670, %v3669
        %v3864 = vpack.c.b16 %v3672, %v3671
        %v3865 = vpack.c.b16 %v3674, %v3673
        %v3866 = vpack.c.b16 %v3676, %v3675
        %v3867 = vpack.c.b16 %v3678, %v3677
        %v3868 = vpack.c.b16 %v3680, %v3679
        %v3869 = vpack.c.b16 %v3682, %v3681
        %v3870 = vpack.c.b16 %v3684, %v3683
        %v3871 = vpack.c.b16 %v3686, %v3685
        %v3872 = vpack.c.b16 %v3688, %v3687
        %v3873 = vpack.c.b16 %v3690, %v3689
        %v3874 = vpack.c.b16 %v3692, %v3691
        %v3875 = vpack.c.b16 %v3694, %v3693
        %v3876 = vpack.c.b16 %v3696, %v3695
        %v3877 = vpack.c.b16 %v3698, %v3697
        %v3878 = vpack.c.b16 %v3700, %v3699
        %v3879 = vpack.c.b16 %v3702, %v3701
        %v3880 = vpack.c.b16 %v3704, %v3703
        %v3881 = vpack.c.b16 %v3706, %v3705
        %v3882 = vpack.c.b16 %v3708, %v3707
        %v3883 = vpack.c.b16 %v3710, %v3709
        %v3884 = vpack.c.b16 %v3712, %v3711
        %v3885 = vpack.c.b16 %v3714, %v3713
        %v3886 = vpack.c.b16 %v3716, %v3715
        %v3887 = vpack.c.b16 %v3718, %v3717
        %v3888 = vpack.c.b16 %v3720, %v3719
        %v3889 = vpack.c.b16 %v3722, %v3721
        %v3890 = vpack.c.b16 %v3724, %v3723
        %v3891 = vpack.c.b16 %v3726, %v3725
        %v3892 = vpack.c.b16 %v3728, %v3727
        %v3893 = vpack.c.b16 %v3730, %v3729
        %v3894 = vpack.c.b16 %v3732, %v3731
        %v3895 = vpack.c.b16 %v3734, %v3733
        %v3896 = vpack.c.b16 %v3736, %v3735
        %v3897 = vpack.c.b16 %v3738, %v3737
        %v3898 = vpack.c.b16 %v3740, %v3739
        %v3899 = vpack.c.b16 %v3742, %v3741
        %v3900 = vpack.c.b16 %v3744, %v3743
        %v3901 = vpack.c.b16 %v3746, %v3745
        %v3902 = vpack.c.b16 %v3748, %v3747
        %v3903 = vpack.c.b16 %v3750, %v3749
        %v3904 = vpack.c.b16 %v3752, %v3751
        %v3905 = vpack.c.b16 %v3754, %v3753
        %v3906 = vpack.c.b16 %v3756, %v3755
        %v3907 = vpack.c.b16 %v3758, %v3757
        %v3908 = vpack.c.b16 %v3760, %v3759
        %v3909 = vpack.c.b16 %v3762, %v3761
        %v3910 = vpack.c.b16 %v3764, %v3763
        %v3911 = vpack.c.b16 %v3766, %v3765
        %v3912 = vpack.c.b16 %v3768, %v3767
        %v3913 = vpack.c.b16 %v3770, %v3769
        %v3914 = vpack.c.b16 %v3772, %v3771
        %v3915 = vpack.c.b16 %v3774, %v3773
        %v3916 = vpack.c.b16 %v3776, %v3775
        %v3917 = vpack.c.b16 %v3778, %v3777
        %v3918 = vpack.c.b16 %v3780, %v3779
        %v3919 = vpack.c.b16 %v3782, %v3781
        %v3920 = vpack.c.b16 %v3784, %v3783
        %v3921 = vpack.c.b16 %v3786, %v3785
        %v3922 = vpack.c.b16 %v3788, %v3787
        %v3923 = vpack.c.b16 %v3790, %v3789
        %v3924 = vpack.c.b16 %v3792, %v3791
        %v3925 = vpack.c.b16 %v3794, %v3793
        %v3926 = vpack.c.b16 %v3796, %v3795
        %v3927 = vpack.c.b16 %v3798, %v3797
        %v3928 = vpack.c.b16 %v3800, %v3799
        %4057 = vmatprep.subr.bf16.mxu0 0
        %4058 = vmatpush1.bf16.msra.mxu0 %v3808
        %4059 = vmatprep.subr.bf16.mxu0 0
        %4060 = vmatpush1.bf16.msra.mxu0 %v3807
        %4061 = vmatprep.subr.bf16.mxu0 0
        %4062 = vmatpush1.bf16.msra.mxu0 %v3806
        %4063 = vmatprep.subr.bf16.mxu0 0
        %4064 = vmatpush1.bf16.msra.mxu0 %v3805
        %4065 = vmatprep.subr.bf16.mxu0 0
        %4066 = vmatpush1.bf16.msra.mxu0 %v3804
        %4067 = vmatprep.subr.bf16.mxu0 0
        %4068 = vmatpush1.bf16.msra.mxu0 %v3803
        %4069 = vmatprep.subr.bf16.mxu0 0
        %4070 = vmatpush1.bf16.msra.mxu0 %v3802
        %4071 = vmatprep.subr.bf16.mxu0 0
        %4072 = vmatpush1.bf16.msra.mxu0 %v3801
        %4073 = vmatprep.subr.bf16.mxu0 0
        %4074 = vmatpush2.bf16.msra.mxu0 %v3816
        %4075 = vmatprep.subr.bf16.mxu0 0
        %4076 = vmatpush2.bf16.msra.mxu0 %v3815
        %4077 = vmatprep.subr.bf16.mxu0 0
        %4078 = vmatpush2.bf16.msra.mxu0 %v3814
        %4079 = vmatprep.subr.bf16.mxu0 0
        %4080 = vmatpush2.bf16.msra.mxu0 %v3813
        %4081 = vmatprep.subr.bf16.mxu0 0
        %4082 = vmatpush2.bf16.msra.mxu0 %v3812
        %4083 = vmatprep.subr.bf16.mxu0 0
        %4084 = vmatpush2.bf16.msra.mxu0 %v3811
        %4085 = vmatprep.subr.bf16.mxu0 0
        %4086 = vmatpush2.bf16.msra.mxu0 %v3810
        %4087 = vmatprep.subr.bf16.mxu0 0
        %4088 = vmatpush2.bf16.msra.mxu0 %v3809
        %4089 = vmatprep.mubr.bf16.mxu0 %v3011
        %4090 = vmatmul.mubr.bf16.gmra.mxu0 %v3010
        %v4091 = vpop.f32.mrf.mxu0
        %v4092 = vadd.f32 %v3287, %v4091
        %v4093 = vpop.f32.mrf.mxu0
        %v4094 = vpop.f32.mrf.mxu0
        %v4095 = vadd.f32 %v3287, %v4094
        %v4096 = vpop.f32.mrf.mxu0
        %4097 = vdwg.mxu0
        %4098 = vmatprep.subr.bf16.mxu0 0
        %4099 = vmatpush1.bf16.msra.mxu0 %v3824
        %4100 = vmatprep.subr.bf16.mxu0 0
        %4101 = vmatpush1.bf16.msra.mxu0 %v3823
        %4102 = vmatprep.subr.bf16.mxu0 0
        %4103 = vmatpush1.bf16.msra.mxu0 %v3822
        %4104 = vmatprep.subr.bf16.mxu0 0
        %4105 = vmatpush1.bf16.msra.mxu0 %v3821
        %4106 = vmatprep.subr.bf16.mxu0 0
        %4107 = vmatpush1.bf16.msra.mxu0 %v3820
        %4108 = vmatprep.subr.bf16.mxu0 0
        %4109 = vmatpush1.bf16.msra.mxu0 %v3819
        %4110 = vmatprep.subr.bf16.mxu0 0
        %4111 = vmatpush1.bf16.msra.mxu0 %v3818
        %4112 = vmatprep.subr.bf16.mxu0 0
        %4113 = vmatpush1.bf16.msra.mxu0 %v3817
        %4114 = vmatprep.subr.bf16.mxu0 0
        %4115 = vmatpush2.bf16.msra.mxu0 %v3832
        %4116 = vmatprep.subr.bf16.mxu0 0
        %4117 = vmatpush2.bf16.msra.mxu0 %v3831
        %4118 = vmatprep.subr.bf16.mxu0 0
        %4119 = vmatpush2.bf16.msra.mxu0 %v3830
        %4120 = vmatprep.subr.bf16.mxu0 0
        %4121 = vmatpush2.bf16.msra.mxu0 %v3829
        %4122 = vmatprep.subr.bf16.mxu0 0
        %4123 = vmatpush2.bf16.msra.mxu0 %v3828
        %4124 = vmatprep.subr.bf16.mxu0 0
        %4125 = vmatpush2.bf16.msra.mxu0 %v3827
        %4126 = vmatprep.subr.bf16.mxu0 0
        %4127 = vmatpush2.bf16.msra.mxu0 %v3826
        %4128 = vmatprep.subr.bf16.mxu0 0
        %4129 = vmatpush2.bf16.msra.mxu0 %v3825
        %4130 = vmatprep.mubr.bf16.mxu0 %v3013
        %4131 = vmatmul.mubr.bf16.gmra.mxu0 %v3012
        %v4132 = vpop.f32.mrf.mxu0
        %v4133 = vadd.f32 %v4092, %v4132
        %v4134 = vpop.f32.mrf.mxu0
        %v4135 = vpop.f32.mrf.mxu0
        %v4136 = vadd.f32 %v4095, %v4135
        %v4137 = vpop.f32.mrf.mxu0
        %4138 = vdwg.mxu0
        %4139 = vmatprep.subr.bf16.mxu0 0
        %4140 = vmatpush1.bf16.msra.mxu0 %v3840
        %4141 = vmatprep.subr.bf16.mxu0 0
        %4142 = vmatpush1.bf16.msra.mxu0 %v3839
        %4143 = vmatprep.subr.bf16.mxu0 0
        %4144 = vmatpush1.bf16.msra.mxu0 %v3838
        %4145 = vmatprep.subr.bf16.mxu0 0
        %4146 = vmatpush1.bf16.msra.mxu0 %v3837
        %4147 = vmatprep.subr.bf16.mxu0 0
        %4148 = vmatpush1.bf16.msra.mxu0 %v3836
        %4149 = vmatprep.subr.bf16.mxu0 0
        %4150 = vmatpush1.bf16.msra.mxu0 %v3835
        %4151 = vmatprep.subr.bf16.mxu0 0
        %4152 = vmatpush1.bf16.msra.mxu0 %v3834
        %4153 = vmatprep.subr.bf16.mxu0 0
        %4154 = vmatpush1.bf16.msra.mxu0 %v3833
        %4155 = vmatprep.subr.bf16.mxu0 0
        %4156 = vmatpush2.bf16.msra.mxu0 %v3848
        %4157 = vmatprep.subr.bf16.mxu0 0
        %4158 = vmatpush2.bf16.msra.mxu0 %v3847
        %4159 = vmatprep.subr.bf16.mxu0 0
        %4160 = vmatpush2.bf16.msra.mxu0 %v3846
        %4161 = vmatprep.subr.bf16.mxu0 0
        %4162 = vmatpush2.bf16.msra.mxu0 %v3845
        %4163 = vmatprep.subr.bf16.mxu0 0
        %4164 = vmatpush2.bf16.msra.mxu0 %v3844
        %4165 = vmatprep.subr.bf16.mxu0 0
        %4166 = vmatpush2.bf16.msra.mxu0 %v3843
        %4167 = vmatprep.subr.bf16.mxu0 0
        %4168 = vmatpush2.bf16.msra.mxu0 %v3842
        %4169 = vmatprep.subr.bf16.mxu0 0
        %4170 = vmatpush2.bf16.msra.mxu0 %v3841
        %4171 = vmatprep.mubr.bf16.mxu0 %v3015
        %4172 = vmatmul.mubr.bf16.gmra.mxu0 %v3014
        %v4173 = vpop.f32.mrf.mxu0
        %v4174 = vadd.f32 %v4133, %v4173
        %v4175 = vpop.f32.mrf.mxu0
        %v4176 = vpop.f32.mrf.mxu0
        %v4177 = vadd.f32 %v4136, %v4176
        %v4178 = vpop.f32.mrf.mxu0
        %4179 = vdwg.mxu0
        %4180 = vmatprep.subr.bf16.mxu0 0
        %4181 = vmatpush1.bf16.msra.mxu0 %v3856
        %4182 = vmatprep.subr.bf16.mxu0 0
        %4183 = vmatpush1.bf16.msra.mxu0 %v3855
        %4184 = vmatprep.subr.bf16.mxu0 0
        %4185 = vmatpush1.bf16.msra.mxu0 %v3854
        %4186 = vmatprep.subr.bf16.mxu0 0
        %4187 = vmatpush1.bf16.msra.mxu0 %v3853
        %4188 = vmatprep.subr.bf16.mxu0 0
        %4189 = vmatpush1.bf16.msra.mxu0 %v3852
        %4190 = vmatprep.subr.bf16.mxu0 0
        %4191 = vmatpush1.bf16.msra.mxu0 %v3851
        %4192 = vmatprep.subr.bf16.mxu0 0
        %4193 = vmatpush1.bf16.msra.mxu0 %v3850
        %4194 = vmatprep.subr.bf16.mxu0 0
        %4195 = vmatpush1.bf16.msra.mxu0 %v3849
        %4196 = vmatprep.subr.bf16.mxu0 0
        %4197 = vmatpush2.bf16.msra.mxu0 %v3864
        %4198 = vmatprep.subr.bf16.mxu0 0
        %4199 = vmatpush2.bf16.msra.mxu0 %v3863
        %4200 = vmatprep.subr.bf16.mxu0 0
        %4201 = vmatpush2.bf16.msra.mxu0 %v3862
        %4202 = vmatprep.subr.bf16.mxu0 0
        %4203 = vmatpush2.bf16.msra.mxu0 %v3861
        %4204 = vmatprep.subr.bf16.mxu0 0
        %4205 = vmatpush2.bf16.msra.mxu0 %v3860
        %4206 = vmatprep.subr.bf16.mxu0 0
        %4207 = vmatpush2.bf16.msra.mxu0 %v3859
        %4208 = vmatprep.subr.bf16.mxu0 0
        %4209 = vmatpush2.bf16.msra.mxu0 %v3858
        %4210 = vmatprep.subr.bf16.mxu0 0
        %4211 = vmatpush2.bf16.msra.mxu0 %v3857
        %4212 = vmatprep.mubr.bf16.mxu0 %v3017
        %4213 = vmatmul.mubr.bf16.gmra.mxu0 %v3016
        %v4214 = vpop.f32.mrf.mxu0
        %v4215 = vadd.f32 %v4174, %v4214
        %v4216 = vpop.f32.mrf.mxu0
        %v4217 = vpop.f32.mrf.mxu0
        %v4218 = vadd.f32 %v4177, %v4217
        %v4219 = vpop.f32.mrf.mxu0
        %4220 = vdwg.mxu0
        %4221 = vmatprep.subr.bf16.mxu0 0
        %4222 = vmatpush1.bf16.msra.mxu0 %v3872
        %4223 = vmatprep.subr.bf16.mxu0 0
        %4224 = vmatpush1.bf16.msra.mxu0 %v3871
        %4225 = vmatprep.subr.bf16.mxu0 0
        %4226 = vmatpush1.bf16.msra.mxu0 %v3870
        %4227 = vmatprep.subr.bf16.mxu0 0
        %4228 = vmatpush1.bf16.msra.mxu0 %v3869
        %4229 = vmatprep.subr.bf16.mxu0 0
        %4230 = vmatpush1.bf16.msra.mxu0 %v3868
        %4231 = vmatprep.subr.bf16.mxu0 0
        %4232 = vmatpush1.bf16.msra.mxu0 %v3867
        %4233 = vmatprep.subr.bf16.mxu0 0
        %4234 = vmatpush1.bf16.msra.mxu0 %v3866
        %4235 = vmatprep.subr.bf16.mxu0 0
        %4236 = vmatpush1.bf16.msra.mxu0 %v3865
        %4237 = vmatprep.subr.bf16.mxu0 0
        %4238 = vmatpush2.bf16.msra.mxu0 %v3880
        %4239 = vmatprep.subr.bf16.mxu0 0
        %4240 = vmatpush2.bf16.msra.mxu0 %v3879
        %4241 = vmatprep.subr.bf16.mxu0 0
        %4242 = vmatpush2.bf16.msra.mxu0 %v3878
        %4243 = vmatprep.subr.bf16.mxu0 0
        %4244 = vmatpush2.bf16.msra.mxu0 %v3877
        %4245 = vmatprep.subr.bf16.mxu0 0
        %4246 = vmatpush2.bf16.msra.mxu0 %v3876
        %4247 = vmatprep.subr.bf16.mxu0 0
        %4248 = vmatpush2.bf16.msra.mxu0 %v3875
        %4249 = vmatprep.subr.bf16.mxu0 0
        %4250 = vmatpush2.bf16.msra.mxu0 %v3874
        %4251 = vmatprep.subr.bf16.mxu0 0
        %4252 = vmatpush2.bf16.msra.mxu0 %v3873
        %4253 = vmatprep.mubr.bf16.mxu0 %v3019
        %4254 = vmatmul.mubr.bf16.gmra.mxu0 %v3018
        %v4255 = vpop.f32.mrf.mxu0
        %v4256 = vadd.f32 %v4215, %v4255
        %v4257 = vpop.f32.mrf.mxu0
        %v4258 = vpop.f32.mrf.mxu0
        %v4259 = vadd.f32 %v4218, %v4258
        %v4260 = vpop.f32.mrf.mxu0
        %4261 = vdwg.mxu0
        %4262 = vmatprep.subr.bf16.mxu0 0
        %4263 = vmatpush1.bf16.msra.mxu0 %v3888
        %4264 = vmatprep.subr.bf16.mxu0 0
        %4265 = vmatpush1.bf16.msra.mxu0 %v3887
        %4266 = vmatprep.subr.bf16.mxu0 0
        %4267 = vmatpush1.bf16.msra.mxu0 %v3886
        %4268 = vmatprep.subr.bf16.mxu0 0
        %4269 = vmatpush1.bf16.msra.mxu0 %v3885
        %4270 = vmatprep.subr.bf16.mxu0 0
        %4271 = vmatpush1.bf16.msra.mxu0 %v3884
        %4272 = vmatprep.subr.bf16.mxu0 0
        %4273 = vmatpush1.bf16.msra.mxu0 %v3883
        %4274 = vmatprep.subr.bf16.mxu0 0
        %4275 = vmatpush1.bf16.msra.mxu0 %v3882
        %4276 = vmatprep.subr.bf16.mxu0 0
        %4277 = vmatpush1.bf16.msra.mxu0 %v3881
        %4278 = vmatprep.subr.bf16.mxu0 0
        %4279 = vmatpush2.bf16.msra.mxu0 %v3896
        %4280 = vmatprep.subr.bf16.mxu0 0
        %4281 = vmatpush2.bf16.msra.mxu0 %v3895
        %4282 = vmatprep.subr.bf16.mxu0 0
        %4283 = vmatpush2.bf16.msra.mxu0 %v3894
        %4284 = vmatprep.subr.bf16.mxu0 0
        %4285 = vmatpush2.bf16.msra.mxu0 %v3893
        %4286 = vmatprep.subr.bf16.mxu0 0
        %4287 = vmatpush2.bf16.msra.mxu0 %v3892
        %4288 = vmatprep.subr.bf16.mxu0 0
        %4289 = vmatpush2.bf16.msra.mxu0 %v3891
        %4290 = vmatprep.subr.bf16.mxu0 0
        %4291 = vmatpush2.bf16.msra.mxu0 %v3890
        %4292 = vmatprep.subr.bf16.mxu0 0
        %4293 = vmatpush2.bf16.msra.mxu0 %v3889
        %4294 = vmatprep.mubr.bf16.mxu0 %v3021
        %4295 = vmatmul.mubr.bf16.gmra.mxu0 %v3020
        %v4296 = vpop.f32.mrf.mxu0
        %v4297 = vadd.f32 %v4256, %v4296
        %v4298 = vpop.f32.mrf.mxu0
        %v4299 = vpop.f32.mrf.mxu0
        %v4300 = vadd.f32 %v4259, %v4299
        %v4301 = vpop.f32.mrf.mxu0
        %4302 = vdwg.mxu0
        %4303 = vmatprep.subr.bf16.mxu0 0
        %4304 = vmatpush1.bf16.msra.mxu0 %v3904
        %4305 = vmatprep.subr.bf16.mxu0 0
        %4306 = vmatpush1.bf16.msra.mxu0 %v3903
        %4307 = vmatprep.subr.bf16.mxu0 0
        %4308 = vmatpush1.bf16.msra.mxu0 %v3902
        %4309 = vmatprep.subr.bf16.mxu0 0
        %4310 = vmatpush1.bf16.msra.mxu0 %v3901
        %4311 = vmatprep.subr.bf16.mxu0 0
        %4312 = vmatpush1.bf16.msra.mxu0 %v3900
        %4313 = vmatprep.subr.bf16.mxu0 0
        %4314 = vmatpush1.bf16.msra.mxu0 %v3899
        %4315 = vmatprep.subr.bf16.mxu0 0
        %4316 = vmatpush1.bf16.msra.mxu0 %v3898
        %4317 = vmatprep.subr.bf16.mxu0 0
        %4318 = vmatpush1.bf16.msra.mxu0 %v3897
        %4319 = vmatprep.subr.bf16.mxu0 0
        %4320 = vmatpush2.bf16.msra.mxu0 %v3912
        %4321 = vmatprep.subr.bf16.mxu0 0
        %4322 = vmatpush2.bf16.msra.mxu0 %v3911
        %4323 = vmatprep.subr.bf16.mxu0 0
        %4324 = vmatpush2.bf16.msra.mxu0 %v3910
        %4325 = vmatprep.subr.bf16.mxu0 0
        %4326 = vmatpush2.bf16.msra.mxu0 %v3909
        %4327 = vmatprep.subr.bf16.mxu0 0
        %4328 = vmatpush2.bf16.msra.mxu0 %v3908
        %4329 = vmatprep.subr.bf16.mxu0 0
        %4330 = vmatpush2.bf16.msra.mxu0 %v3907
        %4331 = vmatprep.subr.bf16.mxu0 0
        %4332 = vmatpush2.bf16.msra.mxu0 %v3906
        %4333 = vmatprep.subr.bf16.mxu0 0
        %4334 = vmatpush2.bf16.msra.mxu0 %v3905
        %4335 = vmatprep.mubr.bf16.mxu0 %v3023
        %4336 = vmatmul.mubr.bf16.gmra.mxu0 %v3022
        %v4337 = vpop.f32.mrf.mxu0
        %v4338 = vadd.f32 %v4297, %v4337
        %v4339 = vpop.f32.mrf.mxu0
        %v4340 = vpop.f32.mrf.mxu0
        %v4341 = vadd.f32 %v4300, %v4340
        %v4342 = vpop.f32.mrf.mxu0
        %4343 = vdwg.mxu0
        %4344 = vmatprep.subr.bf16.mxu0 0
        %4345 = vmatpush1.bf16.msra.mxu0 %v3920
        %4346 = vmatprep.subr.bf16.mxu0 0
        %4347 = vmatpush1.bf16.msra.mxu0 %v3919
        %4348 = vmatprep.subr.bf16.mxu0 0
        %4349 = vmatpush1.bf16.msra.mxu0 %v3918
        %4350 = vmatprep.subr.bf16.mxu0 0
        %4351 = vmatpush1.bf16.msra.mxu0 %v3917
        %4352 = vmatprep.subr.bf16.mxu0 0
        %4353 = vmatpush1.bf16.msra.mxu0 %v3916
        %4354 = vmatprep.subr.bf16.mxu0 0
        %4355 = vmatpush1.bf16.msra.mxu0 %v3915
        %4356 = vmatprep.subr.bf16.mxu0 0
        %4357 = vmatpush1.bf16.msra.mxu0 %v3914
        %4358 = vmatprep.subr.bf16.mxu0 0
        %4359 = vmatpush1.bf16.msra.mxu0 %v3913
        %4360 = vmatprep.subr.bf16.mxu0 0
        %4361 = vmatpush2.bf16.msra.mxu0 %v3928
        %4362 = vmatprep.subr.bf16.mxu0 0
        %4363 = vmatpush2.bf16.msra.mxu0 %v3927
        %4364 = vmatprep.subr.bf16.mxu0 0
        %4365 = vmatpush2.bf16.msra.mxu0 %v3926
        %4366 = vmatprep.subr.bf16.mxu0 0
        %4367 = vmatpush2.bf16.msra.mxu0 %v3925
        %4368 = vmatprep.subr.bf16.mxu0 0
        %4369 = vmatpush2.bf16.msra.mxu0 %v3924
        %4370 = vmatprep.subr.bf16.mxu0 0
        %4371 = vmatpush2.bf16.msra.mxu0 %v3923
        %4372 = vmatprep.subr.bf16.mxu0 0
        %4373 = vmatpush2.bf16.msra.mxu0 %v3922
        %4374 = vmatprep.subr.bf16.mxu0 0
        %4375 = vmatpush2.bf16.msra.mxu0 %v3921
        %4376 = vmatprep.mubr.bf16.mxu0 %v3025
        %4377 = vmatmul.mubr.bf16.gmra.mxu0 %v3024
        %v4378 = vpop.f32.mrf.mxu0
        %v4379 = vadd.f32 %v4338, %v4378
        %v4380 = vpop.f32.mrf.mxu0
        %v4381 = vpop.f32.mrf.mxu0
        %v4382 = vadd.f32 %v4341, %v4381
        %v4383 = vpop.f32.mrf.mxu0
        %4384 = vdwg.mxu0
        %v4385 = vadd.f32 %v1779, %v4379
        %v4386 = vadd.f32 %v1780, %v4382
        %v4387 = vld [vmem:[%s10] sm:$0x1]
        %v4388 = vld [vmem:[#allocation13] sm:$0x1]
        %4389 = vadd.xlane.f32.xlu0 %v4385
        %v4390 = vpop.xlane.xlu0 %4389
        %4391 = vadd.xlane.f32.xlu0 %v4386
        %v4392 = vpop.xlane.xlu0 %4391
        %v4393 = vmul.f32 %v4390, %v1742
        %v4394 = vmul.f32 %v4392, %v1742
        %v4395 = vmul.f32 %v4385, %v4385
        %v4396 = vmul.f32 %v4386, %v4386
        %4397 = vadd.xlane.f32.xlu0 %v4395
        %v4398 = vpop.xlane.xlu0 %4397
        %4399 = vadd.xlane.f32.xlu0 %v4396
        %v4400 = vpop.xlane.xlu0 %4399
        %v4401 = vmul.f32 %v4398, %v1742
        %v4402 = vmul.f32 %v4400, %v1742
        %v4403 = vmul.f32 %v4393, %v4393
        %v4404 = vmul.f32 %v4394, %v4394
        %v4405 = vsub.f32 %v4401, %v4403
        %v4406 = vsub.f32 %v4402, %v4404
        %v4407 = vsub.f32 %v4385, %v4393
        %v4408 = vsub.f32 %v4386, %v4394
        %v4409 = vadd.f32 %v4405, 1e-05
        %v4410 = vadd.f32 %v4406, 1e-05
        %v4411 = vrsqrt.pop %v4409
        %v4412 = vrsqrt.pop %v4410
        %v4413 = vmul.f32 %v4407, %v4411
        %v4414 = vmul.f32 %v4408, %v4412
        %v4416 = vlaneseq
        %v4417 = vshrl.u32 %v4416, 7
        %v4418 = vsub.s32 0, %v4417
        %v4419 = vrot.slane %v4387, %v4418
        %v4421 = vmul.f32 %v4413, %v4419
        %v4422 = vmul.f32 %v4414, %v4419
        %v4424 = vlaneseq
        %v4425 = vshrl.u32 %v4424, 7
        %v4426 = vsub.s32 0, %v4425
        %v4427 = vrot.slane %v4388, %v4426
        %v4429 = vadd.f32 %v4421, %v4427
        %v4430 = vadd.f32 %v4422, %v4427
        %4431 = vst [vmem:[%s682] sm:$0xff] %v4429
        %4432 = vst [vmem:[%s682 + $0x8] sm:$0xff] %v4430
        %s4433 = sand.u32 %s409, 1
        %s4434 = scalar_lea.sflag [#allocation6], %s4433
        %s4435 = sand.u32 %s409, 1
        %s4436 = smul.addr %s4435, 16
        %s4437 = scalar_lea.vmem [#allocation18], %s4436
        // Predicated region
        $region121: #{tpu_custom_call.1} parent=83 // pred_check
          %p4438 = pneg %p419
        $region122: #{tpu_custom_call.1} parent=83 // pred_check_branch
          %4440 = sbr.rel (%p4438) target = $region124
        $region123: #{tpu_custom_call.1} parent=83 // pred_region
          %s4441 = smul.u32 2, %s44
          %s4443 = ssub.s32 256, 256
          %4444 = vsyncadd %s4434, %s4443
          %s4445 = smul.addr %s43, 2
          %s4446 = sadd.s32 %s4441, %s4445
          %s4447 = smul.addr %s4446, 128
          %s4448 = scalar_lea.hbm %s16, %s4447
          %s4449 = sshll.u32 %s4437, 4
          %s4450 = int_to_ptr.vmem [resolvable:$true] %s4449
          %4455 = dma.vmem_to_hbm [thread:$0]  %s4450, 256, %s4448, %s4434, 128, 128, 8
        $region124: #{tpu_custom_call.1} parent=83 // pred_fallthru
          _
      $region84: #{tpu_custom_call.1} parent=5 // pred_fallthru
        _
      %p4456 = scmp.le.s32.totalorder 2, %s34
      // Predicated region
      $region125: #{tpu_custom_call.1} parent=5 // pred_check
        %p4457 = pneg %p4456
      $region126: #{tpu_custom_call.1} parent=5 // pred_check_branch
        %4459 = sbr.rel (%p4457) target = $region128
      $region127: #{tpu_custom_call.1} parent=5 // pred_region
        %s4460 = ssub.s32 %s34, 2
        // Predicated region
        $region129: #{tpu_custom_call.1} parent=127 // pred_check
          %p4461 = pneg %p425
        $region130: #{tpu_custom_call.1} parent=127 // pred_check_branch
          %4463 = sbr.rel (%p4461) target = $region132
        $region131: #{tpu_custom_call.1} parent=127 // pred_region
          %s4464 = sand.u32 %s410, 1
          %s4465 = scalar_lea.sflag [#allocation6], %s4464
          %s4466 = sand.u32 %s410, 1
          %s4467 = smul.addr %s4466, 16
          %s4468 = scalar_lea.vmem [#allocation18], %s4467
          %4469 = dma.done %s4465, 256
        $region132: #{tpu_custom_call.1} parent=127 // pred_fallthru
          _
      $region128: #{tpu_custom_call.1} parent=5 // pred_fallthru
        _
    $region6: #{tpu_custom_call.1} parent=1 // loop_footer
      %s38 = sadd.s32 1, %s34
    $region7: #{tpu_custom_call.1} parent=1 // loop_footer_branch
      %33 = sbr.rel target = $region3
    $region8: #{tpu_custom_call.1} parent=1 // loop_exit
      _
    %4470 = vsyncpa [#allocation5], 1
    %s4471 = scalar_lea.sflag [#allocation5], 1
    %4472 = vsyncpa %s4471, 1
    %4473 = vsyncpa [#allocation8], 1
    %s4474 = scalar_lea.sflag [#allocation8], 1
    %4475 = vsyncpa %s4474, 1
    %4476 = vsyncpa [#allocation11], 1
    %4477 = vsyncpa [#allocation14], 1
    %4478 = vsyncpa [#allocation17], 1
    %4479 = vsyncpa [#allocation6], 1
    %s4480 = scalar_lea.sflag [#allocation6], 1
    %4481 = vsyncpa %s4480, 1

</llo_original>
